<compile_context>
chip_gen: v5e
topology: v5e:2x2
jax: 0.10.0
libtpu: 0.0.40
codegen_flags: <defaults>
</compile_context>

<pallas_src>
import functools

import jax
import jax.numpy as jnp
from jax.experimental import pallas as pl
from jax.experimental.pallas import tpu as pltpu

n_classes = 10
n_hidden_1 = 512
n_hidden_2 = 64
n_input = 28 * 28  # 784

LANE = 128
N_IN_PAD = ((n_input + LANE - 1) // LANE) * LANE      # 896 = 7*128
N_OUT_PAD = ((n_classes + LANE - 1) // LANE) * LANE   # 128


def mlp_kernel(x_ref, w1_ref, b1_ref, w2_ref, b2_ref, w3_ref, b3_ref, o_ref):
    # Layer 1: (bm, 896)bf16 @ (896, 512)bf16 -> f32 acc, +bias, ReLU (f32)
    h1 = jnp.dot(x_ref[...], w1_ref[...], preferred_element_type=jnp.float32)
    h1 = jnp.maximum(h1 + b1_ref[...], 0.0)
    # Layer 2: (bm, 512) @ (512, 64) -> f32 acc, +bias, ReLU
    h2 = jnp.dot(h1.astype(jnp.bfloat16), w2_ref[...],
                 preferred_element_type=jnp.float32)
    h2 = jnp.maximum(h2 + b2_ref[...], 0.0)
    # Layer 3: (bm, 64) @ (64, 128-padded) -> f32 acc, +bias, ReLU
    h3 = jnp.dot(h2.astype(jnp.bfloat16), w3_ref[...],
                 preferred_element_type=jnp.float32)
    o_ref[...] = jnp.maximum(h3 + b3_ref[...], 0.0).astype(o_ref.dtype)


def prepare_params(params):
    """Cast weights to bf16 and zero-pad to lane-friendly shapes (once)."""
    w1, b1, w2, b2, w3, b3 = params
    w1p = jnp.zeros((N_IN_PAD, n_hidden_1), jnp.float32)
    w1p = w1p.at[:n_input, :].set(w1).astype(jnp.bfloat16)
    w2p = w2.astype(jnp.bfloat16)
    w3p = jnp.zeros((n_hidden_2, N_OUT_PAD), jnp.float32)
    w3p = w3p.at[:, :n_classes].set(w3).astype(jnp.bfloat16)
    b3p = jnp.zeros((1, N_OUT_PAD), jnp.float32).at[:, :n_classes].set(b3)
    return (w1p, b1.astype(jnp.float32), w2p, b2.astype(jnp.float32), w3p, b3p)


@functools.partial(jax.jit, static_argnames=("bm",))
def mlpnet_forward(x, prepared_params, *, bm=256):
    """x: any shape whose trailing dims flatten to 784 (e.g. (B, 1, 28, 28))."""
    w1, b1, w2, b2, w3, b3 = prepared_params

    x2d = x.reshape(-1, n_input).astype(jnp.float32)   # torch: x.view(-1, 784)
    B = x2d.shape[0]
    Bp = ((B + bm - 1) // bm) * bm                      # pad batch to tile
    xp = jnp.zeros((Bp, N_IN_PAD), jnp.bfloat16)
    xp = xp.at[:B, :n_input].set(x2d.astype(jnp.bfloat16))

    grid = (Bp // bm,)
    out = pl.pallas_call(
        mlp_kernel,
        out_shape=jax.ShapeDtypeStruct((Bp, N_OUT_PAD), jnp.float32),
        grid=grid,
        in_specs=[
            pl.BlockSpec((bm, N_IN_PAD), lambda i: (i, 0)),              # x tile
            pl.BlockSpec((N_IN_PAD, n_hidden_1), lambda i: (0, 0)),      # w1
            pl.BlockSpec((1, n_hidden_1), lambda i: (0, 0)),             # b1
            pl.BlockSpec((n_hidden_1, n_hidden_2), lambda i: (0, 0)),    # w2
            pl.BlockSpec((1, n_hidden_2), lambda i: (0, 0)),             # b2
            pl.BlockSpec((n_hidden_2, N_OUT_PAD), lambda i: (0, 0)),     # w3
            pl.BlockSpec((1, N_OUT_PAD), lambda i: (0, 0)),              # b3
        ],
        out_specs=pl.BlockSpec((bm, N_OUT_PAD), lambda i: (i, 0)),
        compiler_params=pltpu.CompilerParams(
            dimension_semantics=("parallel",)),
    )(xp, w1, b1, w2, b2, w3, b3)
    return out[:B, :n_classes]


def init_params(key):
    """Deterministic init mimicking nn.Linear default (uniform +/- 1/sqrt(fan_in)).

    Weights stored as (in_features, out_features)."""
    ks = jax.random.split(key, 6)

    def linear(kw, kb, fan_in, fan_out):
        bound = 1.0 / jnp.sqrt(jnp.float32(fan_in))
        w = jax.random.uniform(kw, (fan_in, fan_out), jnp.float32, -bound, bound)
        b = jax.random.uniform(kb, (1, fan_out), jnp.float32, -bound, bound)
        return w, b

    w1, b1 = linear(ks[0], ks[1], n_input, n_hidden_1)
    w2, b2 = linear(ks[2], ks[3], n_hidden_1, n_hidden_2)
    w3, b3 = linear(ks[4], ks[5], n_hidden_2, n_classes)
    return (w1, b1, w2, b2, w3, b3)


def mlpnet_ref(x, params):
    """Pure-JAX reference of the torch forward, using the same bf16 matmul /
    f32 accumulate numerics as the kernel."""
    w1, b1, w2, b2, w3, b3 = params
    bf = jnp.bfloat16
    h = x.reshape(-1, n_input).astype(jnp.float32)
    h = jnp.maximum(jnp.dot(h.astype(bf), w1.astype(bf),
                            preferred_element_type=jnp.float32) + b1, 0.0)
    h = jnp.maximum(jnp.dot(h.astype(bf), w2.astype(bf),
                            preferred_element_type=jnp.float32) + b2, 0.0)
    h = jnp.maximum(jnp.dot(h.astype(bf), w3.astype(bf),
                            preferred_element_type=jnp.float32) + b3, 0.0)
    return h


if __name__ == "__main__":
    key = jax.random.PRNGKey(0)
    kp, kx = jax.random.split(key)
    params = init_params(kp)
    prepared = prepare_params(params)

    # MNIST-like batch: (B, 1, 28, 28) NCHW, flattened inside forward.
    # B=512 with bm=256 -> 2 grid steps (both v7x TensorCores busy).
    B = 512
    x = jax.random.normal(kx, (B, 1, 28, 28), jnp.float32)

    out = mlpnet_forward(x, prepared, bm=256)
    out = jax.block_until_ready(out)

    ref = mlpnet_ref(x, params)
    assert out.shape == (B, n_classes), out.shape
    assert jnp.allclose(out, ref, atol=1e-2, rtol=1e-2), "mismatch vs reference"

    print("KERNEL_OK")
</pallas_src>

<mosaic_0001>
module attributes {stable_mosaic.version = 11 : i64} {
  func.func @mlp_kernel(%arg0: i32, %arg1: memref<256x896xbf16, #tpu.memory_space<vmem>>, %arg2: memref<896x512xbf16, #tpu.memory_space<vmem>>, %arg3: memref<1x512xf32, #tpu.memory_space<vmem>>, %arg4: memref<512x64xbf16, #tpu.memory_space<vmem>>, %arg5: memref<1x64xf32, #tpu.memory_space<vmem>>, %arg6: memref<64x128xbf16, #tpu.memory_space<vmem>>, %arg7: memref<1x128xf32, #tpu.memory_space<vmem>>, %arg8: memref<256x128xf32, #tpu.memory_space<vmem>>) attributes {dimension_semantics = [#tpu.dimension_semantics<parallel>], iteration_bounds = array<i64: 2>, scalar_prefetch = 0 : i64, scratch_operands = 0 : i64, tpu.core_type = #tpu.core_type<tc>, window_params = [{transform_indices = @transform_0, window_bounds = array<i64: 256, 896>}, {pipeline_mode = #tpu.pipeline_mode<synchronous>, transform_indices = @transform_1, window_bounds = array<i64: 896, 512>}, {pipeline_mode = #tpu.pipeline_mode<synchronous>, transform_indices = @transform_2, window_bounds = array<i64: 1, 512>}, {pipeline_mode = #tpu.pipeline_mode<synchronous>, transform_indices = @transform_3, window_bounds = array<i64: 512, 64>}, {pipeline_mode = #tpu.pipeline_mode<synchronous>, transform_indices = @transform_4, window_bounds = array<i64: 1, 64>}, {pipeline_mode = #tpu.pipeline_mode<synchronous>, transform_indices = @transform_5, window_bounds = array<i64: 64, 128>}, {pipeline_mode = #tpu.pipeline_mode<synchronous>, transform_indices = @transform_6, window_bounds = array<i64: 1, 128>}, {transform_indices = @transform_7, window_bounds = array<i64: 256, 128>}]} {
    %c0 = arith.constant 0 : index
    %c0_0 = arith.constant 0 : index
    %0 = vector.load %arg1[%c0, %c0_0] : memref<256x896xbf16, #tpu.memory_space<vmem>>, vector<256x896xbf16>
    %c0_1 = arith.constant 0 : index
    %c0_2 = arith.constant 0 : index
    %1 = vector.load %arg2[%c0_1, %c0_2] : memref<896x512xbf16, #tpu.memory_space<vmem>>, vector<896x512xbf16>
    %cst = arith.constant dense<0.000000e+00> : vector<256x512xf32>
    %2 = tpu.matmul %0, %1, %cst {dimension_numbers = #tpu.dot_dimension_numbers<[1], [0], [0], [1], [0, 0, 1, 1], [], []>} : vector<256x896xbf16>, vector<896x512xbf16>, vector<256x512xf32> -> vector<256x512xf32>
    %c0_3 = arith.constant 0 : index
    %c0_4 = arith.constant 0 : index
    %3 = vector.load %arg3[%c0_3, %c0_4] : memref<1x512xf32, #tpu.memory_space<vmem>>, vector<1x512xf32>
    %4 = vector.broadcast %3 : vector<1x512xf32> to vector<256x512xf32>
    %5 = arith.addf %2, %4 : vector<256x512xf32>
    %cst_5 = arith.constant 0.000000e+00 : f32
    %6 = vector.broadcast %cst_5 : f32 to vector<256x512xf32>
    %7 = arith.maximumf %5, %6 : vector<256x512xf32>
    %8 = arith.truncf %7 : vector<256x512xf32> to vector<256x512xbf16>
    %c0_6 = arith.constant 0 : index
    %c0_7 = arith.constant 0 : index
    %9 = vector.load %arg4[%c0_6, %c0_7] : memref<512x64xbf16, #tpu.memory_space<vmem>>, vector<512x64xbf16>
    %cst_8 = arith.constant dense<0.000000e+00> : vector<256x64xf32>
    %10 = tpu.matmul %8, %9, %cst_8 {dimension_numbers = #tpu.dot_dimension_numbers<[1], [0], [0], [1], [0, 0, 1, 1], [], []>} : vector<256x512xbf16>, vector<512x64xbf16>, vector<256x64xf32> -> vector<256x64xf32>
    %c0_9 = arith.constant 0 : index
    %c0_10 = arith.constant 0 : index
    %11 = vector.load %arg5[%c0_9, %c0_10] : memref<1x64xf32, #tpu.memory_space<vmem>>, vector<1x64xf32>
    %12 = vector.broadcast %11 : vector<1x64xf32> to vector<256x64xf32>
    %13 = arith.addf %10, %12 : vector<256x64xf32>
    %cst_11 = arith.constant 0.000000e+00 : f32
    %14 = vector.broadcast %cst_11 : f32 to vector<256x64xf32>
    %15 = arith.maximumf %13, %14 : vector<256x64xf32>
    %16 = arith.truncf %15 : vector<256x64xf32> to vector<256x64xbf16>
    %c0_12 = arith.constant 0 : index
    %c0_13 = arith.constant 0 : index
    %17 = vector.load %arg6[%c0_12, %c0_13] : memref<64x128xbf16, #tpu.memory_space<vmem>>, vector<64x128xbf16>
    %cst_14 = arith.constant dense<0.000000e+00> : vector<256x128xf32>
    %18 = tpu.matmul %16, %17, %cst_14 {dimension_numbers = #tpu.dot_dimension_numbers<[1], [0], [0], [1], [0, 0, 1, 1], [], []>} : vector<256x64xbf16>, vector<64x128xbf16>, vector<256x128xf32> -> vector<256x128xf32>
    %c0_15 = arith.constant 0 : index
    %c0_16 = arith.constant 0 : index
    %19 = vector.load %arg7[%c0_15, %c0_16] : memref<1x128xf32, #tpu.memory_space<vmem>>, vector<1x128xf32>
    %20 = vector.broadcast %19 : vector<1x128xf32> to vector<256x128xf32>
    %21 = arith.addf %18, %20 : vector<256x128xf32>
    %cst_17 = arith.constant 0.000000e+00 : f32
    %22 = vector.broadcast %cst_17 : f32 to vector<256x128xf32>
    %23 = arith.maximumf %21, %22 : vector<256x128xf32>
    %c0_18 = arith.constant 0 : index
    %c0_19 = arith.constant 0 : index
    %24 = vector.load %arg8[%c0_18, %c0_19] : memref<256x128xf32, #tpu.memory_space<vmem>>, vector<256x128xf32>
    tpu.vector_store %arg8[%c0_18, %c0_19], %23 {strides = array<i32>} : memref<256x128xf32, #tpu.memory_space<vmem>>, vector<256x128xf32>,
    return
  }
  func.func @transform_0(%arg0: i32) -> (i32, i32) {
    %c0_i32 = arith.constant 0 : i32
    %c0_i32_0 = arith.constant 0 : i32
    return %arg0, %c0_i32 : i32, i32
  }
  func.func @transform_1(%arg0: i32) -> (i32, i32) {
    %c0_i32 = arith.constant 0 : i32
    %c0_i32_0 = arith.constant 0 : i32
    %c0_i32_1 = arith.constant 0 : i32
    return %c0_i32, %c0_i32_0 : i32, i32
  }
  func.func @transform_2(%arg0: i32) -> (i32, i32) {
    %c0_i32 = arith.constant 0 : i32
    %c0_i32_0 = arith.constant 0 : i32
    %c0_i32_1 = arith.constant 0 : i32
    return %c0_i32, %c0_i32_0 : i32, i32
  }
  func.func @transform_3(%arg0: i32) -> (i32, i32) {
    %c0_i32 = arith.constant 0 : i32
    %c0_i32_0 = arith.constant 0 : i32
    %c0_i32_1 = arith.constant 0 : i32
    return %c0_i32, %c0_i32_0 : i32, i32
  }
  func.func @transform_4(%arg0: i32) -> (i32, i32) {
    %c0_i32 = arith.constant 0 : i32
    %c0_i32_0 = arith.constant 0 : i32
    %c0_i32_1 = arith.constant 0 : i32
    return %c0_i32, %c0_i32_0 : i32, i32
  }
  func.func @transform_5(%arg0: i32) -> (i32, i32) {
    %c0_i32 = arith.constant 0 : i32
    %c0_i32_0 = arith.constant 0 : i32
    %c0_i32_1 = arith.constant 0 : i32
    return %c0_i32, %c0_i32_0 : i32, i32
  }
  func.func @transform_6(%arg0: i32) -> (i32, i32) {
    %c0_i32 = arith.constant 0 : i32
    %c0_i32_0 = arith.constant 0 : i32
    %c0_i32_1 = arith.constant 0 : i32
    return %c0_i32, %c0_i32_0 : i32, i32
  }
  func.func @transform_7(%arg0: i32) -> (i32, i32) {
    %c0_i32 = arith.constant 0 : i32
    %c0_i32_0 = arith.constant 0 : i32
    return %arg0, %c0_i32 : i32, i32
  }
}

</mosaic_0001>

<llo_original>
// kernel: mlpnet_forward.1
$region0: #{mlpnet_forward.1}
  #allocation0 [shape = 'u32[]', space=smem, size = 0x4, offset = 0x4, fixed_abs, tag = 'smem constant byte address 0x4 - core index']
  #allocation1 [shape = 'u32[72,128]{1,0:T(1,128)}', space=vmem, size = 0x9000, scoped, tag = 'internal scratch']
  %s0 = inlined_call_operand.vmem [shape: bf16[512,896], index: 0, kind: input, shape index: {}]
  %s1 = inlined_call_operand.vmem [shape: bf16[896,512], index: 1, kind: input, shape index: {}]
  %s2 = inlined_call_operand.vmem [shape: f32[1,512], index: 2, kind: input, shape index: {}]
  %s3 = inlined_call_operand.vmem [shape: bf16[512,64], index: 3, kind: input, shape index: {}]
  %s4 = inlined_call_operand.vmem [shape: f32[1,64], index: 4, kind: input, shape index: {}]
  %s5 = inlined_call_operand.vmem [shape: bf16[64,128], index: 5, kind: input, shape index: {}]
  %s6 = inlined_call_operand.vmem [shape: f32[1,128], index: 6, kind: input, shape index: {}]
  %s7 = inlined_call_operand.vmem [shape: f32[512,128], index: 7, kind: output, shape index: {}]
  %s8 = sld [smem:[#allocation0]]
  $region61: #{mlpnet_forward.1} parent=0
    _
  %s10 = ssub.s32 1, %s8
  %s11 = scalar_select 0, %s10, %s8
  loop: start=0, step=1, limit=4
  $region2: #{mlpnet_forward.1} parent=0 // loop_pre_header
    _
  $region3: #{mlpnet_forward.1} parent=0 // loop_header
    %s13 = sphi 0, %s17
    %p14 = scmp.ge.s32.totalorder %s13, 4
    %s23 = sphi 0, %s25
    %s26 = sphi 0, %s23
    %s27 = sphi 0, %s26
    %s43 = sphi 0, %s27
    %s47 = sphi 0, %s47
    %s49 = sphi 0, %s47
    %s50 = sphi 0, %s49
    %s64 = sphi 0, %s50
    %s68 = sphi 0, %s68
    %s70 = sphi 0, %s68
    %s71 = sphi 0, %s70
    %s85 = sphi 0, %s71
    %s89 = sphi 0, %s89
    %s91 = sphi 0, %s89
    %s92 = sphi 0, %s91
    %s106 = sphi 0, %s92
    %s110 = sphi 0, %s110
    %s112 = sphi 0, %s110
    %s113 = sphi 0, %s112
    %s127 = sphi 0, %s113
    %s131 = sphi 0, %s131
    %s133 = sphi 0, %s131
    %s134 = sphi 0, %s133
    %s148 = sphi 0, %s134
    %s152 = sphi 0, %s152
    %s154 = sphi 0, %s152
    %s155 = sphi 0, %s154
    %s169 = sphi 0, %s155
    %s175 = sphi 0, %s177
    %s178 = sphi 0, %s175
    %s179 = sphi 0, %s178
    %s195 = sphi 0, %s179
  $region4: #{mlpnet_forward.1} parent=0 // loop_header_branch
    %16 = sbr.rel (%p14) target = $region8
  $region5: #{mlpnet_forward.1} parent=0 // loop_body
    %s18 = ssub.s32 %s13, 1
    %s19 = ssub.s32 %s13, 2
    %s20 = sadd.s32 %s13, 1
    %s21 = ssub.s32 %s13, %s20
    %p22 = scmp.eq.s32.totalorder %s21, 0
    %s24 = sadd.s32 %s23, 1
    %s25 = scalar_select %p22, %s23, %s24
    %p28 = pneg %p22
    %p29 = scmp.eq.s32.totalorder %s13, 1
    %p30 = por %p28, %p29
    %p31 = scmp.ne.s32.totalorder %s23, %s26
    %p32 = scmp.eq.s32.totalorder %s13, 0
    %p33 = por %p31, %p32
    %p34 = scmp.ne.s32.totalorder %s23, %s26
    %p35 = scmp.eq.s32.totalorder %s18, 1
    %p36 = por %p34, %p35
    %p37 = scmp.ne.s32.totalorder %s26, %s27
    %p38 = scmp.eq.s32.totalorder %s18, 0
    %p39 = por %p37, %p38
    %p40 = scmp.ne.s32.totalorder %s26, %s27
    %p41 = scmp.eq.s32.totalorder %s19, 1
    %p42 = por %p40, %p41
    %p44 = scmp.ne.s32.totalorder %s27, %s43
    %p45 = scmp.eq.s32.totalorder %s19, 0
    %p46 = por %p44, %p45
    %s48 = sadd.s32 %s47, 1
    %p51 = scmp.eq.s32.totalorder %s13, 1
    %p52 = scmp.ne.s32.totalorder %s47, %s49
    %p53 = scmp.eq.s32.totalorder %s13, 0
    %p54 = por %p52, %p53
    %p55 = scmp.ne.s32.totalorder %s47, %s49
    %p56 = scmp.eq.s32.totalorder %s18, 1
    %p57 = por %p55, %p56
    %p58 = scmp.ne.s32.totalorder %s49, %s50
    %p59 = scmp.eq.s32.totalorder %s18, 0
    %p60 = por %p58, %p59
    %p61 = scmp.ne.s32.totalorder %s49, %s50
    %p62 = scmp.eq.s32.totalorder %s19, 1
    %p63 = por %p61, %p62
    %p65 = scmp.ne.s32.totalorder %s50, %s64
    %p66 = scmp.eq.s32.totalorder %s19, 0
    %p67 = por %p65, %p66
    %s69 = sadd.s32 %s68, 1
    %p72 = scmp.eq.s32.totalorder %s13, 1
    %p73 = scmp.ne.s32.totalorder %s68, %s70
    %p74 = scmp.eq.s32.totalorder %s13, 0
    %p75 = por %p73, %p74
    %p76 = scmp.ne.s32.totalorder %s68, %s70
    %p77 = scmp.eq.s32.totalorder %s18, 1
    %p78 = por %p76, %p77
    %p79 = scmp.ne.s32.totalorder %s70, %s71
    %p80 = scmp.eq.s32.totalorder %s18, 0
    %p81 = por %p79, %p80
    %p82 = scmp.ne.s32.totalorder %s70, %s71
    %p83 = scmp.eq.s32.totalorder %s19, 1
    %p84 = por %p82, %p83
    %p86 = scmp.ne.s32.totalorder %s71, %s85
    %p87 = scmp.eq.s32.totalorder %s19, 0
    %p88 = por %p86, %p87
    %s90 = sadd.s32 %s89, 1
    %p93 = scmp.eq.s32.totalorder %s13, 1
    %p94 = scmp.ne.s32.totalorder %s89, %s91
    %p95 = scmp.eq.s32.totalorder %s13, 0
    %p96 = por %p94, %p95
    %p97 = scmp.ne.s32.totalorder %s89, %s91
    %p98 = scmp.eq.s32.totalorder %s18, 1
    %p99 = por %p97, %p98
    %p100 = scmp.ne.s32.totalorder %s91, %s92
    %p101 = scmp.eq.s32.totalorder %s18, 0
    %p102 = por %p100, %p101
    %p103 = scmp.ne.s32.totalorder %s91, %s92
    %p104 = scmp.eq.s32.totalorder %s19, 1
    %p105 = por %p103, %p104
    %p107 = scmp.ne.s32.totalorder %s92, %s106
    %p108 = scmp.eq.s32.totalorder %s19, 0
    %p109 = por %p107, %p108
    %s111 = sadd.s32 %s110, 1
    %p114 = scmp.eq.s32.totalorder %s13, 1
    %p115 = scmp.ne.s32.totalorder %s110, %s112
    %p116 = scmp.eq.s32.totalorder %s13, 0
    %p117 = por %p115, %p116
    %p118 = scmp.ne.s32.totalorder %s110, %s112
    %p119 = scmp.eq.s32.totalorder %s18, 1
    %p120 = por %p118, %p119
    %p121 = scmp.ne.s32.totalorder %s112, %s113
    %p122 = scmp.eq.s32.totalorder %s18, 0
    %p123 = por %p121, %p122
    %p124 = scmp.ne.s32.totalorder %s112, %s113
    %p125 = scmp.eq.s32.totalorder %s19, 1
    %p126 = por %p124, %p125
    %p128 = scmp.ne.s32.totalorder %s113, %s127
    %p129 = scmp.eq.s32.totalorder %s19, 0
    %p130 = por %p128, %p129
    %s132 = sadd.s32 %s131, 1
    %p135 = scmp.eq.s32.totalorder %s13, 1
    %p136 = scmp.ne.s32.totalorder %s131, %s133
    %p137 = scmp.eq.s32.totalorder %s13, 0
    %p138 = por %p136, %p137
    %p139 = scmp.ne.s32.totalorder %s131, %s133
    %p140 = scmp.eq.s32.totalorder %s18, 1
    %p141 = por %p139, %p140
    %p142 = scmp.ne.s32.totalorder %s133, %s134
    %p143 = scmp.eq.s32.totalorder %s18, 0
    %p144 = por %p142, %p143
    %p145 = scmp.ne.s32.totalorder %s133, %s134
    %p146 = scmp.eq.s32.totalorder %s19, 1
    %p147 = por %p145, %p146
    %p149 = scmp.ne.s32.totalorder %s134, %s148
    %p150 = scmp.eq.s32.totalorder %s19, 0
    %p151 = por %p149, %p150
    %s153 = sadd.s32 %s152, 1
    %p156 = scmp.eq.s32.totalorder %s13, 1
    %p157 = scmp.ne.s32.totalorder %s152, %s154
    %p158 = scmp.eq.s32.totalorder %s13, 0
    %p159 = por %p157, %p158
    %p160 = scmp.ne.s32.totalorder %s152, %s154
    %p161 = scmp.eq.s32.totalorder %s18, 1
    %p162 = por %p160, %p161
    %p163 = scmp.ne.s32.totalorder %s154, %s155
    %p164 = scmp.eq.s32.totalorder %s18, 0
    %p165 = por %p163, %p164
    %p166 = scmp.ne.s32.totalorder %s154, %s155
    %p167 = scmp.eq.s32.totalorder %s19, 1
    %p168 = por %p166, %p167
    %p170 = scmp.ne.s32.totalorder %s155, %s169
    %p171 = scmp.eq.s32.totalorder %s19, 0
    %p172 = por %p170, %p171
    %s173 = ssub.s32 %s13, %s20
    %p174 = scmp.eq.s32.totalorder %s173, 0
    %s176 = sadd.s32 %s175, 1
    %s177 = scalar_select %p174, %s175, %s176
    %p180 = pneg %p174
    %p181 = scmp.eq.s32.totalorder %s13, 1
    %p182 = por %p180, %p181
    %p183 = scmp.ne.s32.totalorder %s175, %s178
    %p184 = scmp.eq.s32.totalorder %s13, 0
    %p185 = por %p183, %p184
    %p186 = scmp.ne.s32.totalorder %s175, %s178
    %p187 = scmp.eq.s32.totalorder %s18, 1
    %p188 = por %p186, %p187
    %p189 = scmp.ne.s32.totalorder %s178, %s179
    %p190 = scmp.eq.s32.totalorder %s18, 0
    %p191 = por %p189, %p190
    %p192 = scmp.ne.s32.totalorder %s178, %s179
    %p193 = scmp.eq.s32.totalorder %s19, 1
    %p194 = por %p192, %p193
    %p196 = scmp.ne.s32.totalorder %s179, %s195
    %p197 = scmp.eq.s32.totalorder %s19, 0
    %p198 = por %p196, %p197
    %p199 = scmp.le.s32.totalorder 1, %s13
    %p200 = scmp.lt.s32.totalorder %s13, 3
    %p201 = pnand %p199, %p200
    %p202 = pneg %p201
    // Predicated region
    $region9: #{mlpnet_forward.1} parent=5 // pred_check
      _
    $region10: #{mlpnet_forward.1} parent=5 // pred_check_branch
      %204 = sbr.rel (%p201) target = $region12
    $region11: #{mlpnet_forward.1} parent=5 // pred_region
      %s205 = ssub.s32 %s13, 1
      // Predicated region
      $region13: #{mlpnet_forward.1} parent=11 // pred_check
        %p206 = pneg %p60
      $region14: #{mlpnet_forward.1} parent=11 // pred_check_branch
        %208 = sbr.rel (%p206) target = $region16
      $region15: #{mlpnet_forward.1} parent=11 // pred_region
        _
      $region16: #{mlpnet_forward.1} parent=11 // pred_fallthru
        _
      // Predicated region
      $region17: #{mlpnet_forward.1} parent=11 // pred_check
        %p209 = pneg %p81
      $region18: #{mlpnet_forward.1} parent=11 // pred_check_branch
        %211 = sbr.rel (%p209) target = $region20
      $region19: #{mlpnet_forward.1} parent=11 // pred_region
        _
      $region20: #{mlpnet_forward.1} parent=11 // pred_fallthru
        _
      // Predicated region
      $region21: #{mlpnet_forward.1} parent=11 // pred_check
        %p212 = pneg %p102
      $region22: #{mlpnet_forward.1} parent=11 // pred_check_branch
        %214 = sbr.rel (%p212) target = $region24
      $region23: #{mlpnet_forward.1} parent=11 // pred_region
        _
      $region24: #{mlpnet_forward.1} parent=11 // pred_fallthru
        _
      // Predicated region
      $region25: #{mlpnet_forward.1} parent=11 // pred_check
        %p215 = pneg %p123
      $region26: #{mlpnet_forward.1} parent=11 // pred_check_branch
        %217 = sbr.rel (%p215) target = $region28
      $region27: #{mlpnet_forward.1} parent=11 // pred_region
        _
      $region28: #{mlpnet_forward.1} parent=11 // pred_fallthru
        _
      // Predicated region
      $region29: #{mlpnet_forward.1} parent=11 // pred_check
        %p218 = pneg %p144
      $region30: #{mlpnet_forward.1} parent=11 // pred_check_branch
        %220 = sbr.rel (%p218) target = $region32
      $region31: #{mlpnet_forward.1} parent=11 // pred_region
        _
      $region32: #{mlpnet_forward.1} parent=11 // pred_fallthru
        _
      // Predicated region
      $region33: #{mlpnet_forward.1} parent=11 // pred_check
        %p221 = pneg %p165
      $region34: #{mlpnet_forward.1} parent=11 // pred_check_branch
        %223 = sbr.rel (%p221) target = $region36
      $region35: #{mlpnet_forward.1} parent=11 // pred_region
        _
      $region36: #{mlpnet_forward.1} parent=11 // pred_fallthru
        _
    $region12: #{mlpnet_forward.1} parent=5 // pred_fallthru
      _
    %p224 = scmp.lt.s32.totalorder %s13, 2
    // Predicated region
    $region37: #{mlpnet_forward.1} parent=5 // pred_check
      %p225 = pneg %p224
    $region38: #{mlpnet_forward.1} parent=5 // pred_check_branch
      %227 = sbr.rel (%p225) target = $region40
    $region39: #{mlpnet_forward.1} parent=5 // pred_region
      // Predicated region
      $region41: #{mlpnet_forward.1} parent=39 // pred_check
        %p228 = pneg %p33
      $region42: #{mlpnet_forward.1} parent=39 // pred_check_branch
        %230 = sbr.rel (%p228) target = $region44
      $region43: #{mlpnet_forward.1} parent=39 // pred_region
        %s231 = smul.u32 32, %s13
        %p232 = scmp.lt.s32.totalorder %s231, 63
        %s233 = scalar_select %p232, %s231, 63
        %s234 = smul.addr %s233, 7
        %s235 = smul.addr %s234, 4
        %s236 = scalar_lea.vmem %s0, %s235
        %s237 = smul.u32 32, %s13
      $region44: #{mlpnet_forward.1} parent=39 // pred_fallthru
        _
    $region40: #{mlpnet_forward.1} parent=5 // pred_fallthru
      _
    %p238 = scmp.le.s32.totalorder 1, %s13
    %p239 = scmp.lt.s32.totalorder %s13, 3
    %p240 = pnand %p238, %p239
    %p241 = pneg %p240
    // Predicated region
    $region45: #{mlpnet_forward.1} parent=5 // pred_check
      _
    $region46: #{mlpnet_forward.1} parent=5 // pred_check_branch
      %243 = sbr.rel (%p240) target = $region48
    $region47: #{mlpnet_forward.1} parent=5 // pred_region
      %s244 = ssub.s32 %s13, 1
      %s245 = smul.u32 32, %s18
      %p246 = scmp.lt.s32.totalorder %s245, 63
      %s247 = scalar_select %p246, %s245, 63
      %s248 = smul.addr %s247, 7
      %s249 = smul.addr %s248, 4
      %s250 = scalar_lea.vmem %s0, %s249
      %p251 = pneg %p39
      %p252 = pneg %p36
      %p253 = pneg %p60
      %p254 = pneg %p57
      %p255 = pneg %p81
      %p256 = pneg %p78
      %p257 = pneg %p102
      %p258 = pneg %p99
      %p259 = pneg %p123
      %p260 = pneg %p120
      %p261 = pneg %p144
      %p262 = pneg %p141
      %p263 = pneg %p165
      %p264 = pneg %p162
      %p265 = pneg %p191
      %p266 = pneg %p188
      %s267 = smul.u32 32, %s18
      %p268 = scmp.lt.s32.totalorder %s267, 63
      %s269 = scalar_select %p268, %s267, 63
      %s270 = smul.addr %s269, 8
      %s271 = scalar_lea.vmem %s7, %s270
      %s272 = smul.u32 32, %s18
      %p273 = scmp.lt.s32.totalorder %s272, 63
      %s274 = scalar_select %p273, %s272, 63
      %s275 = smul.addr %s274, 7
      %s276 = smul.addr %s275, 4
      %s277 = scalar_lea.vmem %s0, %s276
      %s278 = smul.u32 32, %s18
      %s279 = smul.u32 32, %s18
      %p280 = scmp.lt.s32.totalorder %s279, 63
      %s281 = scalar_select %p280, %s279, 63
      %s282 = smul.addr %s281, 8
      %s283 = scalar_lea.vmem %s7, %s282
      %s284 = smul.u32 32, %s18
      %v286 = vld [vmem:[%s277] sm:$0xff]
      %v287 = vld [vmem:[%s277 + $0x8] sm:$0xff]
      %v288 = vld [vmem:[%s277 + $0x10] sm:$0xff]
      %v289 = vld [vmem:[%s277 + $0x18] sm:$0xf]
      %v290 = vld [vmem:[%s277 + $0x1c] sm:$0xff]
      %v291 = vld [vmem:[%s277 + $0x24] sm:$0xff]
      %v292 = vld [vmem:[%s277 + $0x2c] sm:$0xff]
      %v293 = vld [vmem:[%s277 + $0x34] sm:$0xf]
      %v294 = vld [vmem:[%s277 + $0x38] sm:$0xff]
      %v295 = vld [vmem:[%s277 + $0x40] sm:$0xff]
      %v296 = vld [vmem:[%s277 + $0x48] sm:$0xff]
      %v297 = vld [vmem:[%s277 + $0x50] sm:$0xf]
      %v298 = vld [vmem:[%s277 + $0x54] sm:$0xff]
      %v299 = vld [vmem:[%s277 + $0x5c] sm:$0xff]
      %v300 = vld [vmem:[%s277 + $0x64] sm:$0xff]
      %v301 = vld [vmem:[%s277 + $0x6c] sm:$0xf]
      %v302 = vld [vmem:[%s277 + $0x70] sm:$0xff]
      %v303 = vld [vmem:[%s277 + $0x78] sm:$0xff]
      %v304 = vld [vmem:[%s277 + $0x80] sm:$0xff]
      %v305 = vld [vmem:[%s277 + $0x88] sm:$0xf]
      %v306 = vld [vmem:[%s277 + $0x8c] sm:$0xff]
      %v307 = vld [vmem:[%s277 + $0x94] sm:$0xff]
      %v308 = vld [vmem:[%s277 + $0x9c] sm:$0xff]
      %v309 = vld [vmem:[%s277 + $0xa4] sm:$0xf]
      %v310 = vld [vmem:[%s277 + $0xa8] sm:$0xff]
      %v311 = vld [vmem:[%s277 + $0xb0] sm:$0xff]
      %v312 = vld [vmem:[%s277 + $0xb8] sm:$0xff]
      %v313 = vld [vmem:[%s277 + $0xc0] sm:$0xf]
      %v314 = vld [vmem:[%s277 + $0xc4] sm:$0xff]
      %v315 = vld [vmem:[%s277 + $0xcc] sm:$0xff]
      %v316 = vld [vmem:[%s277 + $0xd4] sm:$0xff]
      %v317 = vld [vmem:[%s277 + $0xdc] sm:$0xf]
      %v318 = vld [vmem:[%s277 + $0xe0] sm:$0xff]
      %v319 = vld [vmem:[%s277 + $0xe8] sm:$0xff]
      %v320 = vld [vmem:[%s277 + $0xf0] sm:$0xff]
      %v321 = vld [vmem:[%s277 + $0xf8] sm:$0xf]
      %v322 = vld [vmem:[%s277 + $0xfc] sm:$0xff]
      %v323 = vld [vmem:[%s277 + $0x104] sm:$0xff]
      %v324 = vld [vmem:[%s277 + $0x10c] sm:$0xff]
      %v325 = vld [vmem:[%s277 + $0x114] sm:$0xf]
      %v326 = vld [vmem:[%s277 + $0x118] sm:$0xff]
      %v327 = vld [vmem:[%s277 + $0x120] sm:$0xff]
      %v328 = vld [vmem:[%s277 + $0x128] sm:$0xff]
      %v329 = vld [vmem:[%s277 + $0x130] sm:$0xf]
      %v330 = vld [vmem:[%s277 + $0x134] sm:$0xff]
      %v331 = vld [vmem:[%s277 + $0x13c] sm:$0xff]
      %v332 = vld [vmem:[%s277 + $0x144] sm:$0xff]
      %v333 = vld [vmem:[%s277 + $0x14c] sm:$0xf]
      %v334 = vld [vmem:[%s277 + $0x150] sm:$0xff]
      %v335 = vld [vmem:[%s277 + $0x158] sm:$0xff]
      %v336 = vld [vmem:[%s277 + $0x160] sm:$0xff]
      %v337 = vld [vmem:[%s277 + $0x168] sm:$0xf]
      %v338 = vld [vmem:[%s277 + $0x16c] sm:$0xff]
      %v339 = vld [vmem:[%s277 + $0x174] sm:$0xff]
      %v340 = vld [vmem:[%s277 + $0x17c] sm:$0xff]
      %v341 = vld [vmem:[%s277 + $0x184] sm:$0xf]
      %v342 = vld [vmem:[%s277 + $0x188] sm:$0xff]
      %v343 = vld [vmem:[%s277 + $0x190] sm:$0xff]
      %v344 = vld [vmem:[%s277 + $0x198] sm:$0xff]
      %v345 = vld [vmem:[%s277 + $0x1a0] sm:$0xf]
      %v346 = vld [vmem:[%s277 + $0x1a4] sm:$0xff]
      %v347 = vld [vmem:[%s277 + $0x1ac] sm:$0xff]
      %v348 = vld [vmem:[%s277 + $0x1b4] sm:$0xff]
      %v349 = vld [vmem:[%s277 + $0x1bc] sm:$0xf]
      %v350 = vld [vmem:[%s277 + $0x1c0] sm:$0xff]
      %v351 = vld [vmem:[%s277 + $0x1c8] sm:$0xff]
      %v352 = vld [vmem:[%s277 + $0x1d0] sm:$0xff]
      %v353 = vld [vmem:[%s277 + $0x1d8] sm:$0xf]
      %v354 = vld [vmem:[%s277 + $0x1dc] sm:$0xff]
      %v355 = vld [vmem:[%s277 + $0x1e4] sm:$0xff]
      %v356 = vld [vmem:[%s277 + $0x1ec] sm:$0xff]
      %v357 = vld [vmem:[%s277 + $0x1f4] sm:$0xf]
      %v358 = vld [vmem:[%s277 + $0x1f8] sm:$0xff]
      %v359 = vld [vmem:[%s277 + $0x200] sm:$0xff]
      %v360 = vld [vmem:[%s277 + $0x208] sm:$0xff]
      %v361 = vld [vmem:[%s277 + $0x210] sm:$0xf]
      %v362 = vld [vmem:[%s277 + $0x214] sm:$0xff]
      %v363 = vld [vmem:[%s277 + $0x21c] sm:$0xff]
      %v364 = vld [vmem:[%s277 + $0x224] sm:$0xff]
      %v365 = vld [vmem:[%s277 + $0x22c] sm:$0xf]
      %v366 = vld [vmem:[%s277 + $0x230] sm:$0xff]
      %v367 = vld [vmem:[%s277 + $0x238] sm:$0xff]
      %v368 = vld [vmem:[%s277 + $0x240] sm:$0xff]
      %v369 = vld [vmem:[%s277 + $0x248] sm:$0xf]
      %v370 = vld [vmem:[%s277 + $0x24c] sm:$0xff]
      %v371 = vld [vmem:[%s277 + $0x254] sm:$0xff]
      %v372 = vld [vmem:[%s277 + $0x25c] sm:$0xff]
      %v373 = vld [vmem:[%s277 + $0x264] sm:$0xf]
      %v374 = vld [vmem:[%s277 + $0x268] sm:$0xff]
      %v375 = vld [vmem:[%s277 + $0x270] sm:$0xff]
      %v376 = vld [vmem:[%s277 + $0x278] sm:$0xff]
      %v377 = vld [vmem:[%s277 + $0x280] sm:$0xf]
      %v378 = vld [vmem:[%s277 + $0x284] sm:$0xff]
      %v379 = vld [vmem:[%s277 + $0x28c] sm:$0xff]
      %v380 = vld [vmem:[%s277 + $0x294] sm:$0xff]
      %v381 = vld [vmem:[%s277 + $0x29c] sm:$0xf]
      %v382 = vld [vmem:[%s277 + $0x2a0] sm:$0xff]
      %v383 = vld [vmem:[%s277 + $0x2a8] sm:$0xff]
      %v384 = vld [vmem:[%s277 + $0x2b0] sm:$0xff]
      %v385 = vld [vmem:[%s277 + $0x2b8] sm:$0xf]
      %v386 = vld [vmem:[%s277 + $0x2bc] sm:$0xff]
      %v387 = vld [vmem:[%s277 + $0x2c4] sm:$0xff]
      %v388 = vld [vmem:[%s277 + $0x2cc] sm:$0xff]
      %v389 = vld [vmem:[%s277 + $0x2d4] sm:$0xf]
      %v390 = vld [vmem:[%s277 + $0x2d8] sm:$0xff]
      %v391 = vld [vmem:[%s277 + $0x2e0] sm:$0xff]
      %v392 = vld [vmem:[%s277 + $0x2e8] sm:$0xff]
      %v393 = vld [vmem:[%s277 + $0x2f0] sm:$0xf]
      %v394 = vld [vmem:[%s277 + $0x2f4] sm:$0xff]
      %v395 = vld [vmem:[%s277 + $0x2fc] sm:$0xff]
      %v396 = vld [vmem:[%s277 + $0x304] sm:$0xff]
      %v397 = vld [vmem:[%s277 + $0x30c] sm:$0xf]
      %v398 = vld [vmem:[%s277 + $0x310] sm:$0xff]
      %v399 = vld [vmem:[%s277 + $0x318] sm:$0xff]
      %v400 = vld [vmem:[%s277 + $0x320] sm:$0xff]
      %v401 = vld [vmem:[%s277 + $0x328] sm:$0xf]
      %v402 = vld [vmem:[%s277 + $0x32c] sm:$0xff]
      %v403 = vld [vmem:[%s277 + $0x334] sm:$0xff]
      %v404 = vld [vmem:[%s277 + $0x33c] sm:$0xff]
      %v405 = vld [vmem:[%s277 + $0x344] sm:$0xf]
      %v406 = vld [vmem:[%s277 + $0x348] sm:$0xff]
      %v407 = vld [vmem:[%s277 + $0x350] sm:$0xff]
      %v408 = vld [vmem:[%s277 + $0x358] sm:$0xff]
      %v409 = vld [vmem:[%s277 + $0x360] sm:$0xf]
      %v410 = vld [vmem:[%s277 + $0x364] sm:$0xff]
      %v411 = vld [vmem:[%s277 + $0x36c] sm:$0xff]
      %v412 = vld [vmem:[%s277 + $0x374] sm:$0xff]
      %v413 = vld [vmem:[%s277 + $0x37c] sm:$0xf]
      %v414 = vld [vmem:[%s1] sm:$0xff]
      %v415 = vld [vmem:[%s1 + $0x8] sm:$0xff]
      %v416 = vld [vmem:[%s1 + $0x10] sm:$0xff]
      %v417 = vld [vmem:[%s1 + $0x18] sm:$0xff]
      %v418 = vld [vmem:[%s1 + $0x20] sm:$0xff]
      %v419 = vld [vmem:[%s1 + $0x28] sm:$0xff]
      %v420 = vld [vmem:[%s1 + $0x30] sm:$0xff]
      %v421 = vld [vmem:[%s1 + $0x38] sm:$0xff]
      %v422 = vld [vmem:[%s1 + $0x40] sm:$0xff]
      %v423 = vld [vmem:[%s1 + $0x48] sm:$0xff]
      %v424 = vld [vmem:[%s1 + $0x50] sm:$0xff]
      %v425 = vld [vmem:[%s1 + $0x58] sm:$0xff]
      %v426 = vld [vmem:[%s1 + $0x60] sm:$0xff]
      %v427 = vld [vmem:[%s1 + $0x68] sm:$0xff]
      %v428 = vld [vmem:[%s1 + $0x70] sm:$0xff]
      %v429 = vld [vmem:[%s1 + $0x78] sm:$0xff]
      %v430 = vld [vmem:[%s1 + $0x80] sm:$0xff]
      %v431 = vld [vmem:[%s1 + $0x88] sm:$0xff]
      %v432 = vld [vmem:[%s1 + $0x90] sm:$0xff]
      %v433 = vld [vmem:[%s1 + $0x98] sm:$0xff]
      %v434 = vld [vmem:[%s1 + $0xa0] sm:$0xff]
      %v435 = vld [vmem:[%s1 + $0xa8] sm:$0xff]
      %v436 = vld [vmem:[%s1 + $0xb0] sm:$0xff]
      %v437 = vld [vmem:[%s1 + $0xb8] sm:$0xff]
      %v438 = vld [vmem:[%s1 + $0xc0] sm:$0xff]
      %v439 = vld [vmem:[%s1 + $0xc8] sm:$0xff]
      %v440 = vld [vmem:[%s1 + $0xd0] sm:$0xff]
      %v441 = vld [vmem:[%s1 + $0xd8] sm:$0xff]
      %v442 = vld [vmem:[%s1 + $0xe0] sm:$0xff]
      %v443 = vld [vmem:[%s1 + $0xe8] sm:$0xff]
      %v444 = vld [vmem:[%s1 + $0xf0] sm:$0xff]
      %v445 = vld [vmem:[%s1 + $0xf8] sm:$0xff]
      %v446 = vld [vmem:[%s1 + $0x100] sm:$0xff]
      %v447 = vld [vmem:[%s1 + $0x108] sm:$0xff]
      %v448 = vld [vmem:[%s1 + $0x110] sm:$0xff]
      %v449 = vld [vmem:[%s1 + $0x118] sm:$0xff]
      %v450 = vld [vmem:[%s1 + $0x120] sm:$0xff]
      %v451 = vld [vmem:[%s1 + $0x128] sm:$0xff]
      %v452 = vld [vmem:[%s1 + $0x130] sm:$0xff]
      %v453 = vld [vmem:[%s1 + $0x138] sm:$0xff]
      %v454 = vld [vmem:[%s1 + $0x140] sm:$0xff]
      %v455 = vld [vmem:[%s1 + $0x148] sm:$0xff]
      %v456 = vld [vmem:[%s1 + $0x150] sm:$0xff]
      %v457 = vld [vmem:[%s1 + $0x158] sm:$0xff]
      %v458 = vld [vmem:[%s1 + $0x160] sm:$0xff]
      %v459 = vld [vmem:[%s1 + $0x168] sm:$0xff]
      %v460 = vld [vmem:[%s1 + $0x170] sm:$0xff]
      %v461 = vld [vmem:[%s1 + $0x178] sm:$0xff]
      %v462 = vld [vmem:[%s1 + $0x180] sm:$0xff]
      %v463 = vld [vmem:[%s1 + $0x188] sm:$0xff]
      %v464 = vld [vmem:[%s1 + $0x190] sm:$0xff]
      %v465 = vld [vmem:[%s1 + $0x198] sm:$0xff]
      %v466 = vld [vmem:[%s1 + $0x1a0] sm:$0xff]
      %v467 = vld [vmem:[%s1 + $0x1a8] sm:$0xff]
      %v468 = vld [vmem:[%s1 + $0x1b0] sm:$0xff]
      %v469 = vld [vmem:[%s1 + $0x1b8] sm:$0xff]
      %v470 = vld [vmem:[%s1 + $0x1c0] sm:$0xff]
      %v471 = vld [vmem:[%s1 + $0x1c8] sm:$0xff]
      %v472 = vld [vmem:[%s1 + $0x1d0] sm:$0xff]
      %v473 = vld [vmem:[%s1 + $0x1d8] sm:$0xff]
      %v474 = vld [vmem:[%s1 + $0x1e0] sm:$0xff]
      %v475 = vld [vmem:[%s1 + $0x1e8] sm:$0xff]
      %v476 = vld [vmem:[%s1 + $0x1f0] sm:$0xff]
      %v477 = vld [vmem:[%s1 + $0x1f8] sm:$0xff]
      %v478 = vld [vmem:[%s1 + $0x200] sm:$0xff]
      %v479 = vld [vmem:[%s1 + $0x208] sm:$0xff]
      %v480 = vld [vmem:[%s1 + $0x210] sm:$0xff]
      %v481 = vld [vmem:[%s1 + $0x218] sm:$0xff]
      %v482 = vld [vmem:[%s1 + $0x220] sm:$0xff]
      %v483 = vld [vmem:[%s1 + $0x228] sm:$0xff]
      %v484 = vld [vmem:[%s1 + $0x230] sm:$0xff]
      %v485 = vld [vmem:[%s1 + $0x238] sm:$0xff]
      %v486 = vld [vmem:[%s1 + $0x240] sm:$0xff]
      %v487 = vld [vmem:[%s1 + $0x248] sm:$0xff]
      %v488 = vld [vmem:[%s1 + $0x250] sm:$0xff]
      %v489 = vld [vmem:[%s1 + $0x258] sm:$0xff]
      %v490 = vld [vmem:[%s1 + $0x260] sm:$0xff]
      %v491 = vld [vmem:[%s1 + $0x268] sm:$0xff]
      %v492 = vld [vmem:[%s1 + $0x270] sm:$0xff]
      %v493 = vld [vmem:[%s1 + $0x278] sm:$0xff]
      %v494 = vld [vmem:[%s1 + $0x280] sm:$0xff]
      %v495 = vld [vmem:[%s1 + $0x288] sm:$0xff]
      %v496 = vld [vmem:[%s1 + $0x290] sm:$0xff]
      %v497 = vld [vmem:[%s1 + $0x298] sm:$0xff]
      %v498 = vld [vmem:[%s1 + $0x2a0] sm:$0xff]
      %v499 = vld [vmem:[%s1 + $0x2a8] sm:$0xff]
      %v500 = vld [vmem:[%s1 + $0x2b0] sm:$0xff]
      %v501 = vld [vmem:[%s1 + $0x2b8] sm:$0xff]
      %v502 = vld [vmem:[%s1 + $0x2c0] sm:$0xff]
      %v503 = vld [vmem:[%s1 + $0x2c8] sm:$0xff]
      %v504 = vld [vmem:[%s1 + $0x2d0] sm:$0xff]
      %v505 = vld [vmem:[%s1 + $0x2d8] sm:$0xff]
      %v506 = vld [vmem:[%s1 + $0x2e0] sm:$0xff]
      %v507 = vld [vmem:[%s1 + $0x2e8] sm:$0xff]
      %v508 = vld [vmem:[%s1 + $0x2f0] sm:$0xff]
      %v509 = vld [vmem:[%s1 + $0x2f8] sm:$0xff]
      %v510 = vld [vmem:[%s1 + $0x300] sm:$0xff]
      %v511 = vld [vmem:[%s1 + $0x308] sm:$0xff]
      %v512 = vld [vmem:[%s1 + $0x310] sm:$0xff]
      %v513 = vld [vmem:[%s1 + $0x318] sm:$0xff]
      %v514 = vld [vmem:[%s1 + $0x320] sm:$0xff]
      %v515 = vld [vmem:[%s1 + $0x328] sm:$0xff]
      %v516 = vld [vmem:[%s1 + $0x330] sm:$0xff]
      %v517 = vld [vmem:[%s1 + $0x338] sm:$0xff]
      %v518 = vld [vmem:[%s1 + $0x340] sm:$0xff]
      %v519 = vld [vmem:[%s1 + $0x348] sm:$0xff]
      %v520 = vld [vmem:[%s1 + $0x350] sm:$0xff]
      %v521 = vld [vmem:[%s1 + $0x358] sm:$0xff]
      %v522 = vld [vmem:[%s1 + $0x360] sm:$0xff]
      %v523 = vld [vmem:[%s1 + $0x368] sm:$0xff]
      %v524 = vld [vmem:[%s1 + $0x370] sm:$0xff]
      %v525 = vld [vmem:[%s1 + $0x378] sm:$0xff]
      %v526 = vld [vmem:[%s1 + $0x380] sm:$0xff]
      %v527 = vld [vmem:[%s1 + $0x388] sm:$0xff]
      %v528 = vld [vmem:[%s1 + $0x390] sm:$0xff]
      %v529 = vld [vmem:[%s1 + $0x398] sm:$0xff]
      %v530 = vld [vmem:[%s1 + $0x3a0] sm:$0xff]
      %v531 = vld [vmem:[%s1 + $0x3a8] sm:$0xff]
      %v532 = vld [vmem:[%s1 + $0x3b0] sm:$0xff]
      %v533 = vld [vmem:[%s1 + $0x3b8] sm:$0xff]
      %v534 = vld [vmem:[%s1 + $0x3c0] sm:$0xff]
      %v535 = vld [vmem:[%s1 + $0x3c8] sm:$0xff]
      %v536 = vld [vmem:[%s1 + $0x3d0] sm:$0xff]
      %v537 = vld [vmem:[%s1 + $0x3d8] sm:$0xff]
      %v538 = vld [vmem:[%s1 + $0x3e0] sm:$0xff]
      %v539 = vld [vmem:[%s1 + $0x3e8] sm:$0xff]
      %v540 = vld [vmem:[%s1 + $0x3f0] sm:$0xff]
      %v541 = vld [vmem:[%s1 + $0x3f8] sm:$0xff]
      %v542 = vld [vmem:[%s1 + $0x400] sm:$0xff]
      %v543 = vld [vmem:[%s1 + $0x408] sm:$0xff]
      %v544 = vld [vmem:[%s1 + $0x410] sm:$0xff]
      %v545 = vld [vmem:[%s1 + $0x418] sm:$0xff]
      %v546 = vld [vmem:[%s1 + $0x420] sm:$0xff]
      %v547 = vld [vmem:[%s1 + $0x428] sm:$0xff]
      %v548 = vld [vmem:[%s1 + $0x430] sm:$0xff]
      %v549 = vld [vmem:[%s1 + $0x438] sm:$0xff]
      %v550 = vld [vmem:[%s1 + $0x440] sm:$0xff]
      %v551 = vld [vmem:[%s1 + $0x448] sm:$0xff]
      %v552 = vld [vmem:[%s1 + $0x450] sm:$0xff]
      %v553 = vld [vmem:[%s1 + $0x458] sm:$0xff]
      %v554 = vld [vmem:[%s1 + $0x460] sm:$0xff]
      %v555 = vld [vmem:[%s1 + $0x468] sm:$0xff]
      %v556 = vld [vmem:[%s1 + $0x470] sm:$0xff]
      %v557 = vld [vmem:[%s1 + $0x478] sm:$0xff]
      %v558 = vld [vmem:[%s1 + $0x480] sm:$0xff]
      %v559 = vld [vmem:[%s1 + $0x488] sm:$0xff]
      %v560 = vld [vmem:[%s1 + $0x490] sm:$0xff]
      %v561 = vld [vmem:[%s1 + $0x498] sm:$0xff]
      %v562 = vld [vmem:[%s1 + $0x4a0] sm:$0xff]
      %v563 = vld [vmem:[%s1 + $0x4a8] sm:$0xff]
      %v564 = vld [vmem:[%s1 + $0x4b0] sm:$0xff]
      %v565 = vld [vmem:[%s1 + $0x4b8] sm:$0xff]
      %v566 = vld [vmem:[%s1 + $0x4c0] sm:$0xff]
      %v567 = vld [vmem:[%s1 + $0x4c8] sm:$0xff]
      %v568 = vld [vmem:[%s1 + $0x4d0] sm:$0xff]
      %v569 = vld [vmem:[%s1 + $0x4d8] sm:$0xff]
      %v570 = vld [vmem:[%s1 + $0x4e0] sm:$0xff]
      %v571 = vld [vmem:[%s1 + $0x4e8] sm:$0xff]
      %v572 = vld [vmem:[%s1 + $0x4f0] sm:$0xff]
      %v573 = vld [vmem:[%s1 + $0x4f8] sm:$0xff]
      %v574 = vld [vmem:[%s1 + $0x500] sm:$0xff]
      %v575 = vld [vmem:[%s1 + $0x508] sm:$0xff]
      %v576 = vld [vmem:[%s1 + $0x510] sm:$0xff]
      %v577 = vld [vmem:[%s1 + $0x518] sm:$0xff]
      %v578 = vld [vmem:[%s1 + $0x520] sm:$0xff]
      %v579 = vld [vmem:[%s1 + $0x528] sm:$0xff]
      %v580 = vld [vmem:[%s1 + $0x530] sm:$0xff]
      %v581 = vld [vmem:[%s1 + $0x538] sm:$0xff]
      %v582 = vld [vmem:[%s1 + $0x540] sm:$0xff]
      %v583 = vld [vmem:[%s1 + $0x548] sm:$0xff]
      %v584 = vld [vmem:[%s1 + $0x550] sm:$0xff]
      %v585 = vld [vmem:[%s1 + $0x558] sm:$0xff]
      %v586 = vld [vmem:[%s1 + $0x560] sm:$0xff]
      %v587 = vld [vmem:[%s1 + $0x568] sm:$0xff]
      %v588 = vld [vmem:[%s1 + $0x570] sm:$0xff]
      %v589 = vld [vmem:[%s1 + $0x578] sm:$0xff]
      %v590 = vld [vmem:[%s1 + $0x580] sm:$0xff]
      %v591 = vld [vmem:[%s1 + $0x588] sm:$0xff]
      %v592 = vld [vmem:[%s1 + $0x590] sm:$0xff]
      %v593 = vld [vmem:[%s1 + $0x598] sm:$0xff]
      %v594 = vld [vmem:[%s1 + $0x5a0] sm:$0xff]
      %v595 = vld [vmem:[%s1 + $0x5a8] sm:$0xff]
      %v596 = vld [vmem:[%s1 + $0x5b0] sm:$0xff]
      %v597 = vld [vmem:[%s1 + $0x5b8] sm:$0xff]
      %v598 = vld [vmem:[%s1 + $0x5c0] sm:$0xff]
      %v599 = vld [vmem:[%s1 + $0x5c8] sm:$0xff]
      %v600 = vld [vmem:[%s1 + $0x5d0] sm:$0xff]
      %v601 = vld [vmem:[%s1 + $0x5d8] sm:$0xff]
      %v602 = vld [vmem:[%s1 + $0x5e0] sm:$0xff]
      %v603 = vld [vmem:[%s1 + $0x5e8] sm:$0xff]
      %v604 = vld [vmem:[%s1 + $0x5f0] sm:$0xff]
      %v605 = vld [vmem:[%s1 + $0x5f8] sm:$0xff]
      %v606 = vld [vmem:[%s1 + $0x600] sm:$0xff]
      %v607 = vld [vmem:[%s1 + $0x608] sm:$0xff]
      %v608 = vld [vmem:[%s1 + $0x610] sm:$0xff]
      %v609 = vld [vmem:[%s1 + $0x618] sm:$0xff]
      %v610 = vld [vmem:[%s1 + $0x620] sm:$0xff]
      %v611 = vld [vmem:[%s1 + $0x628] sm:$0xff]
      %v612 = vld [vmem:[%s1 + $0x630] sm:$0xff]
      %v613 = vld [vmem:[%s1 + $0x638] sm:$0xff]
      %v614 = vld [vmem:[%s1 + $0x640] sm:$0xff]
      %v615 = vld [vmem:[%s1 + $0x648] sm:$0xff]
      %v616 = vld [vmem:[%s1 + $0x650] sm:$0xff]
      %v617 = vld [vmem:[%s1 + $0x658] sm:$0xff]
      %v618 = vld [vmem:[%s1 + $0x660] sm:$0xff]
      %v619 = vld [vmem:[%s1 + $0x668] sm:$0xff]
      %v620 = vld [vmem:[%s1 + $0x670] sm:$0xff]
      %v621 = vld [vmem:[%s1 + $0x678] sm:$0xff]
      %v622 = vld [vmem:[%s1 + $0x680] sm:$0xff]
      %v623 = vld [vmem:[%s1 + $0x688] sm:$0xff]
      %v624 = vld [vmem:[%s1 + $0x690] sm:$0xff]
      %v625 = vld [vmem:[%s1 + $0x698] sm:$0xff]
      %v626 = vld [vmem:[%s1 + $0x6a0] sm:$0xff]
      %v627 = vld [vmem:[%s1 + $0x6a8] sm:$0xff]
      %v628 = vld [vmem:[%s1 + $0x6b0] sm:$0xff]
      %v629 = vld [vmem:[%s1 + $0x6b8] sm:$0xff]
      %v630 = vld [vmem:[%s1 + $0x6c0] sm:$0xff]
      %v631 = vld [vmem:[%s1 + $0x6c8] sm:$0xff]
      %v632 = vld [vmem:[%s1 + $0x6d0] sm:$0xff]
      %v633 = vld [vmem:[%s1 + $0x6d8] sm:$0xff]
      %v634 = vld [vmem:[%s1 + $0x6e0] sm:$0xff]
      %v635 = vld [vmem:[%s1 + $0x6e8] sm:$0xff]
      %v636 = vld [vmem:[%s1 + $0x6f0] sm:$0xff]
      %v637 = vld [vmem:[%s1 + $0x6f8] sm:$0xff]
      %v638 = vld [vmem:[%s2] sm:$0xf]
      %v640 = vperm.slane %v638, 0
      %v641 = vperm.slane %v638, 1
      %v642 = vperm.slane %v638, 2
      %v643 = vperm.slane %v638, 3
      %v776 = vunpack.c.l.b16 %v286
      %v777 = vunpack.c.h.b16 %v286
      %v778 = vunpack.c.l.b16 %v287
      %v779 = vunpack.c.h.b16 %v287
      %v780 = vunpack.c.l.b16 %v288
      %v781 = vunpack.c.h.b16 %v288
      %v782 = vunpack.c.l.b16 %v289
      %v783 = vunpack.c.l.b16 %v290
      %v784 = vunpack.c.h.b16 %v290
      %v785 = vunpack.c.l.b16 %v291
      %v786 = vunpack.c.h.b16 %v291
      %v787 = vunpack.c.l.b16 %v292
      %v788 = vunpack.c.h.b16 %v292
      %v789 = vunpack.c.l.b16 %v293
      %v790 = vunpack.c.l.b16 %v294
      %v791 = vunpack.c.h.b16 %v294
      %v792 = vunpack.c.l.b16 %v295
      %v793 = vunpack.c.h.b16 %v295
      %v794 = vunpack.c.l.b16 %v296
      %v795 = vunpack.c.h.b16 %v296
      %v796 = vunpack.c.l.b16 %v297
      %v797 = vunpack.c.l.b16 %v298
      %v798 = vunpack.c.h.b16 %v298
      %v799 = vunpack.c.l.b16 %v299
      %v800 = vunpack.c.h.b16 %v299
      %v801 = vunpack.c.l.b16 %v300
      %v802 = vunpack.c.h.b16 %v300
      %v803 = vunpack.c.l.b16 %v301
      %v804 = vunpack.c.l.b16 %v302
      %v805 = vunpack.c.h.b16 %v302
      %v806 = vunpack.c.l.b16 %v303
      %v807 = vunpack.c.h.b16 %v303
      %v808 = vunpack.c.l.b16 %v304
      %v809 = vunpack.c.h.b16 %v304
      %v810 = vunpack.c.l.b16 %v305
      %v811 = vunpack.c.l.b16 %v306
      %v812 = vunpack.c.h.b16 %v306
      %v813 = vunpack.c.l.b16 %v307
      %v814 = vunpack.c.h.b16 %v307
      %v815 = vunpack.c.l.b16 %v308
      %v816 = vunpack.c.h.b16 %v308
      %v817 = vunpack.c.l.b16 %v309
      %v818 = vunpack.c.l.b16 %v310
      %v819 = vunpack.c.h.b16 %v310
      %v820 = vunpack.c.l.b16 %v311
      %v821 = vunpack.c.h.b16 %v311
      %v822 = vunpack.c.l.b16 %v312
      %v823 = vunpack.c.h.b16 %v312
      %v824 = vunpack.c.l.b16 %v313
      %v825 = vunpack.c.l.b16 %v314
      %v826 = vunpack.c.h.b16 %v314
      %v827 = vunpack.c.l.b16 %v315
      %v828 = vunpack.c.h.b16 %v315
      %v829 = vunpack.c.l.b16 %v316
      %v830 = vunpack.c.h.b16 %v316
      %v831 = vunpack.c.l.b16 %v317
      %v832 = vunpack.c.l.b16 %v318
      %v833 = vunpack.c.h.b16 %v318
      %v834 = vunpack.c.l.b16 %v319
      %v835 = vunpack.c.h.b16 %v319
      %v836 = vunpack.c.l.b16 %v320
      %v837 = vunpack.c.h.b16 %v320
      %v838 = vunpack.c.l.b16 %v321
      %v839 = vunpack.c.l.b16 %v322
      %v840 = vunpack.c.h.b16 %v322
      %v841 = vunpack.c.l.b16 %v323
      %v842 = vunpack.c.h.b16 %v323
      %v843 = vunpack.c.l.b16 %v324
      %v844 = vunpack.c.h.b16 %v324
      %v845 = vunpack.c.l.b16 %v325
      %v846 = vunpack.c.l.b16 %v326
      %v847 = vunpack.c.h.b16 %v326
      %v848 = vunpack.c.l.b16 %v327
      %v849 = vunpack.c.h.b16 %v327
      %v850 = vunpack.c.l.b16 %v328
      %v851 = vunpack.c.h.b16 %v328
      %v852 = vunpack.c.l.b16 %v329
      %v853 = vunpack.c.l.b16 %v330
      %v854 = vunpack.c.h.b16 %v330
      %v855 = vunpack.c.l.b16 %v331
      %v856 = vunpack.c.h.b16 %v331
      %v857 = vunpack.c.l.b16 %v332
      %v858 = vunpack.c.h.b16 %v332
      %v859 = vunpack.c.l.b16 %v333
      %v860 = vunpack.c.l.b16 %v334
      %v861 = vunpack.c.h.b16 %v334
      %v862 = vunpack.c.l.b16 %v335
      %v863 = vunpack.c.h.b16 %v335
      %v864 = vunpack.c.l.b16 %v336
      %v865 = vunpack.c.h.b16 %v336
      %v866 = vunpack.c.l.b16 %v337
      %v867 = vunpack.c.l.b16 %v338
      %v868 = vunpack.c.h.b16 %v338
      %v869 = vunpack.c.l.b16 %v339
      %v870 = vunpack.c.h.b16 %v339
      %v871 = vunpack.c.l.b16 %v340
      %v872 = vunpack.c.h.b16 %v340
      %v873 = vunpack.c.l.b16 %v341
      %v874 = vunpack.c.l.b16 %v342
      %v875 = vunpack.c.h.b16 %v342
      %v876 = vunpack.c.l.b16 %v343
      %v877 = vunpack.c.h.b16 %v343
      %v878 = vunpack.c.l.b16 %v344
      %v879 = vunpack.c.h.b16 %v344
      %v880 = vunpack.c.l.b16 %v345
      %v881 = vunpack.c.l.b16 %v346
      %v882 = vunpack.c.h.b16 %v346
      %v883 = vunpack.c.l.b16 %v347
      %v884 = vunpack.c.h.b16 %v347
      %v885 = vunpack.c.l.b16 %v348
      %v886 = vunpack.c.h.b16 %v348
      %v887 = vunpack.c.l.b16 %v349
      %v888 = vunpack.c.l.b16 %v350
      %v889 = vunpack.c.h.b16 %v350
      %v890 = vunpack.c.l.b16 %v351
      %v891 = vunpack.c.h.b16 %v351
      %v892 = vunpack.c.l.b16 %v352
      %v893 = vunpack.c.h.b16 %v352
      %v894 = vunpack.c.l.b16 %v353
      %v895 = vunpack.c.l.b16 %v354
      %v896 = vunpack.c.h.b16 %v354
      %v897 = vunpack.c.l.b16 %v355
      %v898 = vunpack.c.h.b16 %v355
      %v899 = vunpack.c.l.b16 %v356
      %v900 = vunpack.c.h.b16 %v356
      %v901 = vunpack.c.l.b16 %v357
      %v902 = vunpack.c.l.b16 %v358
      %v903 = vunpack.c.h.b16 %v358
      %v904 = vunpack.c.l.b16 %v359
      %v905 = vunpack.c.h.b16 %v359
      %v906 = vunpack.c.l.b16 %v360
      %v907 = vunpack.c.h.b16 %v360
      %v908 = vunpack.c.l.b16 %v361
      %v909 = vunpack.c.l.b16 %v362
      %v910 = vunpack.c.h.b16 %v362
      %v911 = vunpack.c.l.b16 %v363
      %v912 = vunpack.c.h.b16 %v363
      %v913 = vunpack.c.l.b16 %v364
      %v914 = vunpack.c.h.b16 %v364
      %v915 = vunpack.c.l.b16 %v365
      %v916 = vunpack.c.l.b16 %v366
      %v917 = vunpack.c.h.b16 %v366
      %v918 = vunpack.c.l.b16 %v367
      %v919 = vunpack.c.h.b16 %v367
      %v920 = vunpack.c.l.b16 %v368
      %v921 = vunpack.c.h.b16 %v368
      %v922 = vunpack.c.l.b16 %v369
      %v923 = vunpack.c.l.b16 %v370
      %v924 = vunpack.c.h.b16 %v370
      %v925 = vunpack.c.l.b16 %v371
      %v926 = vunpack.c.h.b16 %v371
      %v927 = vunpack.c.l.b16 %v372
      %v928 = vunpack.c.h.b16 %v372
      %v929 = vunpack.c.l.b16 %v373
      %v930 = vunpack.c.l.b16 %v374
      %v931 = vunpack.c.h.b16 %v374
      %v932 = vunpack.c.l.b16 %v375
      %v933 = vunpack.c.h.b16 %v375
      %v934 = vunpack.c.l.b16 %v376
      %v935 = vunpack.c.h.b16 %v376
      %v936 = vunpack.c.l.b16 %v377
      %v937 = vunpack.c.l.b16 %v378
      %v938 = vunpack.c.h.b16 %v378
      %v939 = vunpack.c.l.b16 %v379
      %v940 = vunpack.c.h.b16 %v379
      %v941 = vunpack.c.l.b16 %v380
      %v942 = vunpack.c.h.b16 %v380
      %v943 = vunpack.c.l.b16 %v381
      %v944 = vunpack.c.l.b16 %v382
      %v945 = vunpack.c.h.b16 %v382
      %v946 = vunpack.c.l.b16 %v383
      %v947 = vunpack.c.h.b16 %v383
      %v948 = vunpack.c.l.b16 %v384
      %v949 = vunpack.c.h.b16 %v384
      %v950 = vunpack.c.l.b16 %v385
      %v951 = vunpack.c.l.b16 %v386
      %v952 = vunpack.c.h.b16 %v386
      %v953 = vunpack.c.l.b16 %v387
      %v954 = vunpack.c.h.b16 %v387
      %v955 = vunpack.c.l.b16 %v388
      %v956 = vunpack.c.h.b16 %v388
      %v957 = vunpack.c.l.b16 %v389
      %v958 = vunpack.c.l.b16 %v390
      %v959 = vunpack.c.h.b16 %v390
      %v960 = vunpack.c.l.b16 %v391
      %v961 = vunpack.c.h.b16 %v391
      %v962 = vunpack.c.l.b16 %v392
      %v963 = vunpack.c.h.b16 %v392
      %v964 = vunpack.c.l.b16 %v393
      %v965 = vunpack.c.l.b16 %v394
      %v966 = vunpack.c.h.b16 %v394
      %v967 = vunpack.c.l.b16 %v395
      %v968 = vunpack.c.h.b16 %v395
      %v969 = vunpack.c.l.b16 %v396
      %v970 = vunpack.c.h.b16 %v396
      %v971 = vunpack.c.l.b16 %v397
      %v972 = vunpack.c.l.b16 %v398
      %v973 = vunpack.c.h.b16 %v398
      %v974 = vunpack.c.l.b16 %v399
      %v975 = vunpack.c.h.b16 %v399
      %v976 = vunpack.c.l.b16 %v400
      %v977 = vunpack.c.h.b16 %v400
      %v978 = vunpack.c.l.b16 %v401
      %v979 = vunpack.c.l.b16 %v402
      %v980 = vunpack.c.h.b16 %v402
      %v981 = vunpack.c.l.b16 %v403
      %v982 = vunpack.c.h.b16 %v403
      %v983 = vunpack.c.l.b16 %v404
      %v984 = vunpack.c.h.b16 %v404
      %v985 = vunpack.c.l.b16 %v405
      %v986 = vunpack.c.l.b16 %v406
      %v987 = vunpack.c.h.b16 %v406
      %v988 = vunpack.c.l.b16 %v407
      %v989 = vunpack.c.h.b16 %v407
      %v990 = vunpack.c.l.b16 %v408
      %v991 = vunpack.c.h.b16 %v408
      %v992 = vunpack.c.l.b16 %v409
      %v993 = vunpack.c.l.b16 %v410
      %v994 = vunpack.c.h.b16 %v410
      %v995 = vunpack.c.l.b16 %v411
      %v996 = vunpack.c.h.b16 %v411
      %v997 = vunpack.c.l.b16 %v412
      %v998 = vunpack.c.h.b16 %v412
      %v999 = vunpack.c.l.b16 %v413
      %v1000 = vpack.c.b16 %v783, %v776
      %v1001 = vpack.c.b16 %v784, %v777
      %v1002 = vpack.c.b16 %v785, %v778
      %v1003 = vpack.c.b16 %v786, %v779
      %v1004 = vpack.c.b16 %v787, %v780
      %v1005 = vpack.c.b16 %v788, %v781
      %v1006 = vpack.c.b16 %v789, %v782
      %v1007 = vpack.c.b16 %v797, %v790
      %v1008 = vpack.c.b16 %v798, %v791
      %v1009 = vpack.c.b16 %v799, %v792
      %v1010 = vpack.c.b16 %v800, %v793
      %v1011 = vpack.c.b16 %v801, %v794
      %v1012 = vpack.c.b16 %v802, %v795
      %v1013 = vpack.c.b16 %v803, %v796
      %v1014 = vpack.c.b16 %v811, %v804
      %v1015 = vpack.c.b16 %v812, %v805
      %v1016 = vpack.c.b16 %v813, %v806
      %v1017 = vpack.c.b16 %v814, %v807
      %v1018 = vpack.c.b16 %v815, %v808
      %v1019 = vpack.c.b16 %v816, %v809
      %v1020 = vpack.c.b16 %v817, %v810
      %v1021 = vpack.c.b16 %v825, %v818
      %v1022 = vpack.c.b16 %v826, %v819
      %v1023 = vpack.c.b16 %v827, %v820
      %v1024 = vpack.c.b16 %v828, %v821
      %v1025 = vpack.c.b16 %v829, %v822
      %v1026 = vpack.c.b16 %v830, %v823
      %v1027 = vpack.c.b16 %v831, %v824
      %v1028 = vpack.c.b16 %v839, %v832
      %v1029 = vpack.c.b16 %v840, %v833
      %v1030 = vpack.c.b16 %v841, %v834
      %v1031 = vpack.c.b16 %v842, %v835
      %v1032 = vpack.c.b16 %v843, %v836
      %v1033 = vpack.c.b16 %v844, %v837
      %v1034 = vpack.c.b16 %v845, %v838
      %v1035 = vpack.c.b16 %v853, %v846
      %v1036 = vpack.c.b16 %v854, %v847
      %v1037 = vpack.c.b16 %v855, %v848
      %v1038 = vpack.c.b16 %v856, %v849
      %v1039 = vpack.c.b16 %v857, %v850
      %v1040 = vpack.c.b16 %v858, %v851
      %v1041 = vpack.c.b16 %v859, %v852
      %v1042 = vpack.c.b16 %v867, %v860
      %v1043 = vpack.c.b16 %v868, %v861
      %v1044 = vpack.c.b16 %v869, %v862
      %v1045 = vpack.c.b16 %v870, %v863
      %v1046 = vpack.c.b16 %v871, %v864
      %v1047 = vpack.c.b16 %v872, %v865
      %v1048 = vpack.c.b16 %v873, %v866
      %v1049 = vpack.c.b16 %v881, %v874
      %v1050 = vpack.c.b16 %v882, %v875
      %v1051 = vpack.c.b16 %v883, %v876
      %v1052 = vpack.c.b16 %v884, %v877
      %v1053 = vpack.c.b16 %v885, %v878
      %v1054 = vpack.c.b16 %v886, %v879
      %v1055 = vpack.c.b16 %v887, %v880
      %v1056 = vpack.c.b16 %v895, %v888
      %v1057 = vpack.c.b16 %v896, %v889
      %v1058 = vpack.c.b16 %v897, %v890
      %v1059 = vpack.c.b16 %v898, %v891
      %v1060 = vpack.c.b16 %v899, %v892
      %v1061 = vpack.c.b16 %v900, %v893
      %v1062 = vpack.c.b16 %v901, %v894
      %v1063 = vpack.c.b16 %v909, %v902
      %v1064 = vpack.c.b16 %v910, %v903
      %v1065 = vpack.c.b16 %v911, %v904
      %v1066 = vpack.c.b16 %v912, %v905
      %v1067 = vpack.c.b16 %v913, %v906
      %v1068 = vpack.c.b16 %v914, %v907
      %v1069 = vpack.c.b16 %v915, %v908
      %v1070 = vpack.c.b16 %v923, %v916
      %v1071 = vpack.c.b16 %v924, %v917
      %v1072 = vpack.c.b16 %v925, %v918
      %v1073 = vpack.c.b16 %v926, %v919
      %v1074 = vpack.c.b16 %v927, %v920
      %v1075 = vpack.c.b16 %v928, %v921
      %v1076 = vpack.c.b16 %v929, %v922
      %v1077 = vpack.c.b16 %v937, %v930
      %v1078 = vpack.c.b16 %v938, %v931
      %v1079 = vpack.c.b16 %v939, %v932
      %v1080 = vpack.c.b16 %v940, %v933
      %v1081 = vpack.c.b16 %v941, %v934
      %v1082 = vpack.c.b16 %v942, %v935
      %v1083 = vpack.c.b16 %v943, %v936
      %v1084 = vpack.c.b16 %v951, %v944
      %v1085 = vpack.c.b16 %v952, %v945
      %v1086 = vpack.c.b16 %v953, %v946
      %v1087 = vpack.c.b16 %v954, %v947
      %v1088 = vpack.c.b16 %v955, %v948
      %v1089 = vpack.c.b16 %v956, %v949
      %v1090 = vpack.c.b16 %v957, %v950
      %v1091 = vpack.c.b16 %v965, %v958
      %v1092 = vpack.c.b16 %v966, %v959
      %v1093 = vpack.c.b16 %v967, %v960
      %v1094 = vpack.c.b16 %v968, %v961
      %v1095 = vpack.c.b16 %v969, %v962
      %v1096 = vpack.c.b16 %v970, %v963
      %v1097 = vpack.c.b16 %v971, %v964
      %v1098 = vpack.c.b16 %v979, %v972
      %v1099 = vpack.c.b16 %v980, %v973
      %v1100 = vpack.c.b16 %v981, %v974
      %v1101 = vpack.c.b16 %v982, %v975
      %v1102 = vpack.c.b16 %v983, %v976
      %v1103 = vpack.c.b16 %v984, %v977
      %v1104 = vpack.c.b16 %v985, %v978
      %v1105 = vpack.c.b16 %v993, %v986
      %v1106 = vpack.c.b16 %v994, %v987
      %v1107 = vpack.c.b16 %v995, %v988
      %v1108 = vpack.c.b16 %v996, %v989
      %v1109 = vpack.c.b16 %v997, %v990
      %v1110 = vpack.c.b16 %v998, %v991
      %v1111 = vpack.c.b16 %v999, %v992
      %v1448 = vunpack.c.l.b16 %v414
      %v1449 = vunpack.c.h.b16 %v414
      %v1450 = vunpack.c.l.b16 %v415
      %v1451 = vunpack.c.h.b16 %v415
      %v1452 = vunpack.c.l.b16 %v416
      %v1453 = vunpack.c.h.b16 %v416
      %v1454 = vunpack.c.l.b16 %v417
      %v1455 = vunpack.c.h.b16 %v417
      %v1456 = vunpack.c.l.b16 %v418
      %v1457 = vunpack.c.h.b16 %v418
      %v1458 = vunpack.c.l.b16 %v419
      %v1459 = vunpack.c.h.b16 %v419
      %v1460 = vunpack.c.l.b16 %v420
      %v1461 = vunpack.c.h.b16 %v420
      %v1462 = vunpack.c.l.b16 %v421
      %v1463 = vunpack.c.h.b16 %v421
      %v1464 = vunpack.c.l.b16 %v422
      %v1465 = vunpack.c.h.b16 %v422
      %v1466 = vunpack.c.l.b16 %v423
      %v1467 = vunpack.c.h.b16 %v423
      %v1468 = vunpack.c.l.b16 %v424
      %v1469 = vunpack.c.h.b16 %v424
      %v1470 = vunpack.c.l.b16 %v425
      %v1471 = vunpack.c.h.b16 %v425
      %v1472 = vunpack.c.l.b16 %v426
      %v1473 = vunpack.c.h.b16 %v426
      %v1474 = vunpack.c.l.b16 %v427
      %v1475 = vunpack.c.h.b16 %v427
      %v1476 = vunpack.c.l.b16 %v428
      %v1477 = vunpack.c.h.b16 %v428
      %v1478 = vunpack.c.l.b16 %v429
      %v1479 = vunpack.c.h.b16 %v429
      %v1480 = vunpack.c.l.b16 %v430
      %v1481 = vunpack.c.h.b16 %v430
      %v1482 = vunpack.c.l.b16 %v431
      %v1483 = vunpack.c.h.b16 %v431
      %v1484 = vunpack.c.l.b16 %v432
      %v1485 = vunpack.c.h.b16 %v432
      %v1486 = vunpack.c.l.b16 %v433
      %v1487 = vunpack.c.h.b16 %v433
      %v1488 = vunpack.c.l.b16 %v434
      %v1489 = vunpack.c.h.b16 %v434
      %v1490 = vunpack.c.l.b16 %v435
      %v1491 = vunpack.c.h.b16 %v435
      %v1492 = vunpack.c.l.b16 %v436
      %v1493 = vunpack.c.h.b16 %v436
      %v1494 = vunpack.c.l.b16 %v437
      %v1495 = vunpack.c.h.b16 %v437
      %v1496 = vunpack.c.l.b16 %v438
      %v1497 = vunpack.c.h.b16 %v438
      %v1498 = vunpack.c.l.b16 %v439
      %v1499 = vunpack.c.h.b16 %v439
      %v1500 = vunpack.c.l.b16 %v440
      %v1501 = vunpack.c.h.b16 %v440
      %v1502 = vunpack.c.l.b16 %v441
      %v1503 = vunpack.c.h.b16 %v441
      %v1504 = vunpack.c.l.b16 %v442
      %v1505 = vunpack.c.h.b16 %v442
      %v1506 = vunpack.c.l.b16 %v443
      %v1507 = vunpack.c.h.b16 %v443
      %v1508 = vunpack.c.l.b16 %v444
      %v1509 = vunpack.c.h.b16 %v444
      %v1510 = vunpack.c.l.b16 %v445
      %v1511 = vunpack.c.h.b16 %v445
      %v1512 = vunpack.c.l.b16 %v446
      %v1513 = vunpack.c.h.b16 %v446
      %v1514 = vunpack.c.l.b16 %v447
      %v1515 = vunpack.c.h.b16 %v447
      %v1516 = vunpack.c.l.b16 %v448
      %v1517 = vunpack.c.h.b16 %v448
      %v1518 = vunpack.c.l.b16 %v449
      %v1519 = vunpack.c.h.b16 %v449
      %v1520 = vunpack.c.l.b16 %v450
      %v1521 = vunpack.c.h.b16 %v450
      %v1522 = vunpack.c.l.b16 %v451
      %v1523 = vunpack.c.h.b16 %v451
      %v1524 = vunpack.c.l.b16 %v452
      %v1525 = vunpack.c.h.b16 %v452
      %v1526 = vunpack.c.l.b16 %v453
      %v1527 = vunpack.c.h.b16 %v453
      %v1528 = vunpack.c.l.b16 %v454
      %v1529 = vunpack.c.h.b16 %v454
      %v1530 = vunpack.c.l.b16 %v455
      %v1531 = vunpack.c.h.b16 %v455
      %v1532 = vunpack.c.l.b16 %v456
      %v1533 = vunpack.c.h.b16 %v456
      %v1534 = vunpack.c.l.b16 %v457
      %v1535 = vunpack.c.h.b16 %v457
      %v1536 = vunpack.c.l.b16 %v458
      %v1537 = vunpack.c.h.b16 %v458
      %v1538 = vunpack.c.l.b16 %v459
      %v1539 = vunpack.c.h.b16 %v459
      %v1540 = vunpack.c.l.b16 %v460
      %v1541 = vunpack.c.h.b16 %v460
      %v1542 = vunpack.c.l.b16 %v461
      %v1543 = vunpack.c.h.b16 %v461
      %v1544 = vunpack.c.l.b16 %v462
      %v1545 = vunpack.c.h.b16 %v462
      %v1546 = vunpack.c.l.b16 %v463
      %v1547 = vunpack.c.h.b16 %v463
      %v1548 = vunpack.c.l.b16 %v464
      %v1549 = vunpack.c.h.b16 %v464
      %v1550 = vunpack.c.l.b16 %v465
      %v1551 = vunpack.c.h.b16 %v465
      %v1552 = vunpack.c.l.b16 %v466
      %v1553 = vunpack.c.h.b16 %v466
      %v1554 = vunpack.c.l.b16 %v467
      %v1555 = vunpack.c.h.b16 %v467
      %v1556 = vunpack.c.l.b16 %v468
      %v1557 = vunpack.c.h.b16 %v468
      %v1558 = vunpack.c.l.b16 %v469
      %v1559 = vunpack.c.h.b16 %v469
      %v1560 = vunpack.c.l.b16 %v470
      %v1561 = vunpack.c.h.b16 %v470
      %v1562 = vunpack.c.l.b16 %v471
      %v1563 = vunpack.c.h.b16 %v471
      %v1564 = vunpack.c.l.b16 %v472
      %v1565 = vunpack.c.h.b16 %v472
      %v1566 = vunpack.c.l.b16 %v473
      %v1567 = vunpack.c.h.b16 %v473
      %v1568 = vunpack.c.l.b16 %v474
      %v1569 = vunpack.c.h.b16 %v474
      %v1570 = vunpack.c.l.b16 %v475
      %v1571 = vunpack.c.h.b16 %v475
      %v1572 = vunpack.c.l.b16 %v476
      %v1573 = vunpack.c.h.b16 %v476
      %v1574 = vunpack.c.l.b16 %v477
      %v1575 = vunpack.c.h.b16 %v477
      %v1576 = vunpack.c.l.b16 %v478
      %v1577 = vunpack.c.h.b16 %v478
      %v1578 = vunpack.c.l.b16 %v479
      %v1579 = vunpack.c.h.b16 %v479
      %v1580 = vunpack.c.l.b16 %v480
      %v1581 = vunpack.c.h.b16 %v480
      %v1582 = vunpack.c.l.b16 %v481
      %v1583 = vunpack.c.h.b16 %v481
      %v1584 = vunpack.c.l.b16 %v482
      %v1585 = vunpack.c.h.b16 %v482
      %v1586 = vunpack.c.l.b16 %v483
      %v1587 = vunpack.c.h.b16 %v483
      %v1588 = vunpack.c.l.b16 %v484
      %v1589 = vunpack.c.h.b16 %v484
      %v1590 = vunpack.c.l.b16 %v485
      %v1591 = vunpack.c.h.b16 %v485
      %v1592 = vunpack.c.l.b16 %v486
      %v1593 = vunpack.c.h.b16 %v486
      %v1594 = vunpack.c.l.b16 %v487
      %v1595 = vunpack.c.h.b16 %v487
      %v1596 = vunpack.c.l.b16 %v488
      %v1597 = vunpack.c.h.b16 %v488
      %v1598 = vunpack.c.l.b16 %v489
      %v1599 = vunpack.c.h.b16 %v489
      %v1600 = vunpack.c.l.b16 %v490
      %v1601 = vunpack.c.h.b16 %v490
      %v1602 = vunpack.c.l.b16 %v491
      %v1603 = vunpack.c.h.b16 %v491
      %v1604 = vunpack.c.l.b16 %v492
      %v1605 = vunpack.c.h.b16 %v492
      %v1606 = vunpack.c.l.b16 %v493
      %v1607 = vunpack.c.h.b16 %v493
      %v1608 = vunpack.c.l.b16 %v494
      %v1609 = vunpack.c.h.b16 %v494
      %v1610 = vunpack.c.l.b16 %v495
      %v1611 = vunpack.c.h.b16 %v495
      %v1612 = vunpack.c.l.b16 %v496
      %v1613 = vunpack.c.h.b16 %v496
      %v1614 = vunpack.c.l.b16 %v497
      %v1615 = vunpack.c.h.b16 %v497
      %v1616 = vunpack.c.l.b16 %v498
      %v1617 = vunpack.c.h.b16 %v498
      %v1618 = vunpack.c.l.b16 %v499
      %v1619 = vunpack.c.h.b16 %v499
      %v1620 = vunpack.c.l.b16 %v500
      %v1621 = vunpack.c.h.b16 %v500
      %v1622 = vunpack.c.l.b16 %v501
      %v1623 = vunpack.c.h.b16 %v501
      %v1624 = vunpack.c.l.b16 %v502
      %v1625 = vunpack.c.h.b16 %v502
      %v1626 = vunpack.c.l.b16 %v503
      %v1627 = vunpack.c.h.b16 %v503
      %v1628 = vunpack.c.l.b16 %v504
      %v1629 = vunpack.c.h.b16 %v504
      %v1630 = vunpack.c.l.b16 %v505
      %v1631 = vunpack.c.h.b16 %v505
      %v1632 = vunpack.c.l.b16 %v506
      %v1633 = vunpack.c.h.b16 %v506
      %v1634 = vunpack.c.l.b16 %v507
      %v1635 = vunpack.c.h.b16 %v507
      %v1636 = vunpack.c.l.b16 %v508
      %v1637 = vunpack.c.h.b16 %v508
      %v1638 = vunpack.c.l.b16 %v509
      %v1639 = vunpack.c.h.b16 %v509
      %v1640 = vunpack.c.l.b16 %v510
      %v1641 = vunpack.c.h.b16 %v510
      %v1642 = vunpack.c.l.b16 %v511
      %v1643 = vunpack.c.h.b16 %v511
      %v1644 = vunpack.c.l.b16 %v512
      %v1645 = vunpack.c.h.b16 %v512
      %v1646 = vunpack.c.l.b16 %v513
      %v1647 = vunpack.c.h.b16 %v513
      %v1648 = vunpack.c.l.b16 %v514
      %v1649 = vunpack.c.h.b16 %v514
      %v1650 = vunpack.c.l.b16 %v515
      %v1651 = vunpack.c.h.b16 %v515
      %v1652 = vunpack.c.l.b16 %v516
      %v1653 = vunpack.c.h.b16 %v516
      %v1654 = vunpack.c.l.b16 %v517
      %v1655 = vunpack.c.h.b16 %v517
      %v1656 = vunpack.c.l.b16 %v518
      %v1657 = vunpack.c.h.b16 %v518
      %v1658 = vunpack.c.l.b16 %v519
      %v1659 = vunpack.c.h.b16 %v519
      %v1660 = vunpack.c.l.b16 %v520
      %v1661 = vunpack.c.h.b16 %v520
      %v1662 = vunpack.c.l.b16 %v521
      %v1663 = vunpack.c.h.b16 %v521
      %v1664 = vunpack.c.l.b16 %v522
      %v1665 = vunpack.c.h.b16 %v522
      %v1666 = vunpack.c.l.b16 %v523
      %v1667 = vunpack.c.h.b16 %v523
      %v1668 = vunpack.c.l.b16 %v524
      %v1669 = vunpack.c.h.b16 %v524
      %v1670 = vunpack.c.l.b16 %v525
      %v1671 = vunpack.c.h.b16 %v525
      %v1672 = vunpack.c.l.b16 %v526
      %v1673 = vunpack.c.h.b16 %v526
      %v1674 = vunpack.c.l.b16 %v527
      %v1675 = vunpack.c.h.b16 %v527
      %v1676 = vunpack.c.l.b16 %v528
      %v1677 = vunpack.c.h.b16 %v528
      %v1678 = vunpack.c.l.b16 %v529
      %v1679 = vunpack.c.h.b16 %v529
      %v1680 = vunpack.c.l.b16 %v530
      %v1681 = vunpack.c.h.b16 %v530
      %v1682 = vunpack.c.l.b16 %v531
      %v1683 = vunpack.c.h.b16 %v531
      %v1684 = vunpack.c.l.b16 %v532
      %v1685 = vunpack.c.h.b16 %v532
      %v1686 = vunpack.c.l.b16 %v533
      %v1687 = vunpack.c.h.b16 %v533
      %v1688 = vunpack.c.l.b16 %v534
      %v1689 = vunpack.c.h.b16 %v534
      %v1690 = vunpack.c.l.b16 %v535
      %v1691 = vunpack.c.h.b16 %v535
      %v1692 = vunpack.c.l.b16 %v536
      %v1693 = vunpack.c.h.b16 %v536
      %v1694 = vunpack.c.l.b16 %v537
      %v1695 = vunpack.c.h.b16 %v537
      %v1696 = vunpack.c.l.b16 %v538
      %v1697 = vunpack.c.h.b16 %v538
      %v1698 = vunpack.c.l.b16 %v539
      %v1699 = vunpack.c.h.b16 %v539
      %v1700 = vunpack.c.l.b16 %v540
      %v1701 = vunpack.c.h.b16 %v540
      %v1702 = vunpack.c.l.b16 %v541
      %v1703 = vunpack.c.h.b16 %v541
      %v1704 = vunpack.c.l.b16 %v542
      %v1705 = vunpack.c.h.b16 %v542
      %v1706 = vunpack.c.l.b16 %v543
      %v1707 = vunpack.c.h.b16 %v543
      %v1708 = vunpack.c.l.b16 %v544
      %v1709 = vunpack.c.h.b16 %v544
      %v1710 = vunpack.c.l.b16 %v545
      %v1711 = vunpack.c.h.b16 %v545
      %v1712 = vunpack.c.l.b16 %v546
      %v1713 = vunpack.c.h.b16 %v546
      %v1714 = vunpack.c.l.b16 %v547
      %v1715 = vunpack.c.h.b16 %v547
      %v1716 = vunpack.c.l.b16 %v548
      %v1717 = vunpack.c.h.b16 %v548
      %v1718 = vunpack.c.l.b16 %v549
      %v1719 = vunpack.c.h.b16 %v549
      %v1720 = vunpack.c.l.b16 %v550
      %v1721 = vunpack.c.h.b16 %v550
      %v1722 = vunpack.c.l.b16 %v551
      %v1723 = vunpack.c.h.b16 %v551
      %v1724 = vunpack.c.l.b16 %v552
      %v1725 = vunpack.c.h.b16 %v552
      %v1726 = vunpack.c.l.b16 %v553
      %v1727 = vunpack.c.h.b16 %v553
      %v1728 = vunpack.c.l.b16 %v554
      %v1729 = vunpack.c.h.b16 %v554
      %v1730 = vunpack.c.l.b16 %v555
      %v1731 = vunpack.c.h.b16 %v555
      %v1732 = vunpack.c.l.b16 %v556
      %v1733 = vunpack.c.h.b16 %v556
      %v1734 = vunpack.c.l.b16 %v557
      %v1735 = vunpack.c.h.b16 %v557
      %v1736 = vunpack.c.l.b16 %v558
      %v1737 = vunpack.c.h.b16 %v558
      %v1738 = vunpack.c.l.b16 %v559
      %v1739 = vunpack.c.h.b16 %v559
      %v1740 = vunpack.c.l.b16 %v560
      %v1741 = vunpack.c.h.b16 %v560
      %v1742 = vunpack.c.l.b16 %v561
      %v1743 = vunpack.c.h.b16 %v561
      %v1744 = vunpack.c.l.b16 %v562
      %v1745 = vunpack.c.h.b16 %v562
      %v1746 = vunpack.c.l.b16 %v563
      %v1747 = vunpack.c.h.b16 %v563
      %v1748 = vunpack.c.l.b16 %v564
      %v1749 = vunpack.c.h.b16 %v564
      %v1750 = vunpack.c.l.b16 %v565
      %v1751 = vunpack.c.h.b16 %v565
      %v1752 = vunpack.c.l.b16 %v566
      %v1753 = vunpack.c.h.b16 %v566
      %v1754 = vunpack.c.l.b16 %v567
      %v1755 = vunpack.c.h.b16 %v567
      %v1756 = vunpack.c.l.b16 %v568
      %v1757 = vunpack.c.h.b16 %v568
      %v1758 = vunpack.c.l.b16 %v569
      %v1759 = vunpack.c.h.b16 %v569
      %v1760 = vunpack.c.l.b16 %v570
      %v1761 = vunpack.c.h.b16 %v570
      %v1762 = vunpack.c.l.b16 %v571
      %v1763 = vunpack.c.h.b16 %v571
      %v1764 = vunpack.c.l.b16 %v572
      %v1765 = vunpack.c.h.b16 %v572
      %v1766 = vunpack.c.l.b16 %v573
      %v1767 = vunpack.c.h.b16 %v573
      %v1768 = vunpack.c.l.b16 %v574
      %v1769 = vunpack.c.h.b16 %v574
      %v1770 = vunpack.c.l.b16 %v575
      %v1771 = vunpack.c.h.b16 %v575
      %v1772 = vunpack.c.l.b16 %v576
      %v1773 = vunpack.c.h.b16 %v576
      %v1774 = vunpack.c.l.b16 %v577
      %v1775 = vunpack.c.h.b16 %v577
      %v1776 = vunpack.c.l.b16 %v578
      %v1777 = vunpack.c.h.b16 %v578
      %v1778 = vunpack.c.l.b16 %v579
      %v1779 = vunpack.c.h.b16 %v579
      %v1780 = vunpack.c.l.b16 %v580
      %v1781 = vunpack.c.h.b16 %v580
      %v1782 = vunpack.c.l.b16 %v581
      %v1783 = vunpack.c.h.b16 %v581
      %v1784 = vunpack.c.l.b16 %v582
      %v1785 = vunpack.c.h.b16 %v582
      %v1786 = vunpack.c.l.b16 %v583
      %v1787 = vunpack.c.h.b16 %v583
      %v1788 = vunpack.c.l.b16 %v584
      %v1789 = vunpack.c.h.b16 %v584
      %v1790 = vunpack.c.l.b16 %v585
      %v1791 = vunpack.c.h.b16 %v585
      %v1792 = vunpack.c.l.b16 %v586
      %v1793 = vunpack.c.h.b16 %v586
      %v1794 = vunpack.c.l.b16 %v587
      %v1795 = vunpack.c.h.b16 %v587
      %v1796 = vunpack.c.l.b16 %v588
      %v1797 = vunpack.c.h.b16 %v588
      %v1798 = vunpack.c.l.b16 %v589
      %v1799 = vunpack.c.h.b16 %v589
      %v1800 = vunpack.c.l.b16 %v590
      %v1801 = vunpack.c.h.b16 %v590
      %v1802 = vunpack.c.l.b16 %v591
      %v1803 = vunpack.c.h.b16 %v591
      %v1804 = vunpack.c.l.b16 %v592
      %v1805 = vunpack.c.h.b16 %v592
      %v1806 = vunpack.c.l.b16 %v593
      %v1807 = vunpack.c.h.b16 %v593
      %v1808 = vunpack.c.l.b16 %v594
      %v1809 = vunpack.c.h.b16 %v594
      %v1810 = vunpack.c.l.b16 %v595
      %v1811 = vunpack.c.h.b16 %v595
      %v1812 = vunpack.c.l.b16 %v596
      %v1813 = vunpack.c.h.b16 %v596
      %v1814 = vunpack.c.l.b16 %v597
      %v1815 = vunpack.c.h.b16 %v597
      %v1816 = vunpack.c.l.b16 %v598
      %v1817 = vunpack.c.h.b16 %v598
      %v1818 = vunpack.c.l.b16 %v599
      %v1819 = vunpack.c.h.b16 %v599
      %v1820 = vunpack.c.l.b16 %v600
      %v1821 = vunpack.c.h.b16 %v600
      %v1822 = vunpack.c.l.b16 %v601
      %v1823 = vunpack.c.h.b16 %v601
      %v1824 = vunpack.c.l.b16 %v602
      %v1825 = vunpack.c.h.b16 %v602
      %v1826 = vunpack.c.l.b16 %v603
      %v1827 = vunpack.c.h.b16 %v603
      %v1828 = vunpack.c.l.b16 %v604
      %v1829 = vunpack.c.h.b16 %v604
      %v1830 = vunpack.c.l.b16 %v605
      %v1831 = vunpack.c.h.b16 %v605
      %v1832 = vunpack.c.l.b16 %v606
      %v1833 = vunpack.c.h.b16 %v606
      %v1834 = vunpack.c.l.b16 %v607
      %v1835 = vunpack.c.h.b16 %v607
      %v1836 = vunpack.c.l.b16 %v608
      %v1837 = vunpack.c.h.b16 %v608
      %v1838 = vunpack.c.l.b16 %v609
      %v1839 = vunpack.c.h.b16 %v609
      %v1840 = vunpack.c.l.b16 %v610
      %v1841 = vunpack.c.h.b16 %v610
      %v1842 = vunpack.c.l.b16 %v611
      %v1843 = vunpack.c.h.b16 %v611
      %v1844 = vunpack.c.l.b16 %v612
      %v1845 = vunpack.c.h.b16 %v612
      %v1846 = vunpack.c.l.b16 %v613
      %v1847 = vunpack.c.h.b16 %v613
      %v1848 = vunpack.c.l.b16 %v614
      %v1849 = vunpack.c.h.b16 %v614
      %v1850 = vunpack.c.l.b16 %v615
      %v1851 = vunpack.c.h.b16 %v615
      %v1852 = vunpack.c.l.b16 %v616
      %v1853 = vunpack.c.h.b16 %v616
      %v1854 = vunpack.c.l.b16 %v617
      %v1855 = vunpack.c.h.b16 %v617
      %v1856 = vunpack.c.l.b16 %v618
      %v1857 = vunpack.c.h.b16 %v618
      %v1858 = vunpack.c.l.b16 %v619
      %v1859 = vunpack.c.h.b16 %v619
      %v1860 = vunpack.c.l.b16 %v620
      %v1861 = vunpack.c.h.b16 %v620
      %v1862 = vunpack.c.l.b16 %v621
      %v1863 = vunpack.c.h.b16 %v621
      %v1864 = vunpack.c.l.b16 %v622
      %v1865 = vunpack.c.h.b16 %v622
      %v1866 = vunpack.c.l.b16 %v623
      %v1867 = vunpack.c.h.b16 %v623
      %v1868 = vunpack.c.l.b16 %v624
      %v1869 = vunpack.c.h.b16 %v624
      %v1870 = vunpack.c.l.b16 %v625
      %v1871 = vunpack.c.h.b16 %v625
      %v1872 = vunpack.c.l.b16 %v626
      %v1873 = vunpack.c.h.b16 %v626
      %v1874 = vunpack.c.l.b16 %v627
      %v1875 = vunpack.c.h.b16 %v627
      %v1876 = vunpack.c.l.b16 %v628
      %v1877 = vunpack.c.h.b16 %v628
      %v1878 = vunpack.c.l.b16 %v629
      %v1879 = vunpack.c.h.b16 %v629
      %v1880 = vunpack.c.l.b16 %v630
      %v1881 = vunpack.c.h.b16 %v630
      %v1882 = vunpack.c.l.b16 %v631
      %v1883 = vunpack.c.h.b16 %v631
      %v1884 = vunpack.c.l.b16 %v632
      %v1885 = vunpack.c.h.b16 %v632
      %v1886 = vunpack.c.l.b16 %v633
      %v1887 = vunpack.c.h.b16 %v633
      %v1888 = vunpack.c.l.b16 %v634
      %v1889 = vunpack.c.h.b16 %v634
      %v1890 = vunpack.c.l.b16 %v635
      %v1891 = vunpack.c.h.b16 %v635
      %v1892 = vunpack.c.l.b16 %v636
      %v1893 = vunpack.c.h.b16 %v636
      %v1894 = vunpack.c.l.b16 %v637
      %v1895 = vunpack.c.h.b16 %v637
      %v1896 = vpack.c.b16 %v1452, %v1448
      %v1897 = vpack.c.b16 %v1453, %v1449
      %v1898 = vpack.c.b16 %v1454, %v1450
      %v1899 = vpack.c.b16 %v1455, %v1451
      %v1900 = vpack.c.b16 %v1460, %v1456
      %v1901 = vpack.c.b16 %v1461, %v1457
      %v1902 = vpack.c.b16 %v1462, %v1458
      %v1903 = vpack.c.b16 %v1463, %v1459
      %v1904 = vpack.c.b16 %v1468, %v1464
      %v1905 = vpack.c.b16 %v1469, %v1465
      %v1906 = vpack.c.b16 %v1470, %v1466
      %v1907 = vpack.c.b16 %v1471, %v1467
      %v1908 = vpack.c.b16 %v1476, %v1472
      %v1909 = vpack.c.b16 %v1477, %v1473
      %v1910 = vpack.c.b16 %v1478, %v1474
      %v1911 = vpack.c.b16 %v1479, %v1475
      %v1912 = vpack.c.b16 %v1484, %v1480
      %v1913 = vpack.c.b16 %v1485, %v1481
      %v1914 = vpack.c.b16 %v1486, %v1482
      %v1915 = vpack.c.b16 %v1487, %v1483
      %v1916 = vpack.c.b16 %v1492, %v1488
      %v1917 = vpack.c.b16 %v1493, %v1489
      %v1918 = vpack.c.b16 %v1494, %v1490
      %v1919 = vpack.c.b16 %v1495, %v1491
      %v1920 = vpack.c.b16 %v1500, %v1496
      %v1921 = vpack.c.b16 %v1501, %v1497
      %v1922 = vpack.c.b16 %v1502, %v1498
      %v1923 = vpack.c.b16 %v1503, %v1499
      %v1924 = vpack.c.b16 %v1508, %v1504
      %v1925 = vpack.c.b16 %v1509, %v1505
      %v1926 = vpack.c.b16 %v1510, %v1506
      %v1927 = vpack.c.b16 %v1511, %v1507
      %v1928 = vpack.c.b16 %v1516, %v1512
      %v1929 = vpack.c.b16 %v1517, %v1513
      %v1930 = vpack.c.b16 %v1518, %v1514
      %v1931 = vpack.c.b16 %v1519, %v1515
      %v1932 = vpack.c.b16 %v1524, %v1520
      %v1933 = vpack.c.b16 %v1525, %v1521
      %v1934 = vpack.c.b16 %v1526, %v1522
      %v1935 = vpack.c.b16 %v1527, %v1523
      %v1936 = vpack.c.b16 %v1532, %v1528
      %v1937 = vpack.c.b16 %v1533, %v1529
      %v1938 = vpack.c.b16 %v1534, %v1530
      %v1939 = vpack.c.b16 %v1535, %v1531
      %v1940 = vpack.c.b16 %v1540, %v1536
      %v1941 = vpack.c.b16 %v1541, %v1537
      %v1942 = vpack.c.b16 %v1542, %v1538
      %v1943 = vpack.c.b16 %v1543, %v1539
      %v1944 = vpack.c.b16 %v1548, %v1544
      %v1945 = vpack.c.b16 %v1549, %v1545
      %v1946 = vpack.c.b16 %v1550, %v1546
      %v1947 = vpack.c.b16 %v1551, %v1547
      %v1948 = vpack.c.b16 %v1556, %v1552
      %v1949 = vpack.c.b16 %v1557, %v1553
      %v1950 = vpack.c.b16 %v1558, %v1554
      %v1951 = vpack.c.b16 %v1559, %v1555
      %v1952 = vpack.c.b16 %v1564, %v1560
      %v1953 = vpack.c.b16 %v1565, %v1561
      %v1954 = vpack.c.b16 %v1566, %v1562
      %v1955 = vpack.c.b16 %v1567, %v1563
      %v1956 = vpack.c.b16 %v1572, %v1568
      %v1957 = vpack.c.b16 %v1573, %v1569
      %v1958 = vpack.c.b16 %v1574, %v1570
      %v1959 = vpack.c.b16 %v1575, %v1571
      %v1960 = vpack.c.b16 %v1580, %v1576
      %v1961 = vpack.c.b16 %v1581, %v1577
      %v1962 = vpack.c.b16 %v1582, %v1578
      %v1963 = vpack.c.b16 %v1583, %v1579
      %v1964 = vpack.c.b16 %v1588, %v1584
      %v1965 = vpack.c.b16 %v1589, %v1585
      %v1966 = vpack.c.b16 %v1590, %v1586
      %v1967 = vpack.c.b16 %v1591, %v1587
      %v1968 = vpack.c.b16 %v1596, %v1592
      %v1969 = vpack.c.b16 %v1597, %v1593
      %v1970 = vpack.c.b16 %v1598, %v1594
      %v1971 = vpack.c.b16 %v1599, %v1595
      %v1972 = vpack.c.b16 %v1604, %v1600
      %v1973 = vpack.c.b16 %v1605, %v1601
      %v1974 = vpack.c.b16 %v1606, %v1602
      %v1975 = vpack.c.b16 %v1607, %v1603
      %v1976 = vpack.c.b16 %v1612, %v1608
      %v1977 = vpack.c.b16 %v1613, %v1609
      %v1978 = vpack.c.b16 %v1614, %v1610
      %v1979 = vpack.c.b16 %v1615, %v1611
      %v1980 = vpack.c.b16 %v1620, %v1616
      %v1981 = vpack.c.b16 %v1621, %v1617
      %v1982 = vpack.c.b16 %v1622, %v1618
      %v1983 = vpack.c.b16 %v1623, %v1619
      %v1984 = vpack.c.b16 %v1628, %v1624
      %v1985 = vpack.c.b16 %v1629, %v1625
      %v1986 = vpack.c.b16 %v1630, %v1626
      %v1987 = vpack.c.b16 %v1631, %v1627
      %v1988 = vpack.c.b16 %v1636, %v1632
      %v1989 = vpack.c.b16 %v1637, %v1633
      %v1990 = vpack.c.b16 %v1638, %v1634
      %v1991 = vpack.c.b16 %v1639, %v1635
      %v1992 = vpack.c.b16 %v1644, %v1640
      %v1993 = vpack.c.b16 %v1645, %v1641
      %v1994 = vpack.c.b16 %v1646, %v1642
      %v1995 = vpack.c.b16 %v1647, %v1643
      %v1996 = vpack.c.b16 %v1652, %v1648
      %v1997 = vpack.c.b16 %v1653, %v1649
      %v1998 = vpack.c.b16 %v1654, %v1650
      %v1999 = vpack.c.b16 %v1655, %v1651
      %v2000 = vpack.c.b16 %v1660, %v1656
      %v2001 = vpack.c.b16 %v1661, %v1657
      %v2002 = vpack.c.b16 %v1662, %v1658
      %v2003 = vpack.c.b16 %v1663, %v1659
      %v2004 = vpack.c.b16 %v1668, %v1664
      %v2005 = vpack.c.b16 %v1669, %v1665
      %v2006 = vpack.c.b16 %v1670, %v1666
      %v2007 = vpack.c.b16 %v1671, %v1667
      %v2008 = vpack.c.b16 %v1676, %v1672
      %v2009 = vpack.c.b16 %v1677, %v1673
      %v2010 = vpack.c.b16 %v1678, %v1674
      %v2011 = vpack.c.b16 %v1679, %v1675
      %v2012 = vpack.c.b16 %v1684, %v1680
      %v2013 = vpack.c.b16 %v1685, %v1681
      %v2014 = vpack.c.b16 %v1686, %v1682
      %v2015 = vpack.c.b16 %v1687, %v1683
      %v2016 = vpack.c.b16 %v1692, %v1688
      %v2017 = vpack.c.b16 %v1693, %v1689
      %v2018 = vpack.c.b16 %v1694, %v1690
      %v2019 = vpack.c.b16 %v1695, %v1691
      %v2020 = vpack.c.b16 %v1700, %v1696
      %v2021 = vpack.c.b16 %v1701, %v1697
      %v2022 = vpack.c.b16 %v1702, %v1698
      %v2023 = vpack.c.b16 %v1703, %v1699
      %v2024 = vpack.c.b16 %v1708, %v1704
      %v2025 = vpack.c.b16 %v1709, %v1705
      %v2026 = vpack.c.b16 %v1710, %v1706
      %v2027 = vpack.c.b16 %v1711, %v1707
      %v2028 = vpack.c.b16 %v1716, %v1712
      %v2029 = vpack.c.b16 %v1717, %v1713
      %v2030 = vpack.c.b16 %v1718, %v1714
      %v2031 = vpack.c.b16 %v1719, %v1715
      %v2032 = vpack.c.b16 %v1724, %v1720
      %v2033 = vpack.c.b16 %v1725, %v1721
      %v2034 = vpack.c.b16 %v1726, %v1722
      %v2035 = vpack.c.b16 %v1727, %v1723
      %v2036 = vpack.c.b16 %v1732, %v1728
      %v2037 = vpack.c.b16 %v1733, %v1729
      %v2038 = vpack.c.b16 %v1734, %v1730
      %v2039 = vpack.c.b16 %v1735, %v1731
      %v2040 = vpack.c.b16 %v1740, %v1736
      %v2041 = vpack.c.b16 %v1741, %v1737
      %v2042 = vpack.c.b16 %v1742, %v1738
      %v2043 = vpack.c.b16 %v1743, %v1739
      %v2044 = vpack.c.b16 %v1748, %v1744
      %v2045 = vpack.c.b16 %v1749, %v1745
      %v2046 = vpack.c.b16 %v1750, %v1746
      %v2047 = vpack.c.b16 %v1751, %v1747
      %v2048 = vpack.c.b16 %v1756, %v1752
      %v2049 = vpack.c.b16 %v1757, %v1753
      %v2050 = vpack.c.b16 %v1758, %v1754
      %v2051 = vpack.c.b16 %v1759, %v1755
      %v2052 = vpack.c.b16 %v1764, %v1760
      %v2053 = vpack.c.b16 %v1765, %v1761
      %v2054 = vpack.c.b16 %v1766, %v1762
      %v2055 = vpack.c.b16 %v1767, %v1763
      %v2056 = vpack.c.b16 %v1772, %v1768
      %v2057 = vpack.c.b16 %v1773, %v1769
      %v2058 = vpack.c.b16 %v1774, %v1770
      %v2059 = vpack.c.b16 %v1775, %v1771
      %v2060 = vpack.c.b16 %v1780, %v1776
      %v2061 = vpack.c.b16 %v1781, %v1777
      %v2062 = vpack.c.b16 %v1782, %v1778
      %v2063 = vpack.c.b16 %v1783, %v1779
      %v2064 = vpack.c.b16 %v1788, %v1784
      %v2065 = vpack.c.b16 %v1789, %v1785
      %v2066 = vpack.c.b16 %v1790, %v1786
      %v2067 = vpack.c.b16 %v1791, %v1787
      %v2068 = vpack.c.b16 %v1796, %v1792
      %v2069 = vpack.c.b16 %v1797, %v1793
      %v2070 = vpack.c.b16 %v1798, %v1794
      %v2071 = vpack.c.b16 %v1799, %v1795
      %v2072 = vpack.c.b16 %v1804, %v1800
      %v2073 = vpack.c.b16 %v1805, %v1801
      %v2074 = vpack.c.b16 %v1806, %v1802
      %v2075 = vpack.c.b16 %v1807, %v1803
      %v2076 = vpack.c.b16 %v1812, %v1808
      %v2077 = vpack.c.b16 %v1813, %v1809
      %v2078 = vpack.c.b16 %v1814, %v1810
      %v2079 = vpack.c.b16 %v1815, %v1811
      %v2080 = vpack.c.b16 %v1820, %v1816
      %v2081 = vpack.c.b16 %v1821, %v1817
      %v2082 = vpack.c.b16 %v1822, %v1818
      %v2083 = vpack.c.b16 %v1823, %v1819
      %v2084 = vpack.c.b16 %v1828, %v1824
      %v2085 = vpack.c.b16 %v1829, %v1825
      %v2086 = vpack.c.b16 %v1830, %v1826
      %v2087 = vpack.c.b16 %v1831, %v1827
      %v2088 = vpack.c.b16 %v1836, %v1832
      %v2089 = vpack.c.b16 %v1837, %v1833
      %v2090 = vpack.c.b16 %v1838, %v1834
      %v2091 = vpack.c.b16 %v1839, %v1835
      %v2092 = vpack.c.b16 %v1844, %v1840
      %v2093 = vpack.c.b16 %v1845, %v1841
      %v2094 = vpack.c.b16 %v1846, %v1842
      %v2095 = vpack.c.b16 %v1847, %v1843
      %v2096 = vpack.c.b16 %v1852, %v1848
      %v2097 = vpack.c.b16 %v1853, %v1849
      %v2098 = vpack.c.b16 %v1854, %v1850
      %v2099 = vpack.c.b16 %v1855, %v1851
      %v2100 = vpack.c.b16 %v1860, %v1856
      %v2101 = vpack.c.b16 %v1861, %v1857
      %v2102 = vpack.c.b16 %v1862, %v1858
      %v2103 = vpack.c.b16 %v1863, %v1859
      %v2104 = vpack.c.b16 %v1868, %v1864
      %v2105 = vpack.c.b16 %v1869, %v1865
      %v2106 = vpack.c.b16 %v1870, %v1866
      %v2107 = vpack.c.b16 %v1871, %v1867
      %v2108 = vpack.c.b16 %v1876, %v1872
      %v2109 = vpack.c.b16 %v1877, %v1873
      %v2110 = vpack.c.b16 %v1878, %v1874
      %v2111 = vpack.c.b16 %v1879, %v1875
      %v2112 = vpack.c.b16 %v1884, %v1880
      %v2113 = vpack.c.b16 %v1885, %v1881
      %v2114 = vpack.c.b16 %v1886, %v1882
      %v2115 = vpack.c.b16 %v1887, %v1883
      %v2116 = vpack.c.b16 %v1892, %v1888
      %v2117 = vpack.c.b16 %v1893, %v1889
      %v2118 = vpack.c.b16 %v1894, %v1890
      %v2119 = vpack.c.b16 %v1895, %v1891
      %2344 = vmatpush.bf16.msra.mxu0 %v1924
      %2345 = vmatpush.bf16.msra.mxu0 %v1920
      %2346 = vmatpush.bf16.msra.mxu0 %v1916
      %2347 = vmatpush.bf16.msra.mxu0 %v1912
      %2348 = vmatpush.bf16.msra.mxu0 %v1908
      %2349 = vmatpush.bf16.msra.mxu0 %v1904
      %2350 = vmatpush.bf16.msra.mxu0 %v1900
      %2351 = vmatpush.bf16.msra.mxu0 %v1896
      %2352 = vmatmul.bf16.gmra.mxu0 %v1000
      %v2353 = vpop.f32.mrf.mxu0
      %v2354 = vadd.f32 %v640, %v2353
      %v2355 = vpop.f32.mrf.mxu0
      %v2356 = vadd.f32 %v640, %v2355
      %2357 = vmatmul.bf16.gmra.mxu0 %v1007
      %v2358 = vpop.f32.mrf.mxu0
      %v2359 = vadd.f32 %v640, %v2358
      %v2360 = vpop.f32.mrf.mxu0
      %v2361 = vadd.f32 %v640, %v2360
      %2362 = vmatmul.bf16.gmra.mxu0 %v1014
      %v2363 = vpop.f32.mrf.mxu0
      %v2364 = vadd.f32 %v640, %v2363
      %v2365 = vpop.f32.mrf.mxu0
      %v2366 = vadd.f32 %v640, %v2365
      %2367 = vmatmul.bf16.gmra.mxu0 %v1021
      %v2368 = vpop.f32.mrf.mxu0
      %v2369 = vadd.f32 %v640, %v2368
      %v2370 = vpop.f32.mrf.mxu0
      %v2371 = vadd.f32 %v640, %v2370
      %2372 = vmatmul.bf16.gmra.mxu0 %v1028
      %v2373 = vpop.f32.mrf.mxu0
      %v2374 = vadd.f32 %v640, %v2373
      %v2375 = vpop.f32.mrf.mxu0
      %v2376 = vadd.f32 %v640, %v2375
      %2377 = vmatmul.bf16.gmra.mxu0 %v1035
      %v2378 = vpop.f32.mrf.mxu0
      %v2379 = vadd.f32 %v640, %v2378
      %v2380 = vpop.f32.mrf.mxu0
      %v2381 = vadd.f32 %v640, %v2380
      %2382 = vmatmul.bf16.gmra.mxu0 %v1042
      %v2383 = vpop.f32.mrf.mxu0
      %v2384 = vadd.f32 %v640, %v2383
      %v2385 = vpop.f32.mrf.mxu0
      %v2386 = vadd.f32 %v640, %v2385
      %2387 = vmatmul.bf16.gmra.mxu0 %v1049
      %v2388 = vpop.f32.mrf.mxu0
      %v2389 = vadd.f32 %v640, %v2388
      %v2390 = vpop.f32.mrf.mxu0
      %v2391 = vadd.f32 %v640, %v2390
      %2392 = vmatmul.bf16.gmra.mxu0 %v1056
      %v2393 = vpop.f32.mrf.mxu0
      %v2394 = vadd.f32 %v640, %v2393
      %v2395 = vpop.f32.mrf.mxu0
      %v2396 = vadd.f32 %v640, %v2395
      %2397 = vmatmul.bf16.gmra.mxu0 %v1063
      %v2398 = vpop.f32.mrf.mxu0
      %v2399 = vadd.f32 %v640, %v2398
      %v2400 = vpop.f32.mrf.mxu0
      %v2401 = vadd.f32 %v640, %v2400
      %2402 = vmatmul.bf16.gmra.mxu0 %v1070
      %v2403 = vpop.f32.mrf.mxu0
      %v2404 = vadd.f32 %v640, %v2403
      %v2405 = vpop.f32.mrf.mxu0
      %v2406 = vadd.f32 %v640, %v2405
      %2407 = vmatmul.bf16.gmra.mxu0 %v1077
      %v2408 = vpop.f32.mrf.mxu0
      %v2409 = vadd.f32 %v640, %v2408
      %v2410 = vpop.f32.mrf.mxu0
      %v2411 = vadd.f32 %v640, %v2410
      %2412 = vmatmul.bf16.gmra.mxu0 %v1084
      %v2413 = vpop.f32.mrf.mxu0
      %v2414 = vadd.f32 %v640, %v2413
      %v2415 = vpop.f32.mrf.mxu0
      %v2416 = vadd.f32 %v640, %v2415
      %2417 = vmatmul.bf16.gmra.mxu0 %v1091
      %v2418 = vpop.f32.mrf.mxu0
      %v2419 = vadd.f32 %v640, %v2418
      %v2420 = vpop.f32.mrf.mxu0
      %v2421 = vadd.f32 %v640, %v2420
      %2422 = vmatmul.bf16.gmra.mxu0 %v1098
      %v2423 = vpop.f32.mrf.mxu0
      %v2424 = vadd.f32 %v640, %v2423
      %v2425 = vpop.f32.mrf.mxu0
      %v2426 = vadd.f32 %v640, %v2425
      %2427 = vmatmul.bf16.gmra.mxu0 %v1105
      %v2428 = vpop.f32.mrf.mxu0
      %v2429 = vadd.f32 %v640, %v2428
      %v2430 = vpop.f32.mrf.mxu0
      %v2431 = vadd.f32 %v640, %v2430
      %2432 = vdwg.mxu0
      %2433 = vmatpush.bf16.msra.mxu0 %v1956
      %2434 = vmatpush.bf16.msra.mxu0 %v1952
      %2435 = vmatpush.bf16.msra.mxu0 %v1948
      %2436 = vmatpush.bf16.msra.mxu0 %v1944
      %2437 = vmatpush.bf16.msra.mxu0 %v1940
      %2438 = vmatpush.bf16.msra.mxu0 %v1936
      %2439 = vmatpush.bf16.msra.mxu0 %v1932
      %2440 = vmatpush.bf16.msra.mxu0 %v1928
      %2441 = vmatmul.bf16.gmra.mxu0 %v1001
      %v2442 = vpop.f32.mrf.mxu0
      %v2443 = vadd.f32 %v2354, %v2442
      %v2444 = vpop.f32.mrf.mxu0
      %v2445 = vadd.f32 %v2356, %v2444
      %2446 = vmatmul.bf16.gmra.mxu0 %v1008
      %v2447 = vpop.f32.mrf.mxu0
      %v2448 = vadd.f32 %v2359, %v2447
      %v2449 = vpop.f32.mrf.mxu0
      %v2450 = vadd.f32 %v2361, %v2449
      %2451 = vmatmul.bf16.gmra.mxu0 %v1015
      %v2452 = vpop.f32.mrf.mxu0
      %v2453 = vadd.f32 %v2364, %v2452
      %v2454 = vpop.f32.mrf.mxu0
      %v2455 = vadd.f32 %v2366, %v2454
      %2456 = vmatmul.bf16.gmra.mxu0 %v1022
      %v2457 = vpop.f32.mrf.mxu0
      %v2458 = vadd.f32 %v2369, %v2457
      %v2459 = vpop.f32.mrf.mxu0
      %v2460 = vadd.f32 %v2371, %v2459
      %2461 = vmatmul.bf16.gmra.mxu0 %v1029
      %v2462 = vpop.f32.mrf.mxu0
      %v2463 = vadd.f32 %v2374, %v2462
      %v2464 = vpop.f32.mrf.mxu0
      %v2465 = vadd.f32 %v2376, %v2464
      %2466 = vmatmul.bf16.gmra.mxu0 %v1036
      %v2467 = vpop.f32.mrf.mxu0
      %v2468 = vadd.f32 %v2379, %v2467
      %v2469 = vpop.f32.mrf.mxu0
      %v2470 = vadd.f32 %v2381, %v2469
      %2471 = vmatmul.bf16.gmra.mxu0 %v1043
      %v2472 = vpop.f32.mrf.mxu0
      %v2473 = vadd.f32 %v2384, %v2472
      %v2474 = vpop.f32.mrf.mxu0
      %v2475 = vadd.f32 %v2386, %v2474
      %2476 = vmatmul.bf16.gmra.mxu0 %v1050
      %v2477 = vpop.f32.mrf.mxu0
      %v2478 = vadd.f32 %v2389, %v2477
      %v2479 = vpop.f32.mrf.mxu0
      %v2480 = vadd.f32 %v2391, %v2479
      %2481 = vmatmul.bf16.gmra.mxu0 %v1057
      %v2482 = vpop.f32.mrf.mxu0
      %v2483 = vadd.f32 %v2394, %v2482
      %v2484 = vpop.f32.mrf.mxu0
      %v2485 = vadd.f32 %v2396, %v2484
      %2486 = vmatmul.bf16.gmra.mxu0 %v1064
      %v2487 = vpop.f32.mrf.mxu0
      %v2488 = vadd.f32 %v2399, %v2487
      %v2489 = vpop.f32.mrf.mxu0
      %v2490 = vadd.f32 %v2401, %v2489
      %2491 = vmatmul.bf16.gmra.mxu0 %v1071
      %v2492 = vpop.f32.mrf.mxu0
      %v2493 = vadd.f32 %v2404, %v2492
      %v2494 = vpop.f32.mrf.mxu0
      %v2495 = vadd.f32 %v2406, %v2494
      %2496 = vmatmul.bf16.gmra.mxu0 %v1078
      %v2497 = vpop.f32.mrf.mxu0
      %v2498 = vadd.f32 %v2409, %v2497
      %v2499 = vpop.f32.mrf.mxu0
      %v2500 = vadd.f32 %v2411, %v2499
      %2501 = vmatmul.bf16.gmra.mxu0 %v1085
      %v2502 = vpop.f32.mrf.mxu0
      %v2503 = vadd.f32 %v2414, %v2502
      %v2504 = vpop.f32.mrf.mxu0
      %v2505 = vadd.f32 %v2416, %v2504
      %2506 = vmatmul.bf16.gmra.mxu0 %v1092
      %v2507 = vpop.f32.mrf.mxu0
      %v2508 = vadd.f32 %v2419, %v2507
      %v2509 = vpop.f32.mrf.mxu0
      %v2510 = vadd.f32 %v2421, %v2509
      %2511 = vmatmul.bf16.gmra.mxu0 %v1099
      %v2512 = vpop.f32.mrf.mxu0
      %v2513 = vadd.f32 %v2424, %v2512
      %v2514 = vpop.f32.mrf.mxu0
      %v2515 = vadd.f32 %v2426, %v2514
      %2516 = vmatmul.bf16.gmra.mxu0 %v1106
      %v2517 = vpop.f32.mrf.mxu0
      %v2518 = vadd.f32 %v2429, %v2517
      %v2519 = vpop.f32.mrf.mxu0
      %v2520 = vadd.f32 %v2431, %v2519
      %2521 = vdwg.mxu0
      %2522 = vmatpush.bf16.msra.mxu0 %v1988
      %2523 = vmatpush.bf16.msra.mxu0 %v1984
      %2524 = vmatpush.bf16.msra.mxu0 %v1980
      %2525 = vmatpush.bf16.msra.mxu0 %v1976
      %2526 = vmatpush.bf16.msra.mxu0 %v1972
      %2527 = vmatpush.bf16.msra.mxu0 %v1968
      %2528 = vmatpush.bf16.msra.mxu0 %v1964
      %2529 = vmatpush.bf16.msra.mxu0 %v1960
      %2530 = vmatmul.bf16.gmra.mxu0 %v1002
      %v2531 = vpop.f32.mrf.mxu0
      %v2532 = vadd.f32 %v2443, %v2531
      %v2533 = vpop.f32.mrf.mxu0
      %v2534 = vadd.f32 %v2445, %v2533
      %2535 = vmatmul.bf16.gmra.mxu0 %v1009
      %v2536 = vpop.f32.mrf.mxu0
      %v2537 = vadd.f32 %v2448, %v2536
      %v2538 = vpop.f32.mrf.mxu0
      %v2539 = vadd.f32 %v2450, %v2538
      %2540 = vmatmul.bf16.gmra.mxu0 %v1016
      %v2541 = vpop.f32.mrf.mxu0
      %v2542 = vadd.f32 %v2453, %v2541
      %v2543 = vpop.f32.mrf.mxu0
      %v2544 = vadd.f32 %v2455, %v2543
      %2545 = vmatmul.bf16.gmra.mxu0 %v1023
      %v2546 = vpop.f32.mrf.mxu0
      %v2547 = vadd.f32 %v2458, %v2546
      %v2548 = vpop.f32.mrf.mxu0
      %v2549 = vadd.f32 %v2460, %v2548
      %2550 = vmatmul.bf16.gmra.mxu0 %v1030
      %v2551 = vpop.f32.mrf.mxu0
      %v2552 = vadd.f32 %v2463, %v2551
      %v2553 = vpop.f32.mrf.mxu0
      %v2554 = vadd.f32 %v2465, %v2553
      %2555 = vmatmul.bf16.gmra.mxu0 %v1037
      %v2556 = vpop.f32.mrf.mxu0
      %v2557 = vadd.f32 %v2468, %v2556
      %v2558 = vpop.f32.mrf.mxu0
      %v2559 = vadd.f32 %v2470, %v2558
      %2560 = vmatmul.bf16.gmra.mxu0 %v1044
      %v2561 = vpop.f32.mrf.mxu0
      %v2562 = vadd.f32 %v2473, %v2561
      %v2563 = vpop.f32.mrf.mxu0
      %v2564 = vadd.f32 %v2475, %v2563
      %2565 = vmatmul.bf16.gmra.mxu0 %v1051
      %v2566 = vpop.f32.mrf.mxu0
      %v2567 = vadd.f32 %v2478, %v2566
      %v2568 = vpop.f32.mrf.mxu0
      %v2569 = vadd.f32 %v2480, %v2568
      %2570 = vmatmul.bf16.gmra.mxu0 %v1058
      %v2571 = vpop.f32.mrf.mxu0
      %v2572 = vadd.f32 %v2483, %v2571
      %v2573 = vpop.f32.mrf.mxu0
      %v2574 = vadd.f32 %v2485, %v2573
      %2575 = vmatmul.bf16.gmra.mxu0 %v1065
      %v2576 = vpop.f32.mrf.mxu0
      %v2577 = vadd.f32 %v2488, %v2576
      %v2578 = vpop.f32.mrf.mxu0
      %v2579 = vadd.f32 %v2490, %v2578
      %2580 = vmatmul.bf16.gmra.mxu0 %v1072
      %v2581 = vpop.f32.mrf.mxu0
      %v2582 = vadd.f32 %v2493, %v2581
      %v2583 = vpop.f32.mrf.mxu0
      %v2584 = vadd.f32 %v2495, %v2583
      %2585 = vmatmul.bf16.gmra.mxu0 %v1079
      %v2586 = vpop.f32.mrf.mxu0
      %v2587 = vadd.f32 %v2498, %v2586
      %v2588 = vpop.f32.mrf.mxu0
      %v2589 = vadd.f32 %v2500, %v2588
      %2590 = vmatmul.bf16.gmra.mxu0 %v1086
      %v2591 = vpop.f32.mrf.mxu0
      %v2592 = vadd.f32 %v2503, %v2591
      %v2593 = vpop.f32.mrf.mxu0
      %v2594 = vadd.f32 %v2505, %v2593
      %2595 = vmatmul.bf16.gmra.mxu0 %v1093
      %v2596 = vpop.f32.mrf.mxu0
      %v2597 = vadd.f32 %v2508, %v2596
      %v2598 = vpop.f32.mrf.mxu0
      %v2599 = vadd.f32 %v2510, %v2598
      %2600 = vmatmul.bf16.gmra.mxu0 %v1100
      %v2601 = vpop.f32.mrf.mxu0
      %v2602 = vadd.f32 %v2513, %v2601
      %v2603 = vpop.f32.mrf.mxu0
      %v2604 = vadd.f32 %v2515, %v2603
      %2605 = vmatmul.bf16.gmra.mxu0 %v1107
      %v2606 = vpop.f32.mrf.mxu0
      %v2607 = vadd.f32 %v2518, %v2606
      %v2608 = vpop.f32.mrf.mxu0
      %v2609 = vadd.f32 %v2520, %v2608
      %2610 = vdwg.mxu0
      %2611 = vmatpush.bf16.msra.mxu0 %v2020
      %2612 = vmatpush.bf16.msra.mxu0 %v2016
      %2613 = vmatpush.bf16.msra.mxu0 %v2012
      %2614 = vmatpush.bf16.msra.mxu0 %v2008
      %2615 = vmatpush.bf16.msra.mxu0 %v2004
      %2616 = vmatpush.bf16.msra.mxu0 %v2000
      %2617 = vmatpush.bf16.msra.mxu0 %v1996
      %2618 = vmatpush.bf16.msra.mxu0 %v1992
      %2619 = vmatmul.bf16.gmra.mxu0 %v1003
      %v2620 = vpop.f32.mrf.mxu0
      %v2621 = vadd.f32 %v2532, %v2620
      %v2622 = vpop.f32.mrf.mxu0
      %v2623 = vadd.f32 %v2534, %v2622
      %2624 = vmatmul.bf16.gmra.mxu0 %v1010
      %v2625 = vpop.f32.mrf.mxu0
      %v2626 = vadd.f32 %v2537, %v2625
      %v2627 = vpop.f32.mrf.mxu0
      %v2628 = vadd.f32 %v2539, %v2627
      %2629 = vmatmul.bf16.gmra.mxu0 %v1017
      %v2630 = vpop.f32.mrf.mxu0
      %v2631 = vadd.f32 %v2542, %v2630
      %v2632 = vpop.f32.mrf.mxu0
      %v2633 = vadd.f32 %v2544, %v2632
      %2634 = vmatmul.bf16.gmra.mxu0 %v1024
      %v2635 = vpop.f32.mrf.mxu0
      %v2636 = vadd.f32 %v2547, %v2635
      %v2637 = vpop.f32.mrf.mxu0
      %v2638 = vadd.f32 %v2549, %v2637
      %2639 = vmatmul.bf16.gmra.mxu0 %v1031
      %v2640 = vpop.f32.mrf.mxu0
      %v2641 = vadd.f32 %v2552, %v2640
      %v2642 = vpop.f32.mrf.mxu0
      %v2643 = vadd.f32 %v2554, %v2642
      %2644 = vmatmul.bf16.gmra.mxu0 %v1038
      %v2645 = vpop.f32.mrf.mxu0
      %v2646 = vadd.f32 %v2557, %v2645
      %v2647 = vpop.f32.mrf.mxu0
      %v2648 = vadd.f32 %v2559, %v2647
      %2649 = vmatmul.bf16.gmra.mxu0 %v1045
      %v2650 = vpop.f32.mrf.mxu0
      %v2651 = vadd.f32 %v2562, %v2650
      %v2652 = vpop.f32.mrf.mxu0
      %v2653 = vadd.f32 %v2564, %v2652
      %2654 = vmatmul.bf16.gmra.mxu0 %v1052
      %v2655 = vpop.f32.mrf.mxu0
      %v2656 = vadd.f32 %v2567, %v2655
      %v2657 = vpop.f32.mrf.mxu0
      %v2658 = vadd.f32 %v2569, %v2657
      %2659 = vmatmul.bf16.gmra.mxu0 %v1059
      %v2660 = vpop.f32.mrf.mxu0
      %v2661 = vadd.f32 %v2572, %v2660
      %v2662 = vpop.f32.mrf.mxu0
      %v2663 = vadd.f32 %v2574, %v2662
      %2664 = vmatmul.bf16.gmra.mxu0 %v1066
      %v2665 = vpop.f32.mrf.mxu0
      %v2666 = vadd.f32 %v2577, %v2665
      %v2667 = vpop.f32.mrf.mxu0
      %v2668 = vadd.f32 %v2579, %v2667
      %2669 = vmatmul.bf16.gmra.mxu0 %v1073
      %v2670 = vpop.f32.mrf.mxu0
      %v2671 = vadd.f32 %v2582, %v2670
      %v2672 = vpop.f32.mrf.mxu0
      %v2673 = vadd.f32 %v2584, %v2672
      %2674 = vmatmul.bf16.gmra.mxu0 %v1080
      %v2675 = vpop.f32.mrf.mxu0
      %v2676 = vadd.f32 %v2587, %v2675
      %v2677 = vpop.f32.mrf.mxu0
      %v2678 = vadd.f32 %v2589, %v2677
      %2679 = vmatmul.bf16.gmra.mxu0 %v1087
      %v2680 = vpop.f32.mrf.mxu0
      %v2681 = vadd.f32 %v2592, %v2680
      %v2682 = vpop.f32.mrf.mxu0
      %v2683 = vadd.f32 %v2594, %v2682
      %2684 = vmatmul.bf16.gmra.mxu0 %v1094
      %v2685 = vpop.f32.mrf.mxu0
      %v2686 = vadd.f32 %v2597, %v2685
      %v2687 = vpop.f32.mrf.mxu0
      %v2688 = vadd.f32 %v2599, %v2687
      %2689 = vmatmul.bf16.gmra.mxu0 %v1101
      %v2690 = vpop.f32.mrf.mxu0
      %v2691 = vadd.f32 %v2602, %v2690
      %v2692 = vpop.f32.mrf.mxu0
      %v2693 = vadd.f32 %v2604, %v2692
      %2694 = vmatmul.bf16.gmra.mxu0 %v1108
      %v2695 = vpop.f32.mrf.mxu0
      %v2696 = vadd.f32 %v2607, %v2695
      %v2697 = vpop.f32.mrf.mxu0
      %v2698 = vadd.f32 %v2609, %v2697
      %2699 = vdwg.mxu0
      %2700 = vmatpush.bf16.msra.mxu0 %v2052
      %2701 = vmatpush.bf16.msra.mxu0 %v2048
      %2702 = vmatpush.bf16.msra.mxu0 %v2044
      %2703 = vmatpush.bf16.msra.mxu0 %v2040
      %2704 = vmatpush.bf16.msra.mxu0 %v2036
      %2705 = vmatpush.bf16.msra.mxu0 %v2032
      %2706 = vmatpush.bf16.msra.mxu0 %v2028
      %2707 = vmatpush.bf16.msra.mxu0 %v2024
      %2708 = vmatmul.bf16.gmra.mxu0 %v1004
      %v2709 = vpop.f32.mrf.mxu0
      %v2710 = vadd.f32 %v2621, %v2709
      %v2711 = vpop.f32.mrf.mxu0
      %v2712 = vadd.f32 %v2623, %v2711
      %2713 = vmatmul.bf16.gmra.mxu0 %v1011
      %v2714 = vpop.f32.mrf.mxu0
      %v2715 = vadd.f32 %v2626, %v2714
      %v2716 = vpop.f32.mrf.mxu0
      %v2717 = vadd.f32 %v2628, %v2716
      %2718 = vmatmul.bf16.gmra.mxu0 %v1018
      %v2719 = vpop.f32.mrf.mxu0
      %v2720 = vadd.f32 %v2631, %v2719
      %v2721 = vpop.f32.mrf.mxu0
      %v2722 = vadd.f32 %v2633, %v2721
      %2723 = vmatmul.bf16.gmra.mxu0 %v1025
      %v2724 = vpop.f32.mrf.mxu0
      %v2725 = vadd.f32 %v2636, %v2724
      %v2726 = vpop.f32.mrf.mxu0
      %v2727 = vadd.f32 %v2638, %v2726
      %2728 = vmatmul.bf16.gmra.mxu0 %v1032
      %v2729 = vpop.f32.mrf.mxu0
      %v2730 = vadd.f32 %v2641, %v2729
      %v2731 = vpop.f32.mrf.mxu0
      %v2732 = vadd.f32 %v2643, %v2731
      %2733 = vmatmul.bf16.gmra.mxu0 %v1039
      %v2734 = vpop.f32.mrf.mxu0
      %v2735 = vadd.f32 %v2646, %v2734
      %v2736 = vpop.f32.mrf.mxu0
      %v2737 = vadd.f32 %v2648, %v2736
      %2738 = vmatmul.bf16.gmra.mxu0 %v1046
      %v2739 = vpop.f32.mrf.mxu0
      %v2740 = vadd.f32 %v2651, %v2739
      %v2741 = vpop.f32.mrf.mxu0
      %v2742 = vadd.f32 %v2653, %v2741
      %2743 = vmatmul.bf16.gmra.mxu0 %v1053
      %v2744 = vpop.f32.mrf.mxu0
      %v2745 = vadd.f32 %v2656, %v2744
      %v2746 = vpop.f32.mrf.mxu0
      %v2747 = vadd.f32 %v2658, %v2746
      %2748 = vmatmul.bf16.gmra.mxu0 %v1060
      %v2749 = vpop.f32.mrf.mxu0
      %v2750 = vadd.f32 %v2661, %v2749
      %v2751 = vpop.f32.mrf.mxu0
      %v2752 = vadd.f32 %v2663, %v2751
      %2753 = vmatmul.bf16.gmra.mxu0 %v1067
      %v2754 = vpop.f32.mrf.mxu0
      %v2755 = vadd.f32 %v2666, %v2754
      %v2756 = vpop.f32.mrf.mxu0
      %v2757 = vadd.f32 %v2668, %v2756
      %2758 = vmatmul.bf16.gmra.mxu0 %v1074
      %v2759 = vpop.f32.mrf.mxu0
      %v2760 = vadd.f32 %v2671, %v2759
      %v2761 = vpop.f32.mrf.mxu0
      %v2762 = vadd.f32 %v2673, %v2761
      %2763 = vmatmul.bf16.gmra.mxu0 %v1081
      %v2764 = vpop.f32.mrf.mxu0
      %v2765 = vadd.f32 %v2676, %v2764
      %v2766 = vpop.f32.mrf.mxu0
      %v2767 = vadd.f32 %v2678, %v2766
      %2768 = vmatmul.bf16.gmra.mxu0 %v1088
      %v2769 = vpop.f32.mrf.mxu0
      %v2770 = vadd.f32 %v2681, %v2769
      %v2771 = vpop.f32.mrf.mxu0
      %v2772 = vadd.f32 %v2683, %v2771
      %2773 = vmatmul.bf16.gmra.mxu0 %v1095
      %v2774 = vpop.f32.mrf.mxu0
      %v2775 = vadd.f32 %v2686, %v2774
      %v2776 = vpop.f32.mrf.mxu0
      %v2777 = vadd.f32 %v2688, %v2776
      %2778 = vmatmul.bf16.gmra.mxu0 %v1102
      %v2779 = vpop.f32.mrf.mxu0
      %v2780 = vadd.f32 %v2691, %v2779
      %v2781 = vpop.f32.mrf.mxu0
      %v2782 = vadd.f32 %v2693, %v2781
      %2783 = vmatmul.bf16.gmra.mxu0 %v1109
      %v2784 = vpop.f32.mrf.mxu0
      %v2785 = vadd.f32 %v2696, %v2784
      %v2786 = vpop.f32.mrf.mxu0
      %v2787 = vadd.f32 %v2698, %v2786
      %2788 = vdwg.mxu0
      %2789 = vmatpush.bf16.msra.mxu0 %v2084
      %2790 = vmatpush.bf16.msra.mxu0 %v2080
      %2791 = vmatpush.bf16.msra.mxu0 %v2076
      %2792 = vmatpush.bf16.msra.mxu0 %v2072
      %2793 = vmatpush.bf16.msra.mxu0 %v2068
      %2794 = vmatpush.bf16.msra.mxu0 %v2064
      %2795 = vmatpush.bf16.msra.mxu0 %v2060
      %2796 = vmatpush.bf16.msra.mxu0 %v2056
      %2797 = vmatmul.bf16.gmra.mxu0 %v1005
      %v2798 = vpop.f32.mrf.mxu0
      %v2799 = vadd.f32 %v2710, %v2798
      %v2800 = vpop.f32.mrf.mxu0
      %v2801 = vadd.f32 %v2712, %v2800
      %2802 = vmatmul.bf16.gmra.mxu0 %v1012
      %v2803 = vpop.f32.mrf.mxu0
      %v2804 = vadd.f32 %v2715, %v2803
      %v2805 = vpop.f32.mrf.mxu0
      %v2806 = vadd.f32 %v2717, %v2805
      %2807 = vmatmul.bf16.gmra.mxu0 %v1019
      %v2808 = vpop.f32.mrf.mxu0
      %v2809 = vadd.f32 %v2720, %v2808
      %v2810 = vpop.f32.mrf.mxu0
      %v2811 = vadd.f32 %v2722, %v2810
      %2812 = vmatmul.bf16.gmra.mxu0 %v1026
      %v2813 = vpop.f32.mrf.mxu0
      %v2814 = vadd.f32 %v2725, %v2813
      %v2815 = vpop.f32.mrf.mxu0
      %v2816 = vadd.f32 %v2727, %v2815
      %2817 = vmatmul.bf16.gmra.mxu0 %v1033
      %v2818 = vpop.f32.mrf.mxu0
      %v2819 = vadd.f32 %v2730, %v2818
      %v2820 = vpop.f32.mrf.mxu0
      %v2821 = vadd.f32 %v2732, %v2820
      %2822 = vmatmul.bf16.gmra.mxu0 %v1040
      %v2823 = vpop.f32.mrf.mxu0
      %v2824 = vadd.f32 %v2735, %v2823
      %v2825 = vpop.f32.mrf.mxu0
      %v2826 = vadd.f32 %v2737, %v2825
      %2827 = vmatmul.bf16.gmra.mxu0 %v1047
      %v2828 = vpop.f32.mrf.mxu0
      %v2829 = vadd.f32 %v2740, %v2828
      %v2830 = vpop.f32.mrf.mxu0
      %v2831 = vadd.f32 %v2742, %v2830
      %2832 = vmatmul.bf16.gmra.mxu0 %v1054
      %v2833 = vpop.f32.mrf.mxu0
      %v2834 = vadd.f32 %v2745, %v2833
      %v2835 = vpop.f32.mrf.mxu0
      %v2836 = vadd.f32 %v2747, %v2835
      %2837 = vmatmul.bf16.gmra.mxu0 %v1061
      %v2838 = vpop.f32.mrf.mxu0
      %v2839 = vadd.f32 %v2750, %v2838
      %v2840 = vpop.f32.mrf.mxu0
      %v2841 = vadd.f32 %v2752, %v2840
      %2842 = vmatmul.bf16.gmra.mxu0 %v1068
      %v2843 = vpop.f32.mrf.mxu0
      %v2844 = vadd.f32 %v2755, %v2843
      %v2845 = vpop.f32.mrf.mxu0
      %v2846 = vadd.f32 %v2757, %v2845
      %2847 = vmatmul.bf16.gmra.mxu0 %v1075
      %v2848 = vpop.f32.mrf.mxu0
      %v2849 = vadd.f32 %v2760, %v2848
      %v2850 = vpop.f32.mrf.mxu0
      %v2851 = vadd.f32 %v2762, %v2850
      %2852 = vmatmul.bf16.gmra.mxu0 %v1082
      %v2853 = vpop.f32.mrf.mxu0
      %v2854 = vadd.f32 %v2765, %v2853
      %v2855 = vpop.f32.mrf.mxu0
      %v2856 = vadd.f32 %v2767, %v2855
      %2857 = vmatmul.bf16.gmra.mxu0 %v1089
      %v2858 = vpop.f32.mrf.mxu0
      %v2859 = vadd.f32 %v2770, %v2858
      %v2860 = vpop.f32.mrf.mxu0
      %v2861 = vadd.f32 %v2772, %v2860
      %2862 = vmatmul.bf16.gmra.mxu0 %v1096
      %v2863 = vpop.f32.mrf.mxu0
      %v2864 = vadd.f32 %v2775, %v2863
      %v2865 = vpop.f32.mrf.mxu0
      %v2866 = vadd.f32 %v2777, %v2865
      %2867 = vmatmul.bf16.gmra.mxu0 %v1103
      %v2868 = vpop.f32.mrf.mxu0
      %v2869 = vadd.f32 %v2780, %v2868
      %v2870 = vpop.f32.mrf.mxu0
      %v2871 = vadd.f32 %v2782, %v2870
      %2872 = vmatmul.bf16.gmra.mxu0 %v1110
      %v2873 = vpop.f32.mrf.mxu0
      %v2874 = vadd.f32 %v2785, %v2873
      %v2875 = vpop.f32.mrf.mxu0
      %v2876 = vadd.f32 %v2787, %v2875
      %2877 = vdwg.mxu0
      %2878 = vmatpush.bf16.msra.mxu0 %v2116
      %2879 = vmatpush.bf16.msra.mxu0 %v2112
      %2880 = vmatpush.bf16.msra.mxu0 %v2108
      %2881 = vmatpush.bf16.msra.mxu0 %v2104
      %2882 = vmatpush.bf16.msra.mxu0 %v2100
      %2883 = vmatpush.bf16.msra.mxu0 %v2096
      %2884 = vmatpush.bf16.msra.mxu0 %v2092
      %2885 = vmatpush.bf16.msra.mxu0 %v2088
      %2886 = vmatmul.bf16.gmra.mxu0 %v1006
      %v2887 = vpop.f32.mrf.mxu0
      %v2888 = vadd.f32 %v2799, %v2887
      %v2889 = vpop.f32.mrf.mxu0
      %v2890 = vadd.f32 %v2801, %v2889
      %2891 = vmatmul.bf16.gmra.mxu0 %v1013
      %v2892 = vpop.f32.mrf.mxu0
      %v2893 = vadd.f32 %v2804, %v2892
      %v2894 = vpop.f32.mrf.mxu0
      %v2895 = vadd.f32 %v2806, %v2894
      %2896 = vmatmul.bf16.gmra.mxu0 %v1020
      %v2897 = vpop.f32.mrf.mxu0
      %v2898 = vadd.f32 %v2809, %v2897
      %v2899 = vpop.f32.mrf.mxu0
      %v2900 = vadd.f32 %v2811, %v2899
      %2901 = vmatmul.bf16.gmra.mxu0 %v1027
      %v2902 = vpop.f32.mrf.mxu0
      %v2903 = vadd.f32 %v2814, %v2902
      %v2904 = vpop.f32.mrf.mxu0
      %v2905 = vadd.f32 %v2816, %v2904
      %2906 = vmatmul.bf16.gmra.mxu0 %v1034
      %v2907 = vpop.f32.mrf.mxu0
      %v2908 = vadd.f32 %v2819, %v2907
      %v2909 = vpop.f32.mrf.mxu0
      %v2910 = vadd.f32 %v2821, %v2909
      %2911 = vmatmul.bf16.gmra.mxu0 %v1041
      %v2912 = vpop.f32.mrf.mxu0
      %v2913 = vadd.f32 %v2824, %v2912
      %v2914 = vpop.f32.mrf.mxu0
      %v2915 = vadd.f32 %v2826, %v2914
      %2916 = vmatmul.bf16.gmra.mxu0 %v1048
      %v2917 = vpop.f32.mrf.mxu0
      %v2918 = vadd.f32 %v2829, %v2917
      %v2919 = vpop.f32.mrf.mxu0
      %v2920 = vadd.f32 %v2831, %v2919
      %2921 = vmatmul.bf16.gmra.mxu0 %v1055
      %v2922 = vpop.f32.mrf.mxu0
      %v2923 = vadd.f32 %v2834, %v2922
      %v2924 = vpop.f32.mrf.mxu0
      %v2925 = vadd.f32 %v2836, %v2924
      %2926 = vmatmul.bf16.gmra.mxu0 %v1062
      %v2927 = vpop.f32.mrf.mxu0
      %v2928 = vadd.f32 %v2839, %v2927
      %v2929 = vpop.f32.mrf.mxu0
      %v2930 = vadd.f32 %v2841, %v2929
      %2931 = vmatmul.bf16.gmra.mxu0 %v1069
      %v2932 = vpop.f32.mrf.mxu0
      %v2933 = vadd.f32 %v2844, %v2932
      %v2934 = vpop.f32.mrf.mxu0
      %v2935 = vadd.f32 %v2846, %v2934
      %2936 = vmatmul.bf16.gmra.mxu0 %v1076
      %v2937 = vpop.f32.mrf.mxu0
      %v2938 = vadd.f32 %v2849, %v2937
      %v2939 = vpop.f32.mrf.mxu0
      %v2940 = vadd.f32 %v2851, %v2939
      %2941 = vmatmul.bf16.gmra.mxu0 %v1083
      %v2942 = vpop.f32.mrf.mxu0
      %v2943 = vadd.f32 %v2854, %v2942
      %v2944 = vpop.f32.mrf.mxu0
      %v2945 = vadd.f32 %v2856, %v2944
      %2946 = vmatmul.bf16.gmra.mxu0 %v1090
      %v2947 = vpop.f32.mrf.mxu0
      %v2948 = vadd.f32 %v2859, %v2947
      %v2949 = vpop.f32.mrf.mxu0
      %v2950 = vadd.f32 %v2861, %v2949
      %2951 = vmatmul.bf16.gmra.mxu0 %v1097
      %v2952 = vpop.f32.mrf.mxu0
      %v2953 = vadd.f32 %v2864, %v2952
      %v2954 = vpop.f32.mrf.mxu0
      %v2955 = vadd.f32 %v2866, %v2954
      %2956 = vmatmul.bf16.gmra.mxu0 %v1104
      %v2957 = vpop.f32.mrf.mxu0
      %v2958 = vadd.f32 %v2869, %v2957
      %v2959 = vpop.f32.mrf.mxu0
      %v2960 = vadd.f32 %v2871, %v2959
      %2961 = vmatmul.bf16.gmra.mxu0 %v1111
      %v2962 = vpop.f32.mrf.mxu0
      %v2963 = vadd.f32 %v2874, %v2962
      %v2964 = vpop.f32.mrf.mxu0
      %v2965 = vadd.f32 %v2876, %v2964
      %2966 = vdwg.mxu0
      %2967 = vmatpush.bf16.msra.mxu0 %v1925
      %2968 = vmatpush.bf16.msra.mxu0 %v1921
      %2969 = vmatpush.bf16.msra.mxu0 %v1917
      %2970 = vmatpush.bf16.msra.mxu0 %v1913
      %2971 = vmatpush.bf16.msra.mxu0 %v1909
      %2972 = vmatpush.bf16.msra.mxu0 %v1905
      %2973 = vmatpush.bf16.msra.mxu0 %v1901
      %2974 = vmatpush.bf16.msra.mxu0 %v1897
      %2975 = vmatmul.bf16.gmra.mxu0 %v1000
      %v2976 = vpop.f32.mrf.mxu0
      %v2977 = vadd.f32 %v641, %v2976
      %v2978 = vpop.f32.mrf.mxu0
      %v2979 = vadd.f32 %v641, %v2978
      %2980 = vmatmul.bf16.gmra.mxu0 %v1007
      %v2981 = vpop.f32.mrf.mxu0
      %v2982 = vadd.f32 %v641, %v2981
      %v2983 = vpop.f32.mrf.mxu0
      %v2984 = vadd.f32 %v641, %v2983
      %2985 = vmatmul.bf16.gmra.mxu0 %v1014
      %v2986 = vpop.f32.mrf.mxu0
      %v2987 = vadd.f32 %v641, %v2986
      %v2988 = vpop.f32.mrf.mxu0
      %v2989 = vadd.f32 %v641, %v2988
      %2990 = vmatmul.bf16.gmra.mxu0 %v1021
      %v2991 = vpop.f32.mrf.mxu0
      %v2992 = vadd.f32 %v641, %v2991
      %v2993 = vpop.f32.mrf.mxu0
      %v2994 = vadd.f32 %v641, %v2993
      %2995 = vmatmul.bf16.gmra.mxu0 %v1028
      %v2996 = vpop.f32.mrf.mxu0
      %v2997 = vadd.f32 %v641, %v2996
      %v2998 = vpop.f32.mrf.mxu0
      %v2999 = vadd.f32 %v641, %v2998
      %3000 = vmatmul.bf16.gmra.mxu0 %v1035
      %v3001 = vpop.f32.mrf.mxu0
      %v3002 = vadd.f32 %v641, %v3001
      %v3003 = vpop.f32.mrf.mxu0
      %v3004 = vadd.f32 %v641, %v3003
      %3005 = vmatmul.bf16.gmra.mxu0 %v1042
      %v3006 = vpop.f32.mrf.mxu0
      %v3007 = vadd.f32 %v641, %v3006
      %v3008 = vpop.f32.mrf.mxu0
      %v3009 = vadd.f32 %v641, %v3008
      %3010 = vmatmul.bf16.gmra.mxu0 %v1049
      %v3011 = vpop.f32.mrf.mxu0
      %v3012 = vadd.f32 %v641, %v3011
      %v3013 = vpop.f32.mrf.mxu0
      %v3014 = vadd.f32 %v641, %v3013
      %3015 = vmatmul.bf16.gmra.mxu0 %v1056
      %v3016 = vpop.f32.mrf.mxu0
      %v3017 = vadd.f32 %v641, %v3016
      %v3018 = vpop.f32.mrf.mxu0
      %v3019 = vadd.f32 %v641, %v3018
      %3020 = vmatmul.bf16.gmra.mxu0 %v1063
      %v3021 = vpop.f32.mrf.mxu0
      %v3022 = vadd.f32 %v641, %v3021
      %v3023 = vpop.f32.mrf.mxu0
      %v3024 = vadd.f32 %v641, %v3023
      %3025 = vmatmul.bf16.gmra.mxu0 %v1070
      %v3026 = vpop.f32.mrf.mxu0
      %v3027 = vadd.f32 %v641, %v3026
      %v3028 = vpop.f32.mrf.mxu0
      %v3029 = vadd.f32 %v641, %v3028
      %3030 = vmatmul.bf16.gmra.mxu0 %v1077
      %v3031 = vpop.f32.mrf.mxu0
      %v3032 = vadd.f32 %v641, %v3031
      %v3033 = vpop.f32.mrf.mxu0
      %v3034 = vadd.f32 %v641, %v3033
      %3035 = vmatmul.bf16.gmra.mxu0 %v1084
      %v3036 = vpop.f32.mrf.mxu0
      %v3037 = vadd.f32 %v641, %v3036
      %v3038 = vpop.f32.mrf.mxu0
      %v3039 = vadd.f32 %v641, %v3038
      %3040 = vmatmul.bf16.gmra.mxu0 %v1091
      %v3041 = vpop.f32.mrf.mxu0
      %v3042 = vadd.f32 %v641, %v3041
      %v3043 = vpop.f32.mrf.mxu0
      %v3044 = vadd.f32 %v641, %v3043
      %3045 = vmatmul.bf16.gmra.mxu0 %v1098
      %v3046 = vpop.f32.mrf.mxu0
      %v3047 = vadd.f32 %v641, %v3046
      %v3048 = vpop.f32.mrf.mxu0
      %v3049 = vadd.f32 %v641, %v3048
      %3050 = vmatmul.bf16.gmra.mxu0 %v1105
      %v3051 = vpop.f32.mrf.mxu0
      %v3052 = vadd.f32 %v641, %v3051
      %v3053 = vpop.f32.mrf.mxu0
      %v3054 = vadd.f32 %v641, %v3053
      %3055 = vdwg.mxu0
      %3056 = vmatpush.bf16.msra.mxu0 %v1957
      %3057 = vmatpush.bf16.msra.mxu0 %v1953
      %3058 = vmatpush.bf16.msra.mxu0 %v1949
      %3059 = vmatpush.bf16.msra.mxu0 %v1945
      %3060 = vmatpush.bf16.msra.mxu0 %v1941
      %3061 = vmatpush.bf16.msra.mxu0 %v1937
      %3062 = vmatpush.bf16.msra.mxu0 %v1933
      %3063 = vmatpush.bf16.msra.mxu0 %v1929
      %3064 = vmatmul.bf16.gmra.mxu0 %v1001
      %v3065 = vpop.f32.mrf.mxu0
      %v3066 = vadd.f32 %v2977, %v3065
      %v3067 = vpop.f32.mrf.mxu0
      %v3068 = vadd.f32 %v2979, %v3067
      %3069 = vmatmul.bf16.gmra.mxu0 %v1008
      %v3070 = vpop.f32.mrf.mxu0
      %v3071 = vadd.f32 %v2982, %v3070
      %v3072 = vpop.f32.mrf.mxu0
      %v3073 = vadd.f32 %v2984, %v3072
      %3074 = vmatmul.bf16.gmra.mxu0 %v1015
      %v3075 = vpop.f32.mrf.mxu0
      %v3076 = vadd.f32 %v2987, %v3075
      %v3077 = vpop.f32.mrf.mxu0
      %v3078 = vadd.f32 %v2989, %v3077
      %3079 = vmatmul.bf16.gmra.mxu0 %v1022
      %v3080 = vpop.f32.mrf.mxu0
      %v3081 = vadd.f32 %v2992, %v3080
      %v3082 = vpop.f32.mrf.mxu0
      %v3083 = vadd.f32 %v2994, %v3082
      %3084 = vmatmul.bf16.gmra.mxu0 %v1029
      %v3085 = vpop.f32.mrf.mxu0
      %v3086 = vadd.f32 %v2997, %v3085
      %v3087 = vpop.f32.mrf.mxu0
      %v3088 = vadd.f32 %v2999, %v3087
      %3089 = vmatmul.bf16.gmra.mxu0 %v1036
      %v3090 = vpop.f32.mrf.mxu0
      %v3091 = vadd.f32 %v3002, %v3090
      %v3092 = vpop.f32.mrf.mxu0
      %v3093 = vadd.f32 %v3004, %v3092
      %3094 = vmatmul.bf16.gmra.mxu0 %v1043
      %v3095 = vpop.f32.mrf.mxu0
      %v3096 = vadd.f32 %v3007, %v3095
      %v3097 = vpop.f32.mrf.mxu0
      %v3098 = vadd.f32 %v3009, %v3097
      %3099 = vmatmul.bf16.gmra.mxu0 %v1050
      %v3100 = vpop.f32.mrf.mxu0
      %v3101 = vadd.f32 %v3012, %v3100
      %v3102 = vpop.f32.mrf.mxu0
      %v3103 = vadd.f32 %v3014, %v3102
      %3104 = vmatmul.bf16.gmra.mxu0 %v1057
      %v3105 = vpop.f32.mrf.mxu0
      %v3106 = vadd.f32 %v3017, %v3105
      %v3107 = vpop.f32.mrf.mxu0
      %v3108 = vadd.f32 %v3019, %v3107
      %3109 = vmatmul.bf16.gmra.mxu0 %v1064
      %v3110 = vpop.f32.mrf.mxu0
      %v3111 = vadd.f32 %v3022, %v3110
      %v3112 = vpop.f32.mrf.mxu0
      %v3113 = vadd.f32 %v3024, %v3112
      %3114 = vmatmul.bf16.gmra.mxu0 %v1071
      %v3115 = vpop.f32.mrf.mxu0
      %v3116 = vadd.f32 %v3027, %v3115
      %v3117 = vpop.f32.mrf.mxu0
      %v3118 = vadd.f32 %v3029, %v3117
      %3119 = vmatmul.bf16.gmra.mxu0 %v1078
      %v3120 = vpop.f32.mrf.mxu0
      %v3121 = vadd.f32 %v3032, %v3120
      %v3122 = vpop.f32.mrf.mxu0
      %v3123 = vadd.f32 %v3034, %v3122
      %3124 = vmatmul.bf16.gmra.mxu0 %v1085
      %v3125 = vpop.f32.mrf.mxu0
      %v3126 = vadd.f32 %v3037, %v3125
      %v3127 = vpop.f32.mrf.mxu0
      %v3128 = vadd.f32 %v3039, %v3127
      %3129 = vmatmul.bf16.gmra.mxu0 %v1092
      %v3130 = vpop.f32.mrf.mxu0
      %v3131 = vadd.f32 %v3042, %v3130
      %v3132 = vpop.f32.mrf.mxu0
      %v3133 = vadd.f32 %v3044, %v3132
      %3134 = vmatmul.bf16.gmra.mxu0 %v1099
      %v3135 = vpop.f32.mrf.mxu0
      %v3136 = vadd.f32 %v3047, %v3135
      %v3137 = vpop.f32.mrf.mxu0
      %v3138 = vadd.f32 %v3049, %v3137
      %3139 = vmatmul.bf16.gmra.mxu0 %v1106
      %v3140 = vpop.f32.mrf.mxu0
      %v3141 = vadd.f32 %v3052, %v3140
      %v3142 = vpop.f32.mrf.mxu0
      %v3143 = vadd.f32 %v3054, %v3142
      %3144 = vdwg.mxu0
      %3145 = vmatpush.bf16.msra.mxu0 %v1989
      %3146 = vmatpush.bf16.msra.mxu0 %v1985
      %3147 = vmatpush.bf16.msra.mxu0 %v1981
      %3148 = vmatpush.bf16.msra.mxu0 %v1977
      %3149 = vmatpush.bf16.msra.mxu0 %v1973
      %3150 = vmatpush.bf16.msra.mxu0 %v1969
      %3151 = vmatpush.bf16.msra.mxu0 %v1965
      %3152 = vmatpush.bf16.msra.mxu0 %v1961
      %3153 = vmatmul.bf16.gmra.mxu0 %v1002
      %v3154 = vpop.f32.mrf.mxu0
      %v3155 = vadd.f32 %v3066, %v3154
      %v3156 = vpop.f32.mrf.mxu0
      %v3157 = vadd.f32 %v3068, %v3156
      %3158 = vmatmul.bf16.gmra.mxu0 %v1009
      %v3159 = vpop.f32.mrf.mxu0
      %v3160 = vadd.f32 %v3071, %v3159
      %v3161 = vpop.f32.mrf.mxu0
      %v3162 = vadd.f32 %v3073, %v3161
      %3163 = vmatmul.bf16.gmra.mxu0 %v1016
      %v3164 = vpop.f32.mrf.mxu0
      %v3165 = vadd.f32 %v3076, %v3164
      %v3166 = vpop.f32.mrf.mxu0
      %v3167 = vadd.f32 %v3078, %v3166
      %3168 = vmatmul.bf16.gmra.mxu0 %v1023
      %v3169 = vpop.f32.mrf.mxu0
      %v3170 = vadd.f32 %v3081, %v3169
      %v3171 = vpop.f32.mrf.mxu0
      %v3172 = vadd.f32 %v3083, %v3171
      %3173 = vmatmul.bf16.gmra.mxu0 %v1030
      %v3174 = vpop.f32.mrf.mxu0
      %v3175 = vadd.f32 %v3086, %v3174
      %v3176 = vpop.f32.mrf.mxu0
      %v3177 = vadd.f32 %v3088, %v3176
      %3178 = vmatmul.bf16.gmra.mxu0 %v1037
      %v3179 = vpop.f32.mrf.mxu0
      %v3180 = vadd.f32 %v3091, %v3179
      %v3181 = vpop.f32.mrf.mxu0
      %v3182 = vadd.f32 %v3093, %v3181
      %3183 = vmatmul.bf16.gmra.mxu0 %v1044
      %v3184 = vpop.f32.mrf.mxu0
      %v3185 = vadd.f32 %v3096, %v3184
      %v3186 = vpop.f32.mrf.mxu0
      %v3187 = vadd.f32 %v3098, %v3186
      %3188 = vmatmul.bf16.gmra.mxu0 %v1051
      %v3189 = vpop.f32.mrf.mxu0
      %v3190 = vadd.f32 %v3101, %v3189
      %v3191 = vpop.f32.mrf.mxu0
      %v3192 = vadd.f32 %v3103, %v3191
      %3193 = vmatmul.bf16.gmra.mxu0 %v1058
      %v3194 = vpop.f32.mrf.mxu0
      %v3195 = vadd.f32 %v3106, %v3194
      %v3196 = vpop.f32.mrf.mxu0
      %v3197 = vadd.f32 %v3108, %v3196
      %3198 = vmatmul.bf16.gmra.mxu0 %v1065
      %v3199 = vpop.f32.mrf.mxu0
      %v3200 = vadd.f32 %v3111, %v3199
      %v3201 = vpop.f32.mrf.mxu0
      %v3202 = vadd.f32 %v3113, %v3201
      %3203 = vmatmul.bf16.gmra.mxu0 %v1072
      %v3204 = vpop.f32.mrf.mxu0
      %v3205 = vadd.f32 %v3116, %v3204
      %v3206 = vpop.f32.mrf.mxu0
      %v3207 = vadd.f32 %v3118, %v3206
      %3208 = vmatmul.bf16.gmra.mxu0 %v1079
      %v3209 = vpop.f32.mrf.mxu0
      %v3210 = vadd.f32 %v3121, %v3209
      %v3211 = vpop.f32.mrf.mxu0
      %v3212 = vadd.f32 %v3123, %v3211
      %3213 = vmatmul.bf16.gmra.mxu0 %v1086
      %v3214 = vpop.f32.mrf.mxu0
      %v3215 = vadd.f32 %v3126, %v3214
      %v3216 = vpop.f32.mrf.mxu0
      %v3217 = vadd.f32 %v3128, %v3216
      %3218 = vmatmul.bf16.gmra.mxu0 %v1093
      %v3219 = vpop.f32.mrf.mxu0
      %v3220 = vadd.f32 %v3131, %v3219
      %v3221 = vpop.f32.mrf.mxu0
      %v3222 = vadd.f32 %v3133, %v3221
      %3223 = vmatmul.bf16.gmra.mxu0 %v1100
      %v3224 = vpop.f32.mrf.mxu0
      %v3225 = vadd.f32 %v3136, %v3224
      %v3226 = vpop.f32.mrf.mxu0
      %v3227 = vadd.f32 %v3138, %v3226
      %3228 = vmatmul.bf16.gmra.mxu0 %v1107
      %v3229 = vpop.f32.mrf.mxu0
      %v3230 = vadd.f32 %v3141, %v3229
      %v3231 = vpop.f32.mrf.mxu0
      %v3232 = vadd.f32 %v3143, %v3231
      %3233 = vdwg.mxu0
      %3234 = vmatpush.bf16.msra.mxu0 %v2021
      %3235 = vmatpush.bf16.msra.mxu0 %v2017
      %3236 = vmatpush.bf16.msra.mxu0 %v2013
      %3237 = vmatpush.bf16.msra.mxu0 %v2009
      %3238 = vmatpush.bf16.msra.mxu0 %v2005
      %3239 = vmatpush.bf16.msra.mxu0 %v2001
      %3240 = vmatpush.bf16.msra.mxu0 %v1997
      %3241 = vmatpush.bf16.msra.mxu0 %v1993
      %3242 = vmatmul.bf16.gmra.mxu0 %v1003
      %v3243 = vpop.f32.mrf.mxu0
      %v3244 = vadd.f32 %v3155, %v3243
      %v3245 = vpop.f32.mrf.mxu0
      %v3246 = vadd.f32 %v3157, %v3245
      %3247 = vmatmul.bf16.gmra.mxu0 %v1010
      %v3248 = vpop.f32.mrf.mxu0
      %v3249 = vadd.f32 %v3160, %v3248
      %v3250 = vpop.f32.mrf.mxu0
      %v3251 = vadd.f32 %v3162, %v3250
      %3252 = vmatmul.bf16.gmra.mxu0 %v1017
      %v3253 = vpop.f32.mrf.mxu0
      %v3254 = vadd.f32 %v3165, %v3253
      %v3255 = vpop.f32.mrf.mxu0
      %v3256 = vadd.f32 %v3167, %v3255
      %3257 = vmatmul.bf16.gmra.mxu0 %v1024
      %v3258 = vpop.f32.mrf.mxu0
      %v3259 = vadd.f32 %v3170, %v3258
      %v3260 = vpop.f32.mrf.mxu0
      %v3261 = vadd.f32 %v3172, %v3260
      %3262 = vmatmul.bf16.gmra.mxu0 %v1031
      %v3263 = vpop.f32.mrf.mxu0
      %v3264 = vadd.f32 %v3175, %v3263
      %v3265 = vpop.f32.mrf.mxu0
      %v3266 = vadd.f32 %v3177, %v3265
      %3267 = vmatmul.bf16.gmra.mxu0 %v1038
      %v3268 = vpop.f32.mrf.mxu0
      %v3269 = vadd.f32 %v3180, %v3268
      %v3270 = vpop.f32.mrf.mxu0
      %v3271 = vadd.f32 %v3182, %v3270
      %3272 = vmatmul.bf16.gmra.mxu0 %v1045
      %v3273 = vpop.f32.mrf.mxu0
      %v3274 = vadd.f32 %v3185, %v3273
      %v3275 = vpop.f32.mrf.mxu0
      %v3276 = vadd.f32 %v3187, %v3275
      %3277 = vmatmul.bf16.gmra.mxu0 %v1052
      %v3278 = vpop.f32.mrf.mxu0
      %v3279 = vadd.f32 %v3190, %v3278
      %v3280 = vpop.f32.mrf.mxu0
      %v3281 = vadd.f32 %v3192, %v3280
      %3282 = vmatmul.bf16.gmra.mxu0 %v1059
      %v3283 = vpop.f32.mrf.mxu0
      %v3284 = vadd.f32 %v3195, %v3283
      %v3285 = vpop.f32.mrf.mxu0
      %v3286 = vadd.f32 %v3197, %v3285
      %3287 = vmatmul.bf16.gmra.mxu0 %v1066
      %v3288 = vpop.f32.mrf.mxu0
      %v3289 = vadd.f32 %v3200, %v3288
      %v3290 = vpop.f32.mrf.mxu0
      %v3291 = vadd.f32 %v3202, %v3290
      %3292 = vmatmul.bf16.gmra.mxu0 %v1073
      %v3293 = vpop.f32.mrf.mxu0
      %v3294 = vadd.f32 %v3205, %v3293
      %v3295 = vpop.f32.mrf.mxu0
      %v3296 = vadd.f32 %v3207, %v3295
      %3297 = vmatmul.bf16.gmra.mxu0 %v1080
      %v3298 = vpop.f32.mrf.mxu0
      %v3299 = vadd.f32 %v3210, %v3298
      %v3300 = vpop.f32.mrf.mxu0
      %v3301 = vadd.f32 %v3212, %v3300
      %3302 = vmatmul.bf16.gmra.mxu0 %v1087
      %v3303 = vpop.f32.mrf.mxu0
      %v3304 = vadd.f32 %v3215, %v3303
      %v3305 = vpop.f32.mrf.mxu0
      %v3306 = vadd.f32 %v3217, %v3305
      %3307 = vmatmul.bf16.gmra.mxu0 %v1094
      %v3308 = vpop.f32.mrf.mxu0
      %v3309 = vadd.f32 %v3220, %v3308
      %v3310 = vpop.f32.mrf.mxu0
      %v3311 = vadd.f32 %v3222, %v3310
      %3312 = vmatmul.bf16.gmra.mxu0 %v1101
      %v3313 = vpop.f32.mrf.mxu0
      %v3314 = vadd.f32 %v3225, %v3313
      %v3315 = vpop.f32.mrf.mxu0
      %v3316 = vadd.f32 %v3227, %v3315
      %3317 = vmatmul.bf16.gmra.mxu0 %v1108
      %v3318 = vpop.f32.mrf.mxu0
      %v3319 = vadd.f32 %v3230, %v3318
      %v3320 = vpop.f32.mrf.mxu0
      %v3321 = vadd.f32 %v3232, %v3320
      %3322 = vdwg.mxu0
      %3323 = vmatpush.bf16.msra.mxu0 %v2053
      %3324 = vmatpush.bf16.msra.mxu0 %v2049
      %3325 = vmatpush.bf16.msra.mxu0 %v2045
      %3326 = vmatpush.bf16.msra.mxu0 %v2041
      %3327 = vmatpush.bf16.msra.mxu0 %v2037
      %3328 = vmatpush.bf16.msra.mxu0 %v2033
      %3329 = vmatpush.bf16.msra.mxu0 %v2029
      %3330 = vmatpush.bf16.msra.mxu0 %v2025
      %3331 = vmatmul.bf16.gmra.mxu0 %v1004
      %v3332 = vpop.f32.mrf.mxu0
      %v3333 = vadd.f32 %v3244, %v3332
      %v3334 = vpop.f32.mrf.mxu0
      %v3335 = vadd.f32 %v3246, %v3334
      %3336 = vmatmul.bf16.gmra.mxu0 %v1011
      %v3337 = vpop.f32.mrf.mxu0
      %v3338 = vadd.f32 %v3249, %v3337
      %v3339 = vpop.f32.mrf.mxu0
      %v3340 = vadd.f32 %v3251, %v3339
      %3341 = vmatmul.bf16.gmra.mxu0 %v1018
      %v3342 = vpop.f32.mrf.mxu0
      %v3343 = vadd.f32 %v3254, %v3342
      %v3344 = vpop.f32.mrf.mxu0
      %v3345 = vadd.f32 %v3256, %v3344
      %3346 = vmatmul.bf16.gmra.mxu0 %v1025
      %v3347 = vpop.f32.mrf.mxu0
      %v3348 = vadd.f32 %v3259, %v3347
      %v3349 = vpop.f32.mrf.mxu0
      %v3350 = vadd.f32 %v3261, %v3349
      %3351 = vmatmul.bf16.gmra.mxu0 %v1032
      %v3352 = vpop.f32.mrf.mxu0
      %v3353 = vadd.f32 %v3264, %v3352
      %v3354 = vpop.f32.mrf.mxu0
      %v3355 = vadd.f32 %v3266, %v3354
      %3356 = vmatmul.bf16.gmra.mxu0 %v1039
      %v3357 = vpop.f32.mrf.mxu0
      %v3358 = vadd.f32 %v3269, %v3357
      %v3359 = vpop.f32.mrf.mxu0
      %v3360 = vadd.f32 %v3271, %v3359
      %3361 = vmatmul.bf16.gmra.mxu0 %v1046
      %v3362 = vpop.f32.mrf.mxu0
      %v3363 = vadd.f32 %v3274, %v3362
      %v3364 = vpop.f32.mrf.mxu0
      %v3365 = vadd.f32 %v3276, %v3364
      %3366 = vmatmul.bf16.gmra.mxu0 %v1053
      %v3367 = vpop.f32.mrf.mxu0
      %v3368 = vadd.f32 %v3279, %v3367
      %v3369 = vpop.f32.mrf.mxu0
      %v3370 = vadd.f32 %v3281, %v3369
      %3371 = vmatmul.bf16.gmra.mxu0 %v1060
      %v3372 = vpop.f32.mrf.mxu0
      %v3373 = vadd.f32 %v3284, %v3372
      %v3374 = vpop.f32.mrf.mxu0
      %v3375 = vadd.f32 %v3286, %v3374
      %3376 = vmatmul.bf16.gmra.mxu0 %v1067
      %v3377 = vpop.f32.mrf.mxu0
      %v3378 = vadd.f32 %v3289, %v3377
      %v3379 = vpop.f32.mrf.mxu0
      %v3380 = vadd.f32 %v3291, %v3379
      %3381 = vmatmul.bf16.gmra.mxu0 %v1074
      %v3382 = vpop.f32.mrf.mxu0
      %v3383 = vadd.f32 %v3294, %v3382
      %v3384 = vpop.f32.mrf.mxu0
      %v3385 = vadd.f32 %v3296, %v3384
      %3386 = vmatmul.bf16.gmra.mxu0 %v1081
      %v3387 = vpop.f32.mrf.mxu0
      %v3388 = vadd.f32 %v3299, %v3387
      %v3389 = vpop.f32.mrf.mxu0
      %v3390 = vadd.f32 %v3301, %v3389
      %3391 = vmatmul.bf16.gmra.mxu0 %v1088
      %v3392 = vpop.f32.mrf.mxu0
      %v3393 = vadd.f32 %v3304, %v3392
      %v3394 = vpop.f32.mrf.mxu0
      %v3395 = vadd.f32 %v3306, %v3394
      %3396 = vmatmul.bf16.gmra.mxu0 %v1095
      %v3397 = vpop.f32.mrf.mxu0
      %v3398 = vadd.f32 %v3309, %v3397
      %v3399 = vpop.f32.mrf.mxu0
      %v3400 = vadd.f32 %v3311, %v3399
      %3401 = vmatmul.bf16.gmra.mxu0 %v1102
      %v3402 = vpop.f32.mrf.mxu0
      %v3403 = vadd.f32 %v3314, %v3402
      %v3404 = vpop.f32.mrf.mxu0
      %v3405 = vadd.f32 %v3316, %v3404
      %3406 = vmatmul.bf16.gmra.mxu0 %v1109
      %v3407 = vpop.f32.mrf.mxu0
      %v3408 = vadd.f32 %v3319, %v3407
      %v3409 = vpop.f32.mrf.mxu0
      %v3410 = vadd.f32 %v3321, %v3409
      %3411 = vdwg.mxu0
      %3412 = vmatpush.bf16.msra.mxu0 %v2085
      %3413 = vmatpush.bf16.msra.mxu0 %v2081
      %3414 = vmatpush.bf16.msra.mxu0 %v2077
      %3415 = vmatpush.bf16.msra.mxu0 %v2073
      %3416 = vmatpush.bf16.msra.mxu0 %v2069
      %3417 = vmatpush.bf16.msra.mxu0 %v2065
      %3418 = vmatpush.bf16.msra.mxu0 %v2061
      %3419 = vmatpush.bf16.msra.mxu0 %v2057
      %3420 = vmatmul.bf16.gmra.mxu0 %v1005
      %v3421 = vpop.f32.mrf.mxu0
      %v3422 = vadd.f32 %v3333, %v3421
      %v3423 = vpop.f32.mrf.mxu0
      %v3424 = vadd.f32 %v3335, %v3423
      %3425 = vmatmul.bf16.gmra.mxu0 %v1012
      %v3426 = vpop.f32.mrf.mxu0
      %v3427 = vadd.f32 %v3338, %v3426
      %v3428 = vpop.f32.mrf.mxu0
      %v3429 = vadd.f32 %v3340, %v3428
      %3430 = vmatmul.bf16.gmra.mxu0 %v1019
      %v3431 = vpop.f32.mrf.mxu0
      %v3432 = vadd.f32 %v3343, %v3431
      %v3433 = vpop.f32.mrf.mxu0
      %v3434 = vadd.f32 %v3345, %v3433
      %3435 = vmatmul.bf16.gmra.mxu0 %v1026
      %v3436 = vpop.f32.mrf.mxu0
      %v3437 = vadd.f32 %v3348, %v3436
      %v3438 = vpop.f32.mrf.mxu0
      %v3439 = vadd.f32 %v3350, %v3438
      %3440 = vmatmul.bf16.gmra.mxu0 %v1033
      %v3441 = vpop.f32.mrf.mxu0
      %v3442 = vadd.f32 %v3353, %v3441
      %v3443 = vpop.f32.mrf.mxu0
      %v3444 = vadd.f32 %v3355, %v3443
      %3445 = vmatmul.bf16.gmra.mxu0 %v1040
      %v3446 = vpop.f32.mrf.mxu0
      %v3447 = vadd.f32 %v3358, %v3446
      %v3448 = vpop.f32.mrf.mxu0
      %v3449 = vadd.f32 %v3360, %v3448
      %3450 = vmatmul.bf16.gmra.mxu0 %v1047
      %v3451 = vpop.f32.mrf.mxu0
      %v3452 = vadd.f32 %v3363, %v3451
      %v3453 = vpop.f32.mrf.mxu0
      %v3454 = vadd.f32 %v3365, %v3453
      %3455 = vmatmul.bf16.gmra.mxu0 %v1054
      %v3456 = vpop.f32.mrf.mxu0
      %v3457 = vadd.f32 %v3368, %v3456
      %v3458 = vpop.f32.mrf.mxu0
      %v3459 = vadd.f32 %v3370, %v3458
      %3460 = vmatmul.bf16.gmra.mxu0 %v1061
      %v3461 = vpop.f32.mrf.mxu0
      %v3462 = vadd.f32 %v3373, %v3461
      %v3463 = vpop.f32.mrf.mxu0
      %v3464 = vadd.f32 %v3375, %v3463
      %3465 = vmatmul.bf16.gmra.mxu0 %v1068
      %v3466 = vpop.f32.mrf.mxu0
      %v3467 = vadd.f32 %v3378, %v3466
      %v3468 = vpop.f32.mrf.mxu0
      %v3469 = vadd.f32 %v3380, %v3468
      %3470 = vmatmul.bf16.gmra.mxu0 %v1075
      %v3471 = vpop.f32.mrf.mxu0
      %v3472 = vadd.f32 %v3383, %v3471
      %v3473 = vpop.f32.mrf.mxu0
      %v3474 = vadd.f32 %v3385, %v3473
      %3475 = vmatmul.bf16.gmra.mxu0 %v1082
      %v3476 = vpop.f32.mrf.mxu0
      %v3477 = vadd.f32 %v3388, %v3476
      %v3478 = vpop.f32.mrf.mxu0
      %v3479 = vadd.f32 %v3390, %v3478
      %3480 = vmatmul.bf16.gmra.mxu0 %v1089
      %v3481 = vpop.f32.mrf.mxu0
      %v3482 = vadd.f32 %v3393, %v3481
      %v3483 = vpop.f32.mrf.mxu0
      %v3484 = vadd.f32 %v3395, %v3483
      %3485 = vmatmul.bf16.gmra.mxu0 %v1096
      %v3486 = vpop.f32.mrf.mxu0
      %v3487 = vadd.f32 %v3398, %v3486
      %v3488 = vpop.f32.mrf.mxu0
      %v3489 = vadd.f32 %v3400, %v3488
      %3490 = vmatmul.bf16.gmra.mxu0 %v1103
      %v3491 = vpop.f32.mrf.mxu0
      %v3492 = vadd.f32 %v3403, %v3491
      %v3493 = vpop.f32.mrf.mxu0
      %v3494 = vadd.f32 %v3405, %v3493
      %3495 = vmatmul.bf16.gmra.mxu0 %v1110
      %v3496 = vpop.f32.mrf.mxu0
      %v3497 = vadd.f32 %v3408, %v3496
      %v3498 = vpop.f32.mrf.mxu0
      %v3499 = vadd.f32 %v3410, %v3498
      %3500 = vdwg.mxu0
      %3501 = vmatpush.bf16.msra.mxu0 %v2117
      %3502 = vmatpush.bf16.msra.mxu0 %v2113
      %3503 = vmatpush.bf16.msra.mxu0 %v2109
      %3504 = vmatpush.bf16.msra.mxu0 %v2105
      %3505 = vmatpush.bf16.msra.mxu0 %v2101
      %3506 = vmatpush.bf16.msra.mxu0 %v2097
      %3507 = vmatpush.bf16.msra.mxu0 %v2093
      %3508 = vmatpush.bf16.msra.mxu0 %v2089
      %3509 = vmatmul.bf16.gmra.mxu0 %v1006
      %v3510 = vpop.f32.mrf.mxu0
      %v3511 = vadd.f32 %v3422, %v3510
      %v3512 = vpop.f32.mrf.mxu0
      %v3513 = vadd.f32 %v3424, %v3512
      %3514 = vmatmul.bf16.gmra.mxu0 %v1013
      %v3515 = vpop.f32.mrf.mxu0
      %v3516 = vadd.f32 %v3427, %v3515
      %v3517 = vpop.f32.mrf.mxu0
      %v3518 = vadd.f32 %v3429, %v3517
      %3519 = vmatmul.bf16.gmra.mxu0 %v1020
      %v3520 = vpop.f32.mrf.mxu0
      %v3521 = vadd.f32 %v3432, %v3520
      %v3522 = vpop.f32.mrf.mxu0
      %v3523 = vadd.f32 %v3434, %v3522
      %3524 = vmatmul.bf16.gmra.mxu0 %v1027
      %v3525 = vpop.f32.mrf.mxu0
      %v3526 = vadd.f32 %v3437, %v3525
      %v3527 = vpop.f32.mrf.mxu0
      %v3528 = vadd.f32 %v3439, %v3527
      %3529 = vmatmul.bf16.gmra.mxu0 %v1034
      %v3530 = vpop.f32.mrf.mxu0
      %v3531 = vadd.f32 %v3442, %v3530
      %v3532 = vpop.f32.mrf.mxu0
      %v3533 = vadd.f32 %v3444, %v3532
      %3534 = vmatmul.bf16.gmra.mxu0 %v1041
      %v3535 = vpop.f32.mrf.mxu0
      %v3536 = vadd.f32 %v3447, %v3535
      %v3537 = vpop.f32.mrf.mxu0
      %v3538 = vadd.f32 %v3449, %v3537
      %3539 = vmatmul.bf16.gmra.mxu0 %v1048
      %v3540 = vpop.f32.mrf.mxu0
      %v3541 = vadd.f32 %v3452, %v3540
      %v3542 = vpop.f32.mrf.mxu0
      %v3543 = vadd.f32 %v3454, %v3542
      %3544 = vmatmul.bf16.gmra.mxu0 %v1055
      %v3545 = vpop.f32.mrf.mxu0
      %v3546 = vadd.f32 %v3457, %v3545
      %v3547 = vpop.f32.mrf.mxu0
      %v3548 = vadd.f32 %v3459, %v3547
      %3549 = vmatmul.bf16.gmra.mxu0 %v1062
      %v3550 = vpop.f32.mrf.mxu0
      %v3551 = vadd.f32 %v3462, %v3550
      %v3552 = vpop.f32.mrf.mxu0
      %v3553 = vadd.f32 %v3464, %v3552
      %3554 = vmatmul.bf16.gmra.mxu0 %v1069
      %v3555 = vpop.f32.mrf.mxu0
      %v3556 = vadd.f32 %v3467, %v3555
      %v3557 = vpop.f32.mrf.mxu0
      %v3558 = vadd.f32 %v3469, %v3557
      %3559 = vmatmul.bf16.gmra.mxu0 %v1076
      %v3560 = vpop.f32.mrf.mxu0
      %v3561 = vadd.f32 %v3472, %v3560
      %v3562 = vpop.f32.mrf.mxu0
      %v3563 = vadd.f32 %v3474, %v3562
      %3564 = vmatmul.bf16.gmra.mxu0 %v1083
      %v3565 = vpop.f32.mrf.mxu0
      %v3566 = vadd.f32 %v3477, %v3565
      %v3567 = vpop.f32.mrf.mxu0
      %v3568 = vadd.f32 %v3479, %v3567
      %3569 = vmatmul.bf16.gmra.mxu0 %v1090
      %v3570 = vpop.f32.mrf.mxu0
      %v3571 = vadd.f32 %v3482, %v3570
      %v3572 = vpop.f32.mrf.mxu0
      %v3573 = vadd.f32 %v3484, %v3572
      %3574 = vmatmul.bf16.gmra.mxu0 %v1097
      %v3575 = vpop.f32.mrf.mxu0
      %v3576 = vadd.f32 %v3487, %v3575
      %v3577 = vpop.f32.mrf.mxu0
      %v3578 = vadd.f32 %v3489, %v3577
      %3579 = vmatmul.bf16.gmra.mxu0 %v1104
      %v3580 = vpop.f32.mrf.mxu0
      %v3581 = vadd.f32 %v3492, %v3580
      %v3582 = vpop.f32.mrf.mxu0
      %v3583 = vadd.f32 %v3494, %v3582
      %3584 = vmatmul.bf16.gmra.mxu0 %v1111
      %v3585 = vpop.f32.mrf.mxu0
      %v3586 = vadd.f32 %v3497, %v3585
      %v3587 = vpop.f32.mrf.mxu0
      %v3588 = vadd.f32 %v3499, %v3587
      %3589 = vdwg.mxu0
      %3590 = vmatpush.bf16.msra.mxu0 %v1926
      %3591 = vmatpush.bf16.msra.mxu0 %v1922
      %3592 = vmatpush.bf16.msra.mxu0 %v1918
      %3593 = vmatpush.bf16.msra.mxu0 %v1914
      %3594 = vmatpush.bf16.msra.mxu0 %v1910
      %3595 = vmatpush.bf16.msra.mxu0 %v1906
      %3596 = vmatpush.bf16.msra.mxu0 %v1902
      %3597 = vmatpush.bf16.msra.mxu0 %v1898
      %3598 = vmatmul.bf16.gmra.mxu0 %v1000
      %v3599 = vpop.f32.mrf.mxu0
      %v3600 = vadd.f32 %v642, %v3599
      %v3601 = vpop.f32.mrf.mxu0
      %v3602 = vadd.f32 %v642, %v3601
      %3603 = vmatmul.bf16.gmra.mxu0 %v1007
      %v3604 = vpop.f32.mrf.mxu0
      %v3605 = vadd.f32 %v642, %v3604
      %v3606 = vpop.f32.mrf.mxu0
      %v3607 = vadd.f32 %v642, %v3606
      %3608 = vmatmul.bf16.gmra.mxu0 %v1014
      %v3609 = vpop.f32.mrf.mxu0
      %v3610 = vadd.f32 %v642, %v3609
      %v3611 = vpop.f32.mrf.mxu0
      %v3612 = vadd.f32 %v642, %v3611
      %3613 = vmatmul.bf16.gmra.mxu0 %v1021
      %v3614 = vpop.f32.mrf.mxu0
      %v3615 = vadd.f32 %v642, %v3614
      %v3616 = vpop.f32.mrf.mxu0
      %v3617 = vadd.f32 %v642, %v3616
      %3618 = vmatmul.bf16.gmra.mxu0 %v1028
      %v3619 = vpop.f32.mrf.mxu0
      %v3620 = vadd.f32 %v642, %v3619
      %v3621 = vpop.f32.mrf.mxu0
      %v3622 = vadd.f32 %v642, %v3621
      %3623 = vmatmul.bf16.gmra.mxu0 %v1035
      %v3624 = vpop.f32.mrf.mxu0
      %v3625 = vadd.f32 %v642, %v3624
      %v3626 = vpop.f32.mrf.mxu0
      %v3627 = vadd.f32 %v642, %v3626
      %3628 = vmatmul.bf16.gmra.mxu0 %v1042
      %v3629 = vpop.f32.mrf.mxu0
      %v3630 = vadd.f32 %v642, %v3629
      %v3631 = vpop.f32.mrf.mxu0
      %v3632 = vadd.f32 %v642, %v3631
      %3633 = vmatmul.bf16.gmra.mxu0 %v1049
      %v3634 = vpop.f32.mrf.mxu0
      %v3635 = vadd.f32 %v642, %v3634
      %v3636 = vpop.f32.mrf.mxu0
      %v3637 = vadd.f32 %v642, %v3636
      %3638 = vmatmul.bf16.gmra.mxu0 %v1056
      %v3639 = vpop.f32.mrf.mxu0
      %v3640 = vadd.f32 %v642, %v3639
      %v3641 = vpop.f32.mrf.mxu0
      %v3642 = vadd.f32 %v642, %v3641
      %3643 = vmatmul.bf16.gmra.mxu0 %v1063
      %v3644 = vpop.f32.mrf.mxu0
      %v3645 = vadd.f32 %v642, %v3644
      %v3646 = vpop.f32.mrf.mxu0
      %v3647 = vadd.f32 %v642, %v3646
      %3648 = vmatmul.bf16.gmra.mxu0 %v1070
      %v3649 = vpop.f32.mrf.mxu0
      %v3650 = vadd.f32 %v642, %v3649
      %v3651 = vpop.f32.mrf.mxu0
      %v3652 = vadd.f32 %v642, %v3651
      %3653 = vmatmul.bf16.gmra.mxu0 %v1077
      %v3654 = vpop.f32.mrf.mxu0
      %v3655 = vadd.f32 %v642, %v3654
      %v3656 = vpop.f32.mrf.mxu0
      %v3657 = vadd.f32 %v642, %v3656
      %3658 = vmatmul.bf16.gmra.mxu0 %v1084
      %v3659 = vpop.f32.mrf.mxu0
      %v3660 = vadd.f32 %v642, %v3659
      %v3661 = vpop.f32.mrf.mxu0
      %v3662 = vadd.f32 %v642, %v3661
      %3663 = vmatmul.bf16.gmra.mxu0 %v1091
      %v3664 = vpop.f32.mrf.mxu0
      %v3665 = vadd.f32 %v642, %v3664
      %v3666 = vpop.f32.mrf.mxu0
      %v3667 = vadd.f32 %v642, %v3666
      %3668 = vmatmul.bf16.gmra.mxu0 %v1098
      %v3669 = vpop.f32.mrf.mxu0
      %v3670 = vadd.f32 %v642, %v3669
      %v3671 = vpop.f32.mrf.mxu0
      %v3672 = vadd.f32 %v642, %v3671
      %3673 = vmatmul.bf16.gmra.mxu0 %v1105
      %v3674 = vpop.f32.mrf.mxu0
      %v3675 = vadd.f32 %v642, %v3674
      %v3676 = vpop.f32.mrf.mxu0
      %v3677 = vadd.f32 %v642, %v3676
      %3678 = vdwg.mxu0
      %3679 = vmatpush.bf16.msra.mxu0 %v1958
      %3680 = vmatpush.bf16.msra.mxu0 %v1954
      %3681 = vmatpush.bf16.msra.mxu0 %v1950
      %3682 = vmatpush.bf16.msra.mxu0 %v1946
      %3683 = vmatpush.bf16.msra.mxu0 %v1942
      %3684 = vmatpush.bf16.msra.mxu0 %v1938
      %3685 = vmatpush.bf16.msra.mxu0 %v1934
      %3686 = vmatpush.bf16.msra.mxu0 %v1930
      %3687 = vmatmul.bf16.gmra.mxu0 %v1001
      %v3688 = vpop.f32.mrf.mxu0
      %v3689 = vadd.f32 %v3600, %v3688
      %v3690 = vpop.f32.mrf.mxu0
      %v3691 = vadd.f32 %v3602, %v3690
      %3692 = vmatmul.bf16.gmra.mxu0 %v1008
      %v3693 = vpop.f32.mrf.mxu0
      %v3694 = vadd.f32 %v3605, %v3693
      %v3695 = vpop.f32.mrf.mxu0
      %v3696 = vadd.f32 %v3607, %v3695
      %3697 = vmatmul.bf16.gmra.mxu0 %v1015
      %v3698 = vpop.f32.mrf.mxu0
      %v3699 = vadd.f32 %v3610, %v3698
      %v3700 = vpop.f32.mrf.mxu0
      %v3701 = vadd.f32 %v3612, %v3700
      %3702 = vmatmul.bf16.gmra.mxu0 %v1022
      %v3703 = vpop.f32.mrf.mxu0
      %v3704 = vadd.f32 %v3615, %v3703
      %v3705 = vpop.f32.mrf.mxu0
      %v3706 = vadd.f32 %v3617, %v3705
      %3707 = vmatmul.bf16.gmra.mxu0 %v1029
      %v3708 = vpop.f32.mrf.mxu0
      %v3709 = vadd.f32 %v3620, %v3708
      %v3710 = vpop.f32.mrf.mxu0
      %v3711 = vadd.f32 %v3622, %v3710
      %3712 = vmatmul.bf16.gmra.mxu0 %v1036
      %v3713 = vpop.f32.mrf.mxu0
      %v3714 = vadd.f32 %v3625, %v3713
      %v3715 = vpop.f32.mrf.mxu0
      %v3716 = vadd.f32 %v3627, %v3715
      %3717 = vmatmul.bf16.gmra.mxu0 %v1043
      %v3718 = vpop.f32.mrf.mxu0
      %v3719 = vadd.f32 %v3630, %v3718
      %v3720 = vpop.f32.mrf.mxu0
      %v3721 = vadd.f32 %v3632, %v3720
      %3722 = vmatmul.bf16.gmra.mxu0 %v1050
      %v3723 = vpop.f32.mrf.mxu0
      %v3724 = vadd.f32 %v3635, %v3723
      %v3725 = vpop.f32.mrf.mxu0
      %v3726 = vadd.f32 %v3637, %v3725
      %3727 = vmatmul.bf16.gmra.mxu0 %v1057
      %v3728 = vpop.f32.mrf.mxu0
      %v3729 = vadd.f32 %v3640, %v3728
      %v3730 = vpop.f32.mrf.mxu0
      %v3731 = vadd.f32 %v3642, %v3730
      %3732 = vmatmul.bf16.gmra.mxu0 %v1064
      %v3733 = vpop.f32.mrf.mxu0
      %v3734 = vadd.f32 %v3645, %v3733
      %v3735 = vpop.f32.mrf.mxu0
      %v3736 = vadd.f32 %v3647, %v3735
      %3737 = vmatmul.bf16.gmra.mxu0 %v1071
      %v3738 = vpop.f32.mrf.mxu0
      %v3739 = vadd.f32 %v3650, %v3738
      %v3740 = vpop.f32.mrf.mxu0
      %v3741 = vadd.f32 %v3652, %v3740
      %3742 = vmatmul.bf16.gmra.mxu0 %v1078
      %v3743 = vpop.f32.mrf.mxu0
      %v3744 = vadd.f32 %v3655, %v3743
      %v3745 = vpop.f32.mrf.mxu0
      %v3746 = vadd.f32 %v3657, %v3745
      %3747 = vmatmul.bf16.gmra.mxu0 %v1085
      %v3748 = vpop.f32.mrf.mxu0
      %v3749 = vadd.f32 %v3660, %v3748
      %v3750 = vpop.f32.mrf.mxu0
      %v3751 = vadd.f32 %v3662, %v3750
      %3752 = vmatmul.bf16.gmra.mxu0 %v1092
      %v3753 = vpop.f32.mrf.mxu0
      %v3754 = vadd.f32 %v3665, %v3753
      %v3755 = vpop.f32.mrf.mxu0
      %v3756 = vadd.f32 %v3667, %v3755
      %3757 = vmatmul.bf16.gmra.mxu0 %v1099
      %v3758 = vpop.f32.mrf.mxu0
      %v3759 = vadd.f32 %v3670, %v3758
      %v3760 = vpop.f32.mrf.mxu0
      %v3761 = vadd.f32 %v3672, %v3760
      %3762 = vmatmul.bf16.gmra.mxu0 %v1106
      %v3763 = vpop.f32.mrf.mxu0
      %v3764 = vadd.f32 %v3675, %v3763
      %v3765 = vpop.f32.mrf.mxu0
      %v3766 = vadd.f32 %v3677, %v3765
      %3767 = vdwg.mxu0
      %3768 = vmatpush.bf16.msra.mxu0 %v1990
      %3769 = vmatpush.bf16.msra.mxu0 %v1986
      %3770 = vmatpush.bf16.msra.mxu0 %v1982
      %3771 = vmatpush.bf16.msra.mxu0 %v1978
      %3772 = vmatpush.bf16.msra.mxu0 %v1974
      %3773 = vmatpush.bf16.msra.mxu0 %v1970
      %3774 = vmatpush.bf16.msra.mxu0 %v1966
      %3775 = vmatpush.bf16.msra.mxu0 %v1962
      %3776 = vmatmul.bf16.gmra.mxu0 %v1002
      %v3777 = vpop.f32.mrf.mxu0
      %v3778 = vadd.f32 %v3689, %v3777
      %v3779 = vpop.f32.mrf.mxu0
      %v3780 = vadd.f32 %v3691, %v3779
      %3781 = vmatmul.bf16.gmra.mxu0 %v1009
      %v3782 = vpop.f32.mrf.mxu0
      %v3783 = vadd.f32 %v3694, %v3782
      %v3784 = vpop.f32.mrf.mxu0
      %v3785 = vadd.f32 %v3696, %v3784
      %3786 = vmatmul.bf16.gmra.mxu0 %v1016
      %v3787 = vpop.f32.mrf.mxu0
      %v3788 = vadd.f32 %v3699, %v3787
      %v3789 = vpop.f32.mrf.mxu0
      %v3790 = vadd.f32 %v3701, %v3789
      %3791 = vmatmul.bf16.gmra.mxu0 %v1023
      %v3792 = vpop.f32.mrf.mxu0
      %v3793 = vadd.f32 %v3704, %v3792
      %v3794 = vpop.f32.mrf.mxu0
      %v3795 = vadd.f32 %v3706, %v3794
      %3796 = vmatmul.bf16.gmra.mxu0 %v1030
      %v3797 = vpop.f32.mrf.mxu0
      %v3798 = vadd.f32 %v3709, %v3797
      %v3799 = vpop.f32.mrf.mxu0
      %v3800 = vadd.f32 %v3711, %v3799
      %3801 = vmatmul.bf16.gmra.mxu0 %v1037
      %v3802 = vpop.f32.mrf.mxu0
      %v3803 = vadd.f32 %v3714, %v3802
      %v3804 = vpop.f32.mrf.mxu0
      %v3805 = vadd.f32 %v3716, %v3804
      %3806 = vmatmul.bf16.gmra.mxu0 %v1044
      %v3807 = vpop.f32.mrf.mxu0
      %v3808 = vadd.f32 %v3719, %v3807
      %v3809 = vpop.f32.mrf.mxu0
      %v3810 = vadd.f32 %v3721, %v3809
      %3811 = vmatmul.bf16.gmra.mxu0 %v1051
      %v3812 = vpop.f32.mrf.mxu0
      %v3813 = vadd.f32 %v3724, %v3812
      %v3814 = vpop.f32.mrf.mxu0
      %v3815 = vadd.f32 %v3726, %v3814
      %3816 = vmatmul.bf16.gmra.mxu0 %v1058
      %v3817 = vpop.f32.mrf.mxu0
      %v3818 = vadd.f32 %v3729, %v3817
      %v3819 = vpop.f32.mrf.mxu0
      %v3820 = vadd.f32 %v3731, %v3819
      %3821 = vmatmul.bf16.gmra.mxu0 %v1065
      %v3822 = vpop.f32.mrf.mxu0
      %v3823 = vadd.f32 %v3734, %v3822
      %v3824 = vpop.f32.mrf.mxu0
      %v3825 = vadd.f32 %v3736, %v3824
      %3826 = vmatmul.bf16.gmra.mxu0 %v1072
      %v3827 = vpop.f32.mrf.mxu0
      %v3828 = vadd.f32 %v3739, %v3827
      %v3829 = vpop.f32.mrf.mxu0
      %v3830 = vadd.f32 %v3741, %v3829
      %3831 = vmatmul.bf16.gmra.mxu0 %v1079
      %v3832 = vpop.f32.mrf.mxu0
      %v3833 = vadd.f32 %v3744, %v3832
      %v3834 = vpop.f32.mrf.mxu0
      %v3835 = vadd.f32 %v3746, %v3834
      %3836 = vmatmul.bf16.gmra.mxu0 %v1086
      %v3837 = vpop.f32.mrf.mxu0
      %v3838 = vadd.f32 %v3749, %v3837
      %v3839 = vpop.f32.mrf.mxu0
      %v3840 = vadd.f32 %v3751, %v3839
      %3841 = vmatmul.bf16.gmra.mxu0 %v1093
      %v3842 = vpop.f32.mrf.mxu0
      %v3843 = vadd.f32 %v3754, %v3842
      %v3844 = vpop.f32.mrf.mxu0
      %v3845 = vadd.f32 %v3756, %v3844
      %3846 = vmatmul.bf16.gmra.mxu0 %v1100
      %v3847 = vpop.f32.mrf.mxu0
      %v3848 = vadd.f32 %v3759, %v3847
      %v3849 = vpop.f32.mrf.mxu0
      %v3850 = vadd.f32 %v3761, %v3849
      %3851 = vmatmul.bf16.gmra.mxu0 %v1107
      %v3852 = vpop.f32.mrf.mxu0
      %v3853 = vadd.f32 %v3764, %v3852
      %v3854 = vpop.f32.mrf.mxu0
      %v3855 = vadd.f32 %v3766, %v3854
      %3856 = vdwg.mxu0
      %3857 = vmatpush.bf16.msra.mxu0 %v2022
      %3858 = vmatpush.bf16.msra.mxu0 %v2018
      %3859 = vmatpush.bf16.msra.mxu0 %v2014
      %3860 = vmatpush.bf16.msra.mxu0 %v2010
      %3861 = vmatpush.bf16.msra.mxu0 %v2006
      %3862 = vmatpush.bf16.msra.mxu0 %v2002
      %3863 = vmatpush.bf16.msra.mxu0 %v1998
      %3864 = vmatpush.bf16.msra.mxu0 %v1994
      %3865 = vmatmul.bf16.gmra.mxu0 %v1003
      %v3866 = vpop.f32.mrf.mxu0
      %v3867 = vadd.f32 %v3778, %v3866
      %v3868 = vpop.f32.mrf.mxu0
      %v3869 = vadd.f32 %v3780, %v3868
      %3870 = vmatmul.bf16.gmra.mxu0 %v1010
      %v3871 = vpop.f32.mrf.mxu0
      %v3872 = vadd.f32 %v3783, %v3871
      %v3873 = vpop.f32.mrf.mxu0
      %v3874 = vadd.f32 %v3785, %v3873
      %3875 = vmatmul.bf16.gmra.mxu0 %v1017
      %v3876 = vpop.f32.mrf.mxu0
      %v3877 = vadd.f32 %v3788, %v3876
      %v3878 = vpop.f32.mrf.mxu0
      %v3879 = vadd.f32 %v3790, %v3878
      %3880 = vmatmul.bf16.gmra.mxu0 %v1024
      %v3881 = vpop.f32.mrf.mxu0
      %v3882 = vadd.f32 %v3793, %v3881
      %v3883 = vpop.f32.mrf.mxu0
      %v3884 = vadd.f32 %v3795, %v3883
      %3885 = vmatmul.bf16.gmra.mxu0 %v1031
      %v3886 = vpop.f32.mrf.mxu0
      %v3887 = vadd.f32 %v3798, %v3886
      %v3888 = vpop.f32.mrf.mxu0
      %v3889 = vadd.f32 %v3800, %v3888
      %3890 = vmatmul.bf16.gmra.mxu0 %v1038
      %v3891 = vpop.f32.mrf.mxu0
      %v3892 = vadd.f32 %v3803, %v3891
      %v3893 = vpop.f32.mrf.mxu0
      %v3894 = vadd.f32 %v3805, %v3893
      %3895 = vmatmul.bf16.gmra.mxu0 %v1045
      %v3896 = vpop.f32.mrf.mxu0
      %v3897 = vadd.f32 %v3808, %v3896
      %v3898 = vpop.f32.mrf.mxu0
      %v3899 = vadd.f32 %v3810, %v3898
      %3900 = vmatmul.bf16.gmra.mxu0 %v1052
      %v3901 = vpop.f32.mrf.mxu0
      %v3902 = vadd.f32 %v3813, %v3901
      %v3903 = vpop.f32.mrf.mxu0
      %v3904 = vadd.f32 %v3815, %v3903
      %3905 = vmatmul.bf16.gmra.mxu0 %v1059
      %v3906 = vpop.f32.mrf.mxu0
      %v3907 = vadd.f32 %v3818, %v3906
      %v3908 = vpop.f32.mrf.mxu0
      %v3909 = vadd.f32 %v3820, %v3908
      %3910 = vmatmul.bf16.gmra.mxu0 %v1066
      %v3911 = vpop.f32.mrf.mxu0
      %v3912 = vadd.f32 %v3823, %v3911
      %v3913 = vpop.f32.mrf.mxu0
      %v3914 = vadd.f32 %v3825, %v3913
      %3915 = vmatmul.bf16.gmra.mxu0 %v1073
      %v3916 = vpop.f32.mrf.mxu0
      %v3917 = vadd.f32 %v3828, %v3916
      %v3918 = vpop.f32.mrf.mxu0
      %v3919 = vadd.f32 %v3830, %v3918
      %3920 = vmatmul.bf16.gmra.mxu0 %v1080
      %v3921 = vpop.f32.mrf.mxu0
      %v3922 = vadd.f32 %v3833, %v3921
      %v3923 = vpop.f32.mrf.mxu0
      %v3924 = vadd.f32 %v3835, %v3923
      %3925 = vmatmul.bf16.gmra.mxu0 %v1087
      %v3926 = vpop.f32.mrf.mxu0
      %v3927 = vadd.f32 %v3838, %v3926
      %v3928 = vpop.f32.mrf.mxu0
      %v3929 = vadd.f32 %v3840, %v3928
      %3930 = vmatmul.bf16.gmra.mxu0 %v1094
      %v3931 = vpop.f32.mrf.mxu0
      %v3932 = vadd.f32 %v3843, %v3931
      %v3933 = vpop.f32.mrf.mxu0
      %v3934 = vadd.f32 %v3845, %v3933
      %3935 = vmatmul.bf16.gmra.mxu0 %v1101
      %v3936 = vpop.f32.mrf.mxu0
      %v3937 = vadd.f32 %v3848, %v3936
      %v3938 = vpop.f32.mrf.mxu0
      %v3939 = vadd.f32 %v3850, %v3938
      %3940 = vmatmul.bf16.gmra.mxu0 %v1108
      %v3941 = vpop.f32.mrf.mxu0
      %v3942 = vadd.f32 %v3853, %v3941
      %v3943 = vpop.f32.mrf.mxu0
      %v3944 = vadd.f32 %v3855, %v3943
      %3945 = vdwg.mxu0
      %3946 = vmatpush.bf16.msra.mxu0 %v2054
      %3947 = vmatpush.bf16.msra.mxu0 %v2050
      %3948 = vmatpush.bf16.msra.mxu0 %v2046
      %3949 = vmatpush.bf16.msra.mxu0 %v2042
      %3950 = vmatpush.bf16.msra.mxu0 %v2038
      %3951 = vmatpush.bf16.msra.mxu0 %v2034
      %3952 = vmatpush.bf16.msra.mxu0 %v2030
      %3953 = vmatpush.bf16.msra.mxu0 %v2026
      %3954 = vmatmul.bf16.gmra.mxu0 %v1004
      %v3955 = vpop.f32.mrf.mxu0
      %v3956 = vadd.f32 %v3867, %v3955
      %v3957 = vpop.f32.mrf.mxu0
      %v3958 = vadd.f32 %v3869, %v3957
      %3959 = vmatmul.bf16.gmra.mxu0 %v1011
      %v3960 = vpop.f32.mrf.mxu0
      %v3961 = vadd.f32 %v3872, %v3960
      %v3962 = vpop.f32.mrf.mxu0
      %v3963 = vadd.f32 %v3874, %v3962
      %3964 = vmatmul.bf16.gmra.mxu0 %v1018
      %v3965 = vpop.f32.mrf.mxu0
      %v3966 = vadd.f32 %v3877, %v3965
      %v3967 = vpop.f32.mrf.mxu0
      %v3968 = vadd.f32 %v3879, %v3967
      %3969 = vmatmul.bf16.gmra.mxu0 %v1025
      %v3970 = vpop.f32.mrf.mxu0
      %v3971 = vadd.f32 %v3882, %v3970
      %v3972 = vpop.f32.mrf.mxu0
      %v3973 = vadd.f32 %v3884, %v3972
      %3974 = vmatmul.bf16.gmra.mxu0 %v1032
      %v3975 = vpop.f32.mrf.mxu0
      %v3976 = vadd.f32 %v3887, %v3975
      %v3977 = vpop.f32.mrf.mxu0
      %v3978 = vadd.f32 %v3889, %v3977
      %3979 = vmatmul.bf16.gmra.mxu0 %v1039
      %v3980 = vpop.f32.mrf.mxu0
      %v3981 = vadd.f32 %v3892, %v3980
      %v3982 = vpop.f32.mrf.mxu0
      %v3983 = vadd.f32 %v3894, %v3982
      %3984 = vmatmul.bf16.gmra.mxu0 %v1046
      %v3985 = vpop.f32.mrf.mxu0
      %v3986 = vadd.f32 %v3897, %v3985
      %v3987 = vpop.f32.mrf.mxu0
      %v3988 = vadd.f32 %v3899, %v3987
      %3989 = vmatmul.bf16.gmra.mxu0 %v1053
      %v3990 = vpop.f32.mrf.mxu0
      %v3991 = vadd.f32 %v3902, %v3990
      %v3992 = vpop.f32.mrf.mxu0
      %v3993 = vadd.f32 %v3904, %v3992
      %3994 = vmatmul.bf16.gmra.mxu0 %v1060
      %v3995 = vpop.f32.mrf.mxu0
      %v3996 = vadd.f32 %v3907, %v3995
      %v3997 = vpop.f32.mrf.mxu0
      %v3998 = vadd.f32 %v3909, %v3997
      %3999 = vmatmul.bf16.gmra.mxu0 %v1067
      %v4000 = vpop.f32.mrf.mxu0
      %v4001 = vadd.f32 %v3912, %v4000
      %v4002 = vpop.f32.mrf.mxu0
      %v4003 = vadd.f32 %v3914, %v4002
      %4004 = vmatmul.bf16.gmra.mxu0 %v1074
      %v4005 = vpop.f32.mrf.mxu0
      %v4006 = vadd.f32 %v3917, %v4005
      %v4007 = vpop.f32.mrf.mxu0
      %v4008 = vadd.f32 %v3919, %v4007
      %4009 = vmatmul.bf16.gmra.mxu0 %v1081
      %v4010 = vpop.f32.mrf.mxu0
      %v4011 = vadd.f32 %v3922, %v4010
      %v4012 = vpop.f32.mrf.mxu0
      %v4013 = vadd.f32 %v3924, %v4012
      %4014 = vmatmul.bf16.gmra.mxu0 %v1088
      %v4015 = vpop.f32.mrf.mxu0
      %v4016 = vadd.f32 %v3927, %v4015
      %v4017 = vpop.f32.mrf.mxu0
      %v4018 = vadd.f32 %v3929, %v4017
      %4019 = vmatmul.bf16.gmra.mxu0 %v1095
      %v4020 = vpop.f32.mrf.mxu0
      %v4021 = vadd.f32 %v3932, %v4020
      %v4022 = vpop.f32.mrf.mxu0
      %v4023 = vadd.f32 %v3934, %v4022
      %4024 = vmatmul.bf16.gmra.mxu0 %v1102
      %v4025 = vpop.f32.mrf.mxu0
      %v4026 = vadd.f32 %v3937, %v4025
      %v4027 = vpop.f32.mrf.mxu0
      %v4028 = vadd.f32 %v3939, %v4027
      %4029 = vmatmul.bf16.gmra.mxu0 %v1109
      %v4030 = vpop.f32.mrf.mxu0
      %v4031 = vadd.f32 %v3942, %v4030
      %v4032 = vpop.f32.mrf.mxu0
      %v4033 = vadd.f32 %v3944, %v4032
      %4034 = vdwg.mxu0
      %4035 = vmatpush.bf16.msra.mxu0 %v2086
      %4036 = vmatpush.bf16.msra.mxu0 %v2082
      %4037 = vmatpush.bf16.msra.mxu0 %v2078
      %4038 = vmatpush.bf16.msra.mxu0 %v2074
      %4039 = vmatpush.bf16.msra.mxu0 %v2070
      %4040 = vmatpush.bf16.msra.mxu0 %v2066
      %4041 = vmatpush.bf16.msra.mxu0 %v2062
      %4042 = vmatpush.bf16.msra.mxu0 %v2058
      %4043 = vmatmul.bf16.gmra.mxu0 %v1005
      %v4044 = vpop.f32.mrf.mxu0
      %v4045 = vadd.f32 %v3956, %v4044
      %v4046 = vpop.f32.mrf.mxu0
      %v4047 = vadd.f32 %v3958, %v4046
      %4048 = vmatmul.bf16.gmra.mxu0 %v1012
      %v4049 = vpop.f32.mrf.mxu0
      %v4050 = vadd.f32 %v3961, %v4049
      %v4051 = vpop.f32.mrf.mxu0
      %v4052 = vadd.f32 %v3963, %v4051
      %4053 = vmatmul.bf16.gmra.mxu0 %v1019
      %v4054 = vpop.f32.mrf.mxu0
      %v4055 = vadd.f32 %v3966, %v4054
      %v4056 = vpop.f32.mrf.mxu0
      %v4057 = vadd.f32 %v3968, %v4056
      %4058 = vmatmul.bf16.gmra.mxu0 %v1026
      %v4059 = vpop.f32.mrf.mxu0
      %v4060 = vadd.f32 %v3971, %v4059
      %v4061 = vpop.f32.mrf.mxu0
      %v4062 = vadd.f32 %v3973, %v4061
      %4063 = vmatmul.bf16.gmra.mxu0 %v1033
      %v4064 = vpop.f32.mrf.mxu0
      %v4065 = vadd.f32 %v3976, %v4064
      %v4066 = vpop.f32.mrf.mxu0
      %v4067 = vadd.f32 %v3978, %v4066
      %4068 = vmatmul.bf16.gmra.mxu0 %v1040
      %v4069 = vpop.f32.mrf.mxu0
      %v4070 = vadd.f32 %v3981, %v4069
      %v4071 = vpop.f32.mrf.mxu0
      %v4072 = vadd.f32 %v3983, %v4071
      %4073 = vmatmul.bf16.gmra.mxu0 %v1047
      %v4074 = vpop.f32.mrf.mxu0
      %v4075 = vadd.f32 %v3986, %v4074
      %v4076 = vpop.f32.mrf.mxu0
      %v4077 = vadd.f32 %v3988, %v4076
      %4078 = vmatmul.bf16.gmra.mxu0 %v1054
      %v4079 = vpop.f32.mrf.mxu0
      %v4080 = vadd.f32 %v3991, %v4079
      %v4081 = vpop.f32.mrf.mxu0
      %v4082 = vadd.f32 %v3993, %v4081
      %4083 = vmatmul.bf16.gmra.mxu0 %v1061
      %v4084 = vpop.f32.mrf.mxu0
      %v4085 = vadd.f32 %v3996, %v4084
      %v4086 = vpop.f32.mrf.mxu0
      %v4087 = vadd.f32 %v3998, %v4086
      %4088 = vmatmul.bf16.gmra.mxu0 %v1068
      %v4089 = vpop.f32.mrf.mxu0
      %v4090 = vadd.f32 %v4001, %v4089
      %v4091 = vpop.f32.mrf.mxu0
      %v4092 = vadd.f32 %v4003, %v4091
      %4093 = vmatmul.bf16.gmra.mxu0 %v1075
      %v4094 = vpop.f32.mrf.mxu0
      %v4095 = vadd.f32 %v4006, %v4094
      %v4096 = vpop.f32.mrf.mxu0
      %v4097 = vadd.f32 %v4008, %v4096
      %4098 = vmatmul.bf16.gmra.mxu0 %v1082
      %v4099 = vpop.f32.mrf.mxu0
      %v4100 = vadd.f32 %v4011, %v4099
      %v4101 = vpop.f32.mrf.mxu0
      %v4102 = vadd.f32 %v4013, %v4101
      %4103 = vmatmul.bf16.gmra.mxu0 %v1089
      %v4104 = vpop.f32.mrf.mxu0
      %v4105 = vadd.f32 %v4016, %v4104
      %v4106 = vpop.f32.mrf.mxu0
      %v4107 = vadd.f32 %v4018, %v4106
      %4108 = vmatmul.bf16.gmra.mxu0 %v1096
      %v4109 = vpop.f32.mrf.mxu0
      %v4110 = vadd.f32 %v4021, %v4109
      %v4111 = vpop.f32.mrf.mxu0
      %v4112 = vadd.f32 %v4023, %v4111
      %4113 = vmatmul.bf16.gmra.mxu0 %v1103
      %v4114 = vpop.f32.mrf.mxu0
      %v4115 = vadd.f32 %v4026, %v4114
      %v4116 = vpop.f32.mrf.mxu0
      %v4117 = vadd.f32 %v4028, %v4116
      %4118 = vmatmul.bf16.gmra.mxu0 %v1110
      %v4119 = vpop.f32.mrf.mxu0
      %v4120 = vadd.f32 %v4031, %v4119
      %v4121 = vpop.f32.mrf.mxu0
      %v4122 = vadd.f32 %v4033, %v4121
      %4123 = vdwg.mxu0
      %4124 = vmatpush.bf16.msra.mxu0 %v2118
      %4125 = vmatpush.bf16.msra.mxu0 %v2114
      %4126 = vmatpush.bf16.msra.mxu0 %v2110
      %4127 = vmatpush.bf16.msra.mxu0 %v2106
      %4128 = vmatpush.bf16.msra.mxu0 %v2102
      %4129 = vmatpush.bf16.msra.mxu0 %v2098
      %4130 = vmatpush.bf16.msra.mxu0 %v2094
      %4131 = vmatpush.bf16.msra.mxu0 %v2090
      %4132 = vmatmul.bf16.gmra.mxu0 %v1006
      %v4133 = vpop.f32.mrf.mxu0
      %v4134 = vadd.f32 %v4045, %v4133
      %v4135 = vpop.f32.mrf.mxu0
      %v4136 = vadd.f32 %v4047, %v4135
      %4137 = vmatmul.bf16.gmra.mxu0 %v1013
      %v4138 = vpop.f32.mrf.mxu0
      %v4139 = vadd.f32 %v4050, %v4138
      %v4140 = vpop.f32.mrf.mxu0
      %v4141 = vadd.f32 %v4052, %v4140
      %4142 = vmatmul.bf16.gmra.mxu0 %v1020
      %v4143 = vpop.f32.mrf.mxu0
      %v4144 = vadd.f32 %v4055, %v4143
      %v4145 = vpop.f32.mrf.mxu0
      %v4146 = vadd.f32 %v4057, %v4145
      %4147 = vmatmul.bf16.gmra.mxu0 %v1027
      %v4148 = vpop.f32.mrf.mxu0
      %v4149 = vadd.f32 %v4060, %v4148
      %v4150 = vpop.f32.mrf.mxu0
      %v4151 = vadd.f32 %v4062, %v4150
      %4152 = vmatmul.bf16.gmra.mxu0 %v1034
      %v4153 = vpop.f32.mrf.mxu0
      %v4154 = vadd.f32 %v4065, %v4153
      %v4155 = vpop.f32.mrf.mxu0
      %v4156 = vadd.f32 %v4067, %v4155
      %4157 = vmatmul.bf16.gmra.mxu0 %v1041
      %v4158 = vpop.f32.mrf.mxu0
      %v4159 = vadd.f32 %v4070, %v4158
      %v4160 = vpop.f32.mrf.mxu0
      %v4161 = vadd.f32 %v4072, %v4160
      %4162 = vmatmul.bf16.gmra.mxu0 %v1048
      %v4163 = vpop.f32.mrf.mxu0
      %v4164 = vadd.f32 %v4075, %v4163
      %v4165 = vpop.f32.mrf.mxu0
      %v4166 = vadd.f32 %v4077, %v4165
      %4167 = vmatmul.bf16.gmra.mxu0 %v1055
      %v4168 = vpop.f32.mrf.mxu0
      %v4169 = vadd.f32 %v4080, %v4168
      %v4170 = vpop.f32.mrf.mxu0
      %v4171 = vadd.f32 %v4082, %v4170
      %4172 = vmatmul.bf16.gmra.mxu0 %v1062
      %v4173 = vpop.f32.mrf.mxu0
      %v4174 = vadd.f32 %v4085, %v4173
      %v4175 = vpop.f32.mrf.mxu0
      %v4176 = vadd.f32 %v4087, %v4175
      %4177 = vmatmul.bf16.gmra.mxu0 %v1069
      %v4178 = vpop.f32.mrf.mxu0
      %v4179 = vadd.f32 %v4090, %v4178
      %v4180 = vpop.f32.mrf.mxu0
      %v4181 = vadd.f32 %v4092, %v4180
      %4182 = vmatmul.bf16.gmra.mxu0 %v1076
      %v4183 = vpop.f32.mrf.mxu0
      %v4184 = vadd.f32 %v4095, %v4183
      %v4185 = vpop.f32.mrf.mxu0
      %v4186 = vadd.f32 %v4097, %v4185
      %4187 = vmatmul.bf16.gmra.mxu0 %v1083
      %v4188 = vpop.f32.mrf.mxu0
      %v4189 = vadd.f32 %v4100, %v4188
      %v4190 = vpop.f32.mrf.mxu0
      %v4191 = vadd.f32 %v4102, %v4190
      %4192 = vmatmul.bf16.gmra.mxu0 %v1090
      %v4193 = vpop.f32.mrf.mxu0
      %v4194 = vadd.f32 %v4105, %v4193
      %v4195 = vpop.f32.mrf.mxu0
      %v4196 = vadd.f32 %v4107, %v4195
      %4197 = vmatmul.bf16.gmra.mxu0 %v1097
      %v4198 = vpop.f32.mrf.mxu0
      %v4199 = vadd.f32 %v4110, %v4198
      %v4200 = vpop.f32.mrf.mxu0
      %v4201 = vadd.f32 %v4112, %v4200
      %4202 = vmatmul.bf16.gmra.mxu0 %v1104
      %v4203 = vpop.f32.mrf.mxu0
      %v4204 = vadd.f32 %v4115, %v4203
      %v4205 = vpop.f32.mrf.mxu0
      %v4206 = vadd.f32 %v4117, %v4205
      %4207 = vmatmul.bf16.gmra.mxu0 %v1111
      %v4208 = vpop.f32.mrf.mxu0
      %v4209 = vadd.f32 %v4120, %v4208
      %v4210 = vpop.f32.mrf.mxu0
      %v4211 = vadd.f32 %v4122, %v4210
      %4212 = vdwg.mxu0
      %4213 = vmatpush.bf16.msra.mxu0 %v1927
      %4214 = vmatpush.bf16.msra.mxu0 %v1923
      %4215 = vmatpush.bf16.msra.mxu0 %v1919
      %4216 = vmatpush.bf16.msra.mxu0 %v1915
      %4217 = vmatpush.bf16.msra.mxu0 %v1911
      %4218 = vmatpush.bf16.msra.mxu0 %v1907
      %4219 = vmatpush.bf16.msra.mxu0 %v1903
      %4220 = vmatpush.bf16.msra.mxu0 %v1899
      %4221 = vmatmul.bf16.gmra.mxu0 %v1000
      %v4222 = vpop.f32.mrf.mxu0
      %v4223 = vadd.f32 %v643, %v4222
      %v4224 = vpop.f32.mrf.mxu0
      %v4225 = vadd.f32 %v643, %v4224
      %4226 = vmatmul.bf16.gmra.mxu0 %v1007
      %v4227 = vpop.f32.mrf.mxu0
      %v4228 = vadd.f32 %v643, %v4227
      %v4229 = vpop.f32.mrf.mxu0
      %v4230 = vadd.f32 %v643, %v4229
      %4231 = vmatmul.bf16.gmra.mxu0 %v1014
      %v4232 = vpop.f32.mrf.mxu0
      %v4233 = vadd.f32 %v643, %v4232
      %v4234 = vpop.f32.mrf.mxu0
      %v4235 = vadd.f32 %v643, %v4234
      %4236 = vmatmul.bf16.gmra.mxu0 %v1021
      %v4237 = vpop.f32.mrf.mxu0
      %v4238 = vadd.f32 %v643, %v4237
      %v4239 = vpop.f32.mrf.mxu0
      %v4240 = vadd.f32 %v643, %v4239
      %4241 = vmatmul.bf16.gmra.mxu0 %v1028
      %v4242 = vpop.f32.mrf.mxu0
      %v4243 = vadd.f32 %v643, %v4242
      %v4244 = vpop.f32.mrf.mxu0
      %v4245 = vadd.f32 %v643, %v4244
      %4246 = vmatmul.bf16.gmra.mxu0 %v1035
      %v4247 = vpop.f32.mrf.mxu0
      %v4248 = vadd.f32 %v643, %v4247
      %v4249 = vpop.f32.mrf.mxu0
      %v4250 = vadd.f32 %v643, %v4249
      %4251 = vmatmul.bf16.gmra.mxu0 %v1042
      %v4252 = vpop.f32.mrf.mxu0
      %v4253 = vadd.f32 %v643, %v4252
      %v4254 = vpop.f32.mrf.mxu0
      %v4255 = vadd.f32 %v643, %v4254
      %4256 = vmatmul.bf16.gmra.mxu0 %v1049
      %v4257 = vpop.f32.mrf.mxu0
      %v4258 = vadd.f32 %v643, %v4257
      %v4259 = vpop.f32.mrf.mxu0
      %v4260 = vadd.f32 %v643, %v4259
      %4261 = vmatmul.bf16.gmra.mxu0 %v1056
      %v4262 = vpop.f32.mrf.mxu0
      %v4263 = vadd.f32 %v643, %v4262
      %v4264 = vpop.f32.mrf.mxu0
      %v4265 = vadd.f32 %v643, %v4264
      %4266 = vmatmul.bf16.gmra.mxu0 %v1063
      %v4267 = vpop.f32.mrf.mxu0
      %v4268 = vadd.f32 %v643, %v4267
      %v4269 = vpop.f32.mrf.mxu0
      %v4270 = vadd.f32 %v643, %v4269
      %4271 = vmatmul.bf16.gmra.mxu0 %v1070
      %v4272 = vpop.f32.mrf.mxu0
      %v4273 = vadd.f32 %v643, %v4272
      %v4274 = vpop.f32.mrf.mxu0
      %v4275 = vadd.f32 %v643, %v4274
      %4276 = vmatmul.bf16.gmra.mxu0 %v1077
      %v4277 = vpop.f32.mrf.mxu0
      %v4278 = vadd.f32 %v643, %v4277
      %v4279 = vpop.f32.mrf.mxu0
      %v4280 = vadd.f32 %v643, %v4279
      %4281 = vmatmul.bf16.gmra.mxu0 %v1084
      %v4282 = vpop.f32.mrf.mxu0
      %v4283 = vadd.f32 %v643, %v4282
      %v4284 = vpop.f32.mrf.mxu0
      %v4285 = vadd.f32 %v643, %v4284
      %4286 = vmatmul.bf16.gmra.mxu0 %v1091
      %v4287 = vpop.f32.mrf.mxu0
      %v4288 = vadd.f32 %v643, %v4287
      %v4289 = vpop.f32.mrf.mxu0
      %v4290 = vadd.f32 %v643, %v4289
      %4291 = vmatmul.bf16.gmra.mxu0 %v1098
      %v4292 = vpop.f32.mrf.mxu0
      %v4293 = vadd.f32 %v643, %v4292
      %v4294 = vpop.f32.mrf.mxu0
      %v4295 = vadd.f32 %v643, %v4294
      %4296 = vmatmul.bf16.gmra.mxu0 %v1105
      %v4297 = vpop.f32.mrf.mxu0
      %v4298 = vadd.f32 %v643, %v4297
      %v4299 = vpop.f32.mrf.mxu0
      %v4300 = vadd.f32 %v643, %v4299
      %4301 = vdwg.mxu0
      %4302 = vmatpush.bf16.msra.mxu0 %v1959
      %4303 = vmatpush.bf16.msra.mxu0 %v1955
      %4304 = vmatpush.bf16.msra.mxu0 %v1951
      %4305 = vmatpush.bf16.msra.mxu0 %v1947
      %4306 = vmatpush.bf16.msra.mxu0 %v1943
      %4307 = vmatpush.bf16.msra.mxu0 %v1939
      %4308 = vmatpush.bf16.msra.mxu0 %v1935
      %4309 = vmatpush.bf16.msra.mxu0 %v1931
      %4310 = vmatmul.bf16.gmra.mxu0 %v1001
      %v4311 = vpop.f32.mrf.mxu0
      %v4312 = vadd.f32 %v4223, %v4311
      %v4313 = vpop.f32.mrf.mxu0
      %v4314 = vadd.f32 %v4225, %v4313
      %4315 = vmatmul.bf16.gmra.mxu0 %v1008
      %v4316 = vpop.f32.mrf.mxu0
      %v4317 = vadd.f32 %v4228, %v4316
      %v4318 = vpop.f32.mrf.mxu0
      %v4319 = vadd.f32 %v4230, %v4318
      %4320 = vmatmul.bf16.gmra.mxu0 %v1015
      %v4321 = vpop.f32.mrf.mxu0
      %v4322 = vadd.f32 %v4233, %v4321
      %v4323 = vpop.f32.mrf.mxu0
      %v4324 = vadd.f32 %v4235, %v4323
      %4325 = vmatmul.bf16.gmra.mxu0 %v1022
      %v4326 = vpop.f32.mrf.mxu0
      %v4327 = vadd.f32 %v4238, %v4326
      %v4328 = vpop.f32.mrf.mxu0
      %v4329 = vadd.f32 %v4240, %v4328
      %4330 = vmatmul.bf16.gmra.mxu0 %v1029
      %v4331 = vpop.f32.mrf.mxu0
      %v4332 = vadd.f32 %v4243, %v4331
      %v4333 = vpop.f32.mrf.mxu0
      %v4334 = vadd.f32 %v4245, %v4333
      %4335 = vmatmul.bf16.gmra.mxu0 %v1036
      %v4336 = vpop.f32.mrf.mxu0
      %v4337 = vadd.f32 %v4248, %v4336
      %v4338 = vpop.f32.mrf.mxu0
      %v4339 = vadd.f32 %v4250, %v4338
      %4340 = vmatmul.bf16.gmra.mxu0 %v1043
      %v4341 = vpop.f32.mrf.mxu0
      %v4342 = vadd.f32 %v4253, %v4341
      %v4343 = vpop.f32.mrf.mxu0
      %v4344 = vadd.f32 %v4255, %v4343
      %4345 = vmatmul.bf16.gmra.mxu0 %v1050
      %v4346 = vpop.f32.mrf.mxu0
      %v4347 = vadd.f32 %v4258, %v4346
      %v4348 = vpop.f32.mrf.mxu0
      %v4349 = vadd.f32 %v4260, %v4348
      %4350 = vmatmul.bf16.gmra.mxu0 %v1057
      %v4351 = vpop.f32.mrf.mxu0
      %v4352 = vadd.f32 %v4263, %v4351
      %v4353 = vpop.f32.mrf.mxu0
      %v4354 = vadd.f32 %v4265, %v4353
      %4355 = vmatmul.bf16.gmra.mxu0 %v1064
      %v4356 = vpop.f32.mrf.mxu0
      %v4357 = vadd.f32 %v4268, %v4356
      %v4358 = vpop.f32.mrf.mxu0
      %v4359 = vadd.f32 %v4270, %v4358
      %4360 = vmatmul.bf16.gmra.mxu0 %v1071
      %v4361 = vpop.f32.mrf.mxu0
      %v4362 = vadd.f32 %v4273, %v4361
      %v4363 = vpop.f32.mrf.mxu0
      %v4364 = vadd.f32 %v4275, %v4363
      %4365 = vmatmul.bf16.gmra.mxu0 %v1078
      %v4366 = vpop.f32.mrf.mxu0
      %v4367 = vadd.f32 %v4278, %v4366
      %v4368 = vpop.f32.mrf.mxu0
      %v4369 = vadd.f32 %v4280, %v4368
      %4370 = vmatmul.bf16.gmra.mxu0 %v1085
      %v4371 = vpop.f32.mrf.mxu0
      %v4372 = vadd.f32 %v4283, %v4371
      %v4373 = vpop.f32.mrf.mxu0
      %v4374 = vadd.f32 %v4285, %v4373
      %4375 = vmatmul.bf16.gmra.mxu0 %v1092
      %v4376 = vpop.f32.mrf.mxu0
      %v4377 = vadd.f32 %v4288, %v4376
      %v4378 = vpop.f32.mrf.mxu0
      %v4379 = vadd.f32 %v4290, %v4378
      %4380 = vmatmul.bf16.gmra.mxu0 %v1099
      %v4381 = vpop.f32.mrf.mxu0
      %v4382 = vadd.f32 %v4293, %v4381
      %v4383 = vpop.f32.mrf.mxu0
      %v4384 = vadd.f32 %v4295, %v4383
      %4385 = vmatmul.bf16.gmra.mxu0 %v1106
      %v4386 = vpop.f32.mrf.mxu0
      %v4387 = vadd.f32 %v4298, %v4386
      %v4388 = vpop.f32.mrf.mxu0
      %v4389 = vadd.f32 %v4300, %v4388
      %4390 = vdwg.mxu0
      %4391 = vmatpush.bf16.msra.mxu0 %v1991
      %4392 = vmatpush.bf16.msra.mxu0 %v1987
      %4393 = vmatpush.bf16.msra.mxu0 %v1983
      %4394 = vmatpush.bf16.msra.mxu0 %v1979
      %4395 = vmatpush.bf16.msra.mxu0 %v1975
      %4396 = vmatpush.bf16.msra.mxu0 %v1971
      %4397 = vmatpush.bf16.msra.mxu0 %v1967
      %4398 = vmatpush.bf16.msra.mxu0 %v1963
      %4399 = vmatmul.bf16.gmra.mxu0 %v1002
      %v4400 = vpop.f32.mrf.mxu0
      %v4401 = vadd.f32 %v4312, %v4400
      %v4402 = vpop.f32.mrf.mxu0
      %v4403 = vadd.f32 %v4314, %v4402
      %4404 = vmatmul.bf16.gmra.mxu0 %v1009
      %v4405 = vpop.f32.mrf.mxu0
      %v4406 = vadd.f32 %v4317, %v4405
      %v4407 = vpop.f32.mrf.mxu0
      %v4408 = vadd.f32 %v4319, %v4407
      %4409 = vmatmul.bf16.gmra.mxu0 %v1016
      %v4410 = vpop.f32.mrf.mxu0
      %v4411 = vadd.f32 %v4322, %v4410
      %v4412 = vpop.f32.mrf.mxu0
      %v4413 = vadd.f32 %v4324, %v4412
      %4414 = vmatmul.bf16.gmra.mxu0 %v1023
      %v4415 = vpop.f32.mrf.mxu0
      %v4416 = vadd.f32 %v4327, %v4415
      %v4417 = vpop.f32.mrf.mxu0
      %v4418 = vadd.f32 %v4329, %v4417
      %4419 = vmatmul.bf16.gmra.mxu0 %v1030
      %v4420 = vpop.f32.mrf.mxu0
      %v4421 = vadd.f32 %v4332, %v4420
      %v4422 = vpop.f32.mrf.mxu0
      %v4423 = vadd.f32 %v4334, %v4422
      %4424 = vmatmul.bf16.gmra.mxu0 %v1037
      %v4425 = vpop.f32.mrf.mxu0
      %v4426 = vadd.f32 %v4337, %v4425
      %v4427 = vpop.f32.mrf.mxu0
      %v4428 = vadd.f32 %v4339, %v4427
      %4429 = vmatmul.bf16.gmra.mxu0 %v1044
      %v4430 = vpop.f32.mrf.mxu0
      %v4431 = vadd.f32 %v4342, %v4430
      %v4432 = vpop.f32.mrf.mxu0
      %v4433 = vadd.f32 %v4344, %v4432
      %4434 = vmatmul.bf16.gmra.mxu0 %v1051
      %v4435 = vpop.f32.mrf.mxu0
      %v4436 = vadd.f32 %v4347, %v4435
      %v4437 = vpop.f32.mrf.mxu0
      %v4438 = vadd.f32 %v4349, %v4437
      %4439 = vmatmul.bf16.gmra.mxu0 %v1058
      %v4440 = vpop.f32.mrf.mxu0
      %v4441 = vadd.f32 %v4352, %v4440
      %v4442 = vpop.f32.mrf.mxu0
      %v4443 = vadd.f32 %v4354, %v4442
      %4444 = vmatmul.bf16.gmra.mxu0 %v1065
      %v4445 = vpop.f32.mrf.mxu0
      %v4446 = vadd.f32 %v4357, %v4445
      %v4447 = vpop.f32.mrf.mxu0
      %v4448 = vadd.f32 %v4359, %v4447
      %4449 = vmatmul.bf16.gmra.mxu0 %v1072
      %v4450 = vpop.f32.mrf.mxu0
      %v4451 = vadd.f32 %v4362, %v4450
      %v4452 = vpop.f32.mrf.mxu0
      %v4453 = vadd.f32 %v4364, %v4452
      %4454 = vmatmul.bf16.gmra.mxu0 %v1079
      %v4455 = vpop.f32.mrf.mxu0
      %v4456 = vadd.f32 %v4367, %v4455
      %v4457 = vpop.f32.mrf.mxu0
      %v4458 = vadd.f32 %v4369, %v4457
      %4459 = vmatmul.bf16.gmra.mxu0 %v1086
      %v4460 = vpop.f32.mrf.mxu0
      %v4461 = vadd.f32 %v4372, %v4460
      %v4462 = vpop.f32.mrf.mxu0
      %v4463 = vadd.f32 %v4374, %v4462
      %4464 = vmatmul.bf16.gmra.mxu0 %v1093
      %v4465 = vpop.f32.mrf.mxu0
      %v4466 = vadd.f32 %v4377, %v4465
      %v4467 = vpop.f32.mrf.mxu0
      %v4468 = vadd.f32 %v4379, %v4467
      %4469 = vmatmul.bf16.gmra.mxu0 %v1100
      %v4470 = vpop.f32.mrf.mxu0
      %v4471 = vadd.f32 %v4382, %v4470
      %v4472 = vpop.f32.mrf.mxu0
      %v4473 = vadd.f32 %v4384, %v4472
      %4474 = vmatmul.bf16.gmra.mxu0 %v1107
      %v4475 = vpop.f32.mrf.mxu0
      %v4476 = vadd.f32 %v4387, %v4475
      %v4477 = vpop.f32.mrf.mxu0
      %v4478 = vadd.f32 %v4389, %v4477
      %4479 = vdwg.mxu0
      %4480 = vmatpush.bf16.msra.mxu0 %v2023
      %4481 = vmatpush.bf16.msra.mxu0 %v2019
      %4482 = vmatpush.bf16.msra.mxu0 %v2015
      %4483 = vmatpush.bf16.msra.mxu0 %v2011
      %4484 = vmatpush.bf16.msra.mxu0 %v2007
      %4485 = vmatpush.bf16.msra.mxu0 %v2003
      %4486 = vmatpush.bf16.msra.mxu0 %v1999
      %4487 = vmatpush.bf16.msra.mxu0 %v1995
      %4488 = vmatmul.bf16.gmra.mxu0 %v1003
      %v4489 = vpop.f32.mrf.mxu0
      %v4490 = vadd.f32 %v4401, %v4489
      %v4491 = vpop.f32.mrf.mxu0
      %v4492 = vadd.f32 %v4403, %v4491
      %4493 = vmatmul.bf16.gmra.mxu0 %v1010
      %v4494 = vpop.f32.mrf.mxu0
      %v4495 = vadd.f32 %v4406, %v4494
      %v4496 = vpop.f32.mrf.mxu0
      %v4497 = vadd.f32 %v4408, %v4496
      %4498 = vmatmul.bf16.gmra.mxu0 %v1017
      %v4499 = vpop.f32.mrf.mxu0
      %v4500 = vadd.f32 %v4411, %v4499
      %v4501 = vpop.f32.mrf.mxu0
      %v4502 = vadd.f32 %v4413, %v4501
      %4503 = vmatmul.bf16.gmra.mxu0 %v1024
      %v4504 = vpop.f32.mrf.mxu0
      %v4505 = vadd.f32 %v4416, %v4504
      %v4506 = vpop.f32.mrf.mxu0
      %v4507 = vadd.f32 %v4418, %v4506
      %4508 = vmatmul.bf16.gmra.mxu0 %v1031
      %v4509 = vpop.f32.mrf.mxu0
      %v4510 = vadd.f32 %v4421, %v4509
      %v4511 = vpop.f32.mrf.mxu0
      %v4512 = vadd.f32 %v4423, %v4511
      %4513 = vmatmul.bf16.gmra.mxu0 %v1038
      %v4514 = vpop.f32.mrf.mxu0
      %v4515 = vadd.f32 %v4426, %v4514
      %v4516 = vpop.f32.mrf.mxu0
      %v4517 = vadd.f32 %v4428, %v4516
      %4518 = vmatmul.bf16.gmra.mxu0 %v1045
      %v4519 = vpop.f32.mrf.mxu0
      %v4520 = vadd.f32 %v4431, %v4519
      %v4521 = vpop.f32.mrf.mxu0
      %v4522 = vadd.f32 %v4433, %v4521
      %4523 = vmatmul.bf16.gmra.mxu0 %v1052
      %v4524 = vpop.f32.mrf.mxu0
      %v4525 = vadd.f32 %v4436, %v4524
      %v4526 = vpop.f32.mrf.mxu0
      %v4527 = vadd.f32 %v4438, %v4526
      %4528 = vmatmul.bf16.gmra.mxu0 %v1059
      %v4529 = vpop.f32.mrf.mxu0
      %v4530 = vadd.f32 %v4441, %v4529
      %v4531 = vpop.f32.mrf.mxu0
      %v4532 = vadd.f32 %v4443, %v4531
      %4533 = vmatmul.bf16.gmra.mxu0 %v1066
      %v4534 = vpop.f32.mrf.mxu0
      %v4535 = vadd.f32 %v4446, %v4534
      %v4536 = vpop.f32.mrf.mxu0
      %v4537 = vadd.f32 %v4448, %v4536
      %4538 = vmatmul.bf16.gmra.mxu0 %v1073
      %v4539 = vpop.f32.mrf.mxu0
      %v4540 = vadd.f32 %v4451, %v4539
      %v4541 = vpop.f32.mrf.mxu0
      %v4542 = vadd.f32 %v4453, %v4541
      %4543 = vmatmul.bf16.gmra.mxu0 %v1080
      %v4544 = vpop.f32.mrf.mxu0
      %v4545 = vadd.f32 %v4456, %v4544
      %v4546 = vpop.f32.mrf.mxu0
      %v4547 = vadd.f32 %v4458, %v4546
      %4548 = vmatmul.bf16.gmra.mxu0 %v1087
      %v4549 = vpop.f32.mrf.mxu0
      %v4550 = vadd.f32 %v4461, %v4549
      %v4551 = vpop.f32.mrf.mxu0
      %v4552 = vadd.f32 %v4463, %v4551
      %4553 = vmatmul.bf16.gmra.mxu0 %v1094
      %v4554 = vpop.f32.mrf.mxu0
      %v4555 = vadd.f32 %v4466, %v4554
      %v4556 = vpop.f32.mrf.mxu0
      %v4557 = vadd.f32 %v4468, %v4556
      %4558 = vmatmul.bf16.gmra.mxu0 %v1101
      %v4559 = vpop.f32.mrf.mxu0
      %v4560 = vadd.f32 %v4471, %v4559
      %v4561 = vpop.f32.mrf.mxu0
      %v4562 = vadd.f32 %v4473, %v4561
      %4563 = vmatmul.bf16.gmra.mxu0 %v1108
      %v4564 = vpop.f32.mrf.mxu0
      %v4565 = vadd.f32 %v4476, %v4564
      %v4566 = vpop.f32.mrf.mxu0
      %v4567 = vadd.f32 %v4478, %v4566
      %4568 = vdwg.mxu0
      %4569 = vmatpush.bf16.msra.mxu0 %v2055
      %4570 = vmatpush.bf16.msra.mxu0 %v2051
      %4571 = vmatpush.bf16.msra.mxu0 %v2047
      %4572 = vmatpush.bf16.msra.mxu0 %v2043
      %4573 = vmatpush.bf16.msra.mxu0 %v2039
      %4574 = vmatpush.bf16.msra.mxu0 %v2035
      %4575 = vmatpush.bf16.msra.mxu0 %v2031
      %4576 = vmatpush.bf16.msra.mxu0 %v2027
      %4577 = vmatmul.bf16.gmra.mxu0 %v1004
      %v4578 = vpop.f32.mrf.mxu0
      %v4579 = vadd.f32 %v4490, %v4578
      %v4580 = vpop.f32.mrf.mxu0
      %v4581 = vadd.f32 %v4492, %v4580
      %4582 = vmatmul.bf16.gmra.mxu0 %v1011
      %v4583 = vpop.f32.mrf.mxu0
      %v4584 = vadd.f32 %v4495, %v4583
      %v4585 = vpop.f32.mrf.mxu0
      %v4586 = vadd.f32 %v4497, %v4585
      %4587 = vmatmul.bf16.gmra.mxu0 %v1018
      %v4588 = vpop.f32.mrf.mxu0
      %v4589 = vadd.f32 %v4500, %v4588
      %v4590 = vpop.f32.mrf.mxu0
      %v4591 = vadd.f32 %v4502, %v4590
      %4592 = vmatmul.bf16.gmra.mxu0 %v1025
      %v4593 = vpop.f32.mrf.mxu0
      %v4594 = vadd.f32 %v4505, %v4593
      %v4595 = vpop.f32.mrf.mxu0
      %v4596 = vadd.f32 %v4507, %v4595
      %4597 = vmatmul.bf16.gmra.mxu0 %v1032
      %v4598 = vpop.f32.mrf.mxu0
      %v4599 = vadd.f32 %v4510, %v4598
      %v4600 = vpop.f32.mrf.mxu0
      %v4601 = vadd.f32 %v4512, %v4600
      %4602 = vmatmul.bf16.gmra.mxu0 %v1039
      %v4603 = vpop.f32.mrf.mxu0
      %v4604 = vadd.f32 %v4515, %v4603
      %v4605 = vpop.f32.mrf.mxu0
      %v4606 = vadd.f32 %v4517, %v4605
      %4607 = vmatmul.bf16.gmra.mxu0 %v1046
      %v4608 = vpop.f32.mrf.mxu0
      %v4609 = vadd.f32 %v4520, %v4608
      %v4610 = vpop.f32.mrf.mxu0
      %v4611 = vadd.f32 %v4522, %v4610
      %4612 = vmatmul.bf16.gmra.mxu0 %v1053
      %v4613 = vpop.f32.mrf.mxu0
      %v4614 = vadd.f32 %v4525, %v4613
      %v4615 = vpop.f32.mrf.mxu0
      %v4616 = vadd.f32 %v4527, %v4615
      %4617 = vmatmul.bf16.gmra.mxu0 %v1060
      %v4618 = vpop.f32.mrf.mxu0
      %v4619 = vadd.f32 %v4530, %v4618
      %v4620 = vpop.f32.mrf.mxu0
      %v4621 = vadd.f32 %v4532, %v4620
      %4622 = vmatmul.bf16.gmra.mxu0 %v1067
      %v4623 = vpop.f32.mrf.mxu0
      %v4624 = vadd.f32 %v4535, %v4623
      %v4625 = vpop.f32.mrf.mxu0
      %v4626 = vadd.f32 %v4537, %v4625
      %4627 = vmatmul.bf16.gmra.mxu0 %v1074
      %v4628 = vpop.f32.mrf.mxu0
      %v4629 = vadd.f32 %v4540, %v4628
      %v4630 = vpop.f32.mrf.mxu0
      %v4631 = vadd.f32 %v4542, %v4630
      %4632 = vmatmul.bf16.gmra.mxu0 %v1081
      %v4633 = vpop.f32.mrf.mxu0
      %v4634 = vadd.f32 %v4545, %v4633
      %v4635 = vpop.f32.mrf.mxu0
      %v4636 = vadd.f32 %v4547, %v4635
      %4637 = vmatmul.bf16.gmra.mxu0 %v1088
      %v4638 = vpop.f32.mrf.mxu0
      %v4639 = vadd.f32 %v4550, %v4638
      %v4640 = vpop.f32.mrf.mxu0
      %v4641 = vadd.f32 %v4552, %v4640
      %4642 = vmatmul.bf16.gmra.mxu0 %v1095
      %v4643 = vpop.f32.mrf.mxu0
      %v4644 = vadd.f32 %v4555, %v4643
      %v4645 = vpop.f32.mrf.mxu0
      %v4646 = vadd.f32 %v4557, %v4645
      %4647 = vmatmul.bf16.gmra.mxu0 %v1102
      %v4648 = vpop.f32.mrf.mxu0
      %v4649 = vadd.f32 %v4560, %v4648
      %v4650 = vpop.f32.mrf.mxu0
      %v4651 = vadd.f32 %v4562, %v4650
      %4652 = vmatmul.bf16.gmra.mxu0 %v1109
      %v4653 = vpop.f32.mrf.mxu0
      %v4654 = vadd.f32 %v4565, %v4653
      %v4655 = vpop.f32.mrf.mxu0
      %v4656 = vadd.f32 %v4567, %v4655
      %4657 = vdwg.mxu0
      %4658 = vmatpush.bf16.msra.mxu0 %v2087
      %4659 = vmatpush.bf16.msra.mxu0 %v2083
      %4660 = vmatpush.bf16.msra.mxu0 %v2079
      %4661 = vmatpush.bf16.msra.mxu0 %v2075
      %4662 = vmatpush.bf16.msra.mxu0 %v2071
      %4663 = vmatpush.bf16.msra.mxu0 %v2067
      %4664 = vmatpush.bf16.msra.mxu0 %v2063
      %4665 = vmatpush.bf16.msra.mxu0 %v2059
      %4666 = vmatmul.bf16.gmra.mxu0 %v1005
      %v4667 = vpop.f32.mrf.mxu0
      %v4668 = vadd.f32 %v4579, %v4667
      %v4669 = vpop.f32.mrf.mxu0
      %v4670 = vadd.f32 %v4581, %v4669
      %4671 = vmatmul.bf16.gmra.mxu0 %v1012
      %v4672 = vpop.f32.mrf.mxu0
      %v4673 = vadd.f32 %v4584, %v4672
      %v4674 = vpop.f32.mrf.mxu0
      %v4675 = vadd.f32 %v4586, %v4674
      %4676 = vmatmul.bf16.gmra.mxu0 %v1019
      %v4677 = vpop.f32.mrf.mxu0
      %v4678 = vadd.f32 %v4589, %v4677
      %v4679 = vpop.f32.mrf.mxu0
      %v4680 = vadd.f32 %v4591, %v4679
      %4681 = vmatmul.bf16.gmra.mxu0 %v1026
      %v4682 = vpop.f32.mrf.mxu0
      %v4683 = vadd.f32 %v4594, %v4682
      %v4684 = vpop.f32.mrf.mxu0
      %v4685 = vadd.f32 %v4596, %v4684
      %4686 = vmatmul.bf16.gmra.mxu0 %v1033
      %v4687 = vpop.f32.mrf.mxu0
      %v4688 = vadd.f32 %v4599, %v4687
      %v4689 = vpop.f32.mrf.mxu0
      %v4690 = vadd.f32 %v4601, %v4689
      %4691 = vmatmul.bf16.gmra.mxu0 %v1040
      %v4692 = vpop.f32.mrf.mxu0
      %v4693 = vadd.f32 %v4604, %v4692
      %v4694 = vpop.f32.mrf.mxu0
      %v4695 = vadd.f32 %v4606, %v4694
      %4696 = vmatmul.bf16.gmra.mxu0 %v1047
      %v4697 = vpop.f32.mrf.mxu0
      %v4698 = vadd.f32 %v4609, %v4697
      %v4699 = vpop.f32.mrf.mxu0
      %v4700 = vadd.f32 %v4611, %v4699
      %4701 = vmatmul.bf16.gmra.mxu0 %v1054
      %v4702 = vpop.f32.mrf.mxu0
      %v4703 = vadd.f32 %v4614, %v4702
      %v4704 = vpop.f32.mrf.mxu0
      %v4705 = vadd.f32 %v4616, %v4704
      %4706 = vmatmul.bf16.gmra.mxu0 %v1061
      %v4707 = vpop.f32.mrf.mxu0
      %v4708 = vadd.f32 %v4619, %v4707
      %v4709 = vpop.f32.mrf.mxu0
      %v4710 = vadd.f32 %v4621, %v4709
      %4711 = vmatmul.bf16.gmra.mxu0 %v1068
      %v4712 = vpop.f32.mrf.mxu0
      %v4713 = vadd.f32 %v4624, %v4712
      %v4714 = vpop.f32.mrf.mxu0
      %v4715 = vadd.f32 %v4626, %v4714
      %4716 = vmatmul.bf16.gmra.mxu0 %v1075
      %v4717 = vpop.f32.mrf.mxu0
      %v4718 = vadd.f32 %v4629, %v4717
      %v4719 = vpop.f32.mrf.mxu0
      %v4720 = vadd.f32 %v4631, %v4719
      %4721 = vmatmul.bf16.gmra.mxu0 %v1082
      %v4722 = vpop.f32.mrf.mxu0
      %v4723 = vadd.f32 %v4634, %v4722
      %v4724 = vpop.f32.mrf.mxu0
      %v4725 = vadd.f32 %v4636, %v4724
      %4726 = vmatmul.bf16.gmra.mxu0 %v1089
      %v4727 = vpop.f32.mrf.mxu0
      %v4728 = vadd.f32 %v4639, %v4727
      %v4729 = vpop.f32.mrf.mxu0
      %v4730 = vadd.f32 %v4641, %v4729
      %4731 = vmatmul.bf16.gmra.mxu0 %v1096
      %v4732 = vpop.f32.mrf.mxu0
      %v4733 = vadd.f32 %v4644, %v4732
      %v4734 = vpop.f32.mrf.mxu0
      %v4735 = vadd.f32 %v4646, %v4734
      %4736 = vmatmul.bf16.gmra.mxu0 %v1103
      %v4737 = vpop.f32.mrf.mxu0
      %v4738 = vadd.f32 %v4649, %v4737
      %v4739 = vpop.f32.mrf.mxu0
      %v4740 = vadd.f32 %v4651, %v4739
      %4741 = vmatmul.bf16.gmra.mxu0 %v1110
      %v4742 = vpop.f32.mrf.mxu0
      %v4743 = vadd.f32 %v4654, %v4742
      %v4744 = vpop.f32.mrf.mxu0
      %v4745 = vadd.f32 %v4656, %v4744
      %4746 = vdwg.mxu0
      %4747 = vmatpush.bf16.msra.mxu0 %v2119
      %4748 = vmatpush.bf16.msra.mxu0 %v2115
      %4749 = vmatpush.bf16.msra.mxu0 %v2111
      %4750 = vmatpush.bf16.msra.mxu0 %v2107
      %4751 = vmatpush.bf16.msra.mxu0 %v2103
      %4752 = vmatpush.bf16.msra.mxu0 %v2099
      %4753 = vmatpush.bf16.msra.mxu0 %v2095
      %4754 = vmatpush.bf16.msra.mxu0 %v2091
      %4755 = vmatmul.bf16.gmra.mxu0 %v1006
      %v4756 = vpop.f32.mrf.mxu0
      %v4757 = vadd.f32 %v4668, %v4756
      %v4758 = vpop.f32.mrf.mxu0
      %v4759 = vadd.f32 %v4670, %v4758
      %4760 = vmatmul.bf16.gmra.mxu0 %v1013
      %v4761 = vpop.f32.mrf.mxu0
      %v4762 = vadd.f32 %v4673, %v4761
      %v4763 = vpop.f32.mrf.mxu0
      %v4764 = vadd.f32 %v4675, %v4763
      %4765 = vmatmul.bf16.gmra.mxu0 %v1020
      %v4766 = vpop.f32.mrf.mxu0
      %v4767 = vadd.f32 %v4678, %v4766
      %v4768 = vpop.f32.mrf.mxu0
      %v4769 = vadd.f32 %v4680, %v4768
      %4770 = vmatmul.bf16.gmra.mxu0 %v1027
      %v4771 = vpop.f32.mrf.mxu0
      %v4772 = vadd.f32 %v4683, %v4771
      %v4773 = vpop.f32.mrf.mxu0
      %v4774 = vadd.f32 %v4685, %v4773
      %4775 = vmatmul.bf16.gmra.mxu0 %v1034
      %v4776 = vpop.f32.mrf.mxu0
      %v4777 = vadd.f32 %v4688, %v4776
      %v4778 = vpop.f32.mrf.mxu0
      %v4779 = vadd.f32 %v4690, %v4778
      %4780 = vmatmul.bf16.gmra.mxu0 %v1041
      %v4781 = vpop.f32.mrf.mxu0
      %v4782 = vadd.f32 %v4693, %v4781
      %v4783 = vpop.f32.mrf.mxu0
      %v4784 = vadd.f32 %v4695, %v4783
      %4785 = vmatmul.bf16.gmra.mxu0 %v1048
      %v4786 = vpop.f32.mrf.mxu0
      %v4787 = vadd.f32 %v4698, %v4786
      %v4788 = vpop.f32.mrf.mxu0
      %v4789 = vadd.f32 %v4700, %v4788
      %4790 = vmatmul.bf16.gmra.mxu0 %v1055
      %v4791 = vpop.f32.mrf.mxu0
      %v4792 = vadd.f32 %v4703, %v4791
      %v4793 = vpop.f32.mrf.mxu0
      %v4794 = vadd.f32 %v4705, %v4793
      %4795 = vmatmul.bf16.gmra.mxu0 %v1062
      %v4796 = vpop.f32.mrf.mxu0
      %v4797 = vadd.f32 %v4708, %v4796
      %v4798 = vpop.f32.mrf.mxu0
      %v4799 = vadd.f32 %v4710, %v4798
      %4800 = vmatmul.bf16.gmra.mxu0 %v1069
      %v4801 = vpop.f32.mrf.mxu0
      %v4802 = vadd.f32 %v4713, %v4801
      %v4803 = vpop.f32.mrf.mxu0
      %v4804 = vadd.f32 %v4715, %v4803
      %4805 = vmatmul.bf16.gmra.mxu0 %v1076
      %v4806 = vpop.f32.mrf.mxu0
      %v4807 = vadd.f32 %v4718, %v4806
      %v4808 = vpop.f32.mrf.mxu0
      %v4809 = vadd.f32 %v4720, %v4808
      %4810 = vmatmul.bf16.gmra.mxu0 %v1083
      %v4811 = vpop.f32.mrf.mxu0
      %v4812 = vadd.f32 %v4723, %v4811
      %v4813 = vpop.f32.mrf.mxu0
      %v4814 = vadd.f32 %v4725, %v4813
      %4815 = vmatmul.bf16.gmra.mxu0 %v1090
      %v4816 = vpop.f32.mrf.mxu0
      %v4817 = vadd.f32 %v4728, %v4816
      %v4818 = vpop.f32.mrf.mxu0
      %v4819 = vadd.f32 %v4730, %v4818
      %4820 = vmatmul.bf16.gmra.mxu0 %v1097
      %v4821 = vpop.f32.mrf.mxu0
      %v4822 = vadd.f32 %v4733, %v4821
      %v4823 = vpop.f32.mrf.mxu0
      %v4824 = vadd.f32 %v4735, %v4823
      %4825 = vmatmul.bf16.gmra.mxu0 %v1104
      %v4826 = vpop.f32.mrf.mxu0
      %v4827 = vadd.f32 %v4738, %v4826
      %v4828 = vpop.f32.mrf.mxu0
      %v4829 = vadd.f32 %v4740, %v4828
      %4830 = vmatmul.bf16.gmra.mxu0 %v1111
      %v4831 = vpop.f32.mrf.mxu0
      %v4832 = vadd.f32 %v4743, %v4831
      %v4833 = vpop.f32.mrf.mxu0
      %v4834 = vadd.f32 %v4745, %v4833
      %4835 = vdwg.mxu0
      %v4836 = vmax.f32 %v2888, 0.0
      %v4837 = vmax.f32 %v3511, 0.0
      %v4838 = vmax.f32 %v4134, 0.0
      %v4839 = vmax.f32 %v4757, 0.0
      %v4840 = vmax.f32 %v2890, 0.0
      %v4841 = vmax.f32 %v3513, 0.0
      %v4842 = vmax.f32 %v4136, 0.0
      %v4843 = vmax.f32 %v4759, 0.0
      %v4844 = vmax.f32 %v2893, 0.0
      %v4845 = vmax.f32 %v3516, 0.0
      %v4846 = vmax.f32 %v4139, 0.0
      %v4847 = vmax.f32 %v4762, 0.0
      %v4848 = vmax.f32 %v2895, 0.0
      %v4849 = vmax.f32 %v3518, 0.0
      %v4850 = vmax.f32 %v4141, 0.0
      %v4851 = vmax.f32 %v4764, 0.0
      %v4852 = vmax.f32 %v2898, 0.0
      %v4853 = vmax.f32 %v3521, 0.0
      %v4854 = vmax.f32 %v4144, 0.0
      %v4855 = vmax.f32 %v4767, 0.0
      %v4856 = vmax.f32 %v2900, 0.0
      %v4857 = vmax.f32 %v3523, 0.0
      %v4858 = vmax.f32 %v4146, 0.0
      %v4859 = vmax.f32 %v4769, 0.0
      %v4860 = vmax.f32 %v2903, 0.0
      %v4861 = vmax.f32 %v3526, 0.0
      %v4862 = vmax.f32 %v4149, 0.0
      %v4863 = vmax.f32 %v4772, 0.0
      %v4864 = vmax.f32 %v2905, 0.0
      %v4865 = vmax.f32 %v3528, 0.0
      %v4866 = vmax.f32 %v4151, 0.0
      %v4867 = vmax.f32 %v4774, 0.0
      %v4868 = vmax.f32 %v2908, 0.0
      %v4869 = vmax.f32 %v3531, 0.0
      %v4870 = vmax.f32 %v4154, 0.0
      %v4871 = vmax.f32 %v4777, 0.0
      %v4872 = vmax.f32 %v2910, 0.0
      %v4873 = vmax.f32 %v3533, 0.0
      %v4874 = vmax.f32 %v4156, 0.0
      %v4875 = vmax.f32 %v4779, 0.0
      %v4876 = vmax.f32 %v2913, 0.0
      %v4877 = vmax.f32 %v3536, 0.0
      %v4878 = vmax.f32 %v4159, 0.0
      %v4879 = vmax.f32 %v4782, 0.0
      %v4880 = vmax.f32 %v2915, 0.0
      %v4881 = vmax.f32 %v3538, 0.0
      %v4882 = vmax.f32 %v4161, 0.0
      %v4883 = vmax.f32 %v4784, 0.0
      %v4884 = vmax.f32 %v2918, 0.0
      %v4885 = vmax.f32 %v3541, 0.0
      %v4886 = vmax.f32 %v4164, 0.0
      %v4887 = vmax.f32 %v4787, 0.0
      %v4888 = vmax.f32 %v2920, 0.0
      %v4889 = vmax.f32 %v3543, 0.0
      %v4890 = vmax.f32 %v4166, 0.0
      %v4891 = vmax.f32 %v4789, 0.0
      %v4892 = vmax.f32 %v2923, 0.0
      %v4893 = vmax.f32 %v3546, 0.0
      %v4894 = vmax.f32 %v4169, 0.0
      %v4895 = vmax.f32 %v4792, 0.0
      %v4896 = vmax.f32 %v2925, 0.0
      %v4897 = vmax.f32 %v3548, 0.0
      %v4898 = vmax.f32 %v4171, 0.0
      %v4899 = vmax.f32 %v4794, 0.0
      %v4900 = vmax.f32 %v2928, 0.0
      %v4901 = vmax.f32 %v3551, 0.0
      %v4902 = vmax.f32 %v4174, 0.0
      %v4903 = vmax.f32 %v4797, 0.0
      %v4904 = vmax.f32 %v2930, 0.0
      %v4905 = vmax.f32 %v3553, 0.0
      %v4906 = vmax.f32 %v4176, 0.0
      %v4907 = vmax.f32 %v4799, 0.0
      %v4908 = vmax.f32 %v2933, 0.0
      %v4909 = vmax.f32 %v3556, 0.0
      %v4910 = vmax.f32 %v4179, 0.0
      %v4911 = vmax.f32 %v4802, 0.0
      %v4912 = vmax.f32 %v2935, 0.0
      %v4913 = vmax.f32 %v3558, 0.0
      %v4914 = vmax.f32 %v4181, 0.0
      %v4915 = vmax.f32 %v4804, 0.0
      %v4916 = vmax.f32 %v2938, 0.0
      %v4917 = vmax.f32 %v3561, 0.0
      %v4918 = vmax.f32 %v4184, 0.0
      %v4919 = vmax.f32 %v4807, 0.0
      %v4920 = vmax.f32 %v2940, 0.0
      %v4921 = vmax.f32 %v3563, 0.0
      %v4922 = vmax.f32 %v4186, 0.0
      %v4923 = vmax.f32 %v4809, 0.0
      %v4924 = vmax.f32 %v2943, 0.0
      %v4925 = vmax.f32 %v3566, 0.0
      %v4926 = vmax.f32 %v4189, 0.0
      %v4927 = vmax.f32 %v4812, 0.0
      %v4928 = vmax.f32 %v2945, 0.0
      %v4929 = vmax.f32 %v3568, 0.0
      %v4930 = vmax.f32 %v4191, 0.0
      %v4931 = vmax.f32 %v4814, 0.0
      %v4932 = vmax.f32 %v2948, 0.0
      %v4933 = vmax.f32 %v3571, 0.0
      %v4934 = vmax.f32 %v4194, 0.0
      %v4935 = vmax.f32 %v4817, 0.0
      %v4936 = vmax.f32 %v2950, 0.0
      %v4937 = vmax.f32 %v3573, 0.0
      %v4938 = vmax.f32 %v4196, 0.0
      %v4939 = vmax.f32 %v4819, 0.0
      %v4940 = vmax.f32 %v2953, 0.0
      %v4941 = vmax.f32 %v3576, 0.0
      %v4942 = vmax.f32 %v4199, 0.0
      %v4943 = vmax.f32 %v4822, 0.0
      %v4944 = vmax.f32 %v2955, 0.0
      %v4945 = vmax.f32 %v3578, 0.0
      %v4946 = vmax.f32 %v4201, 0.0
      %v4947 = vmax.f32 %v4824, 0.0
      %v4948 = vmax.f32 %v2958, 0.0
      %v4949 = vmax.f32 %v3581, 0.0
      %v4950 = vmax.f32 %v4204, 0.0
      %v4951 = vmax.f32 %v4827, 0.0
      %v4952 = vmax.f32 %v2960, 0.0
      %v4953 = vmax.f32 %v3583, 0.0
      %v4954 = vmax.f32 %v4206, 0.0
      %v4955 = vmax.f32 %v4829, 0.0
      %v4956 = vmax.f32 %v2963, 0.0
      %v4957 = vmax.f32 %v3586, 0.0
      %v4958 = vmax.f32 %v4209, 0.0
      %v4959 = vmax.f32 %v4832, 0.0
      %v4960 = vmax.f32 %v2965, 0.0
      %v4961 = vmax.f32 %v3588, 0.0
      %v4962 = vmax.f32 %v4211, 0.0
      %v4963 = vmax.f32 %v4834, 0.0
      %v4964 = vpack.c.bf16 %v4840, %v4836
      %v4965 = vpack.c.bf16 %v4841, %v4837
      %v4966 = vpack.c.bf16 %v4842, %v4838
      %v4967 = vpack.c.bf16 %v4843, %v4839
      %v4968 = vpack.c.bf16 %v4848, %v4844
      %v4969 = vpack.c.bf16 %v4849, %v4845
      %v4970 = vpack.c.bf16 %v4850, %v4846
      %v4971 = vpack.c.bf16 %v4851, %v4847
      %v4972 = vpack.c.bf16 %v4856, %v4852
      %v4973 = vpack.c.bf16 %v4857, %v4853
      %v4974 = vpack.c.bf16 %v4858, %v4854
      %v4975 = vpack.c.bf16 %v4859, %v4855
      %v4976 = vpack.c.bf16 %v4864, %v4860
      %v4977 = vpack.c.bf16 %v4865, %v4861
      %v4978 = vpack.c.bf16 %v4866, %v4862
      %v4979 = vpack.c.bf16 %v4867, %v4863
      %v4980 = vpack.c.bf16 %v4872, %v4868
      %v4981 = vpack.c.bf16 %v4873, %v4869
      %v4982 = vpack.c.bf16 %v4874, %v4870
      %v4983 = vpack.c.bf16 %v4875, %v4871
      %v4984 = vpack.c.bf16 %v4880, %v4876
      %v4985 = vpack.c.bf16 %v4881, %v4877
      %v4986 = vpack.c.bf16 %v4882, %v4878
      %v4987 = vpack.c.bf16 %v4883, %v4879
      %v4988 = vpack.c.bf16 %v4888, %v4884
      %v4989 = vpack.c.bf16 %v4889, %v4885
      %v4990 = vpack.c.bf16 %v4890, %v4886
      %v4991 = vpack.c.bf16 %v4891, %v4887
      %v4992 = vpack.c.bf16 %v4896, %v4892
      %v4993 = vpack.c.bf16 %v4897, %v4893
      %v4994 = vpack.c.bf16 %v4898, %v4894
      %v4995 = vpack.c.bf16 %v4899, %v4895
      %v4996 = vpack.c.bf16 %v4904, %v4900
      %v4997 = vpack.c.bf16 %v4905, %v4901
      %v4998 = vpack.c.bf16 %v4906, %v4902
      %v4999 = vpack.c.bf16 %v4907, %v4903
      %v5000 = vpack.c.bf16 %v4912, %v4908
      %v5001 = vpack.c.bf16 %v4913, %v4909
      %v5002 = vpack.c.bf16 %v4914, %v4910
      %v5003 = vpack.c.bf16 %v4915, %v4911
      %v5004 = vpack.c.bf16 %v4920, %v4916
      %v5005 = vpack.c.bf16 %v4921, %v4917
      %v5006 = vpack.c.bf16 %v4922, %v4918
      %v5007 = vpack.c.bf16 %v4923, %v4919
      %v5008 = vpack.c.bf16 %v4928, %v4924
      %v5009 = vpack.c.bf16 %v4929, %v4925
      %v5010 = vpack.c.bf16 %v4930, %v4926
      %v5011 = vpack.c.bf16 %v4931, %v4927
      %v5012 = vpack.c.bf16 %v4936, %v4932
      %v5013 = vpack.c.bf16 %v4937, %v4933
      %v5014 = vpack.c.bf16 %v4938, %v4934
      %v5015 = vpack.c.bf16 %v4939, %v4935
      %v5016 = vpack.c.bf16 %v4944, %v4940
      %v5017 = vpack.c.bf16 %v4945, %v4941
      %v5018 = vpack.c.bf16 %v4946, %v4942
      %v5019 = vpack.c.bf16 %v4947, %v4943
      %v5020 = vpack.c.bf16 %v4952, %v4948
      %v5021 = vpack.c.bf16 %v4953, %v4949
      %v5022 = vpack.c.bf16 %v4954, %v4950
      %v5023 = vpack.c.bf16 %v4955, %v4951
      %v5024 = vpack.c.bf16 %v4960, %v4956
      %v5025 = vpack.c.bf16 %v4961, %v4957
      %v5026 = vpack.c.bf16 %v4962, %v4958
      %v5027 = vpack.c.bf16 %v4963, %v4959
      %v5028 = vld [vmem:[%s3] sm:$0xf]
      %v5029 = vld [vmem:[%s3 + $0x4] sm:$0xf]
      %v5030 = vld [vmem:[%s3 + $0x8] sm:$0xf]
      %v5031 = vld [vmem:[%s3 + $0xc] sm:$0xf]
      %v5032 = vld [vmem:[%s3 + $0x10] sm:$0xf]
      %v5033 = vld [vmem:[%s3 + $0x14] sm:$0xf]
      %v5034 = vld [vmem:[%s3 + $0x18] sm:$0xf]
      %v5035 = vld [vmem:[%s3 + $0x1c] sm:$0xf]
      %v5036 = vld [vmem:[%s3 + $0x20] sm:$0xf]
      %v5037 = vld [vmem:[%s3 + $0x24] sm:$0xf]
      %v5038 = vld [vmem:[%s3 + $0x28] sm:$0xf]
      %v5039 = vld [vmem:[%s3 + $0x2c] sm:$0xf]
      %v5040 = vld [vmem:[%s3 + $0x30] sm:$0xf]
      %v5041 = vld [vmem:[%s3 + $0x34] sm:$0xf]
      %v5042 = vld [vmem:[%s3 + $0x38] sm:$0xf]
      %v5043 = vld [vmem:[%s3 + $0x3c] sm:$0xf]
      %v5044 = vld [vmem:[%s3 + $0x40] sm:$0xf]
      %v5045 = vld [vmem:[%s3 + $0x44] sm:$0xf]
      %v5046 = vld [vmem:[%s3 + $0x48] sm:$0xf]
      %v5047 = vld [vmem:[%s3 + $0x4c] sm:$0xf]
      %v5048 = vld [vmem:[%s3 + $0x50] sm:$0xf]
      %v5049 = vld [vmem:[%s3 + $0x54] sm:$0xf]
      %v5050 = vld [vmem:[%s3 + $0x58] sm:$0xf]
      %v5051 = vld [vmem:[%s3 + $0x5c] sm:$0xf]
      %v5052 = vld [vmem:[%s3 + $0x60] sm:$0xf]
      %v5053 = vld [vmem:[%s3 + $0x64] sm:$0xf]
      %v5054 = vld [vmem:[%s3 + $0x68] sm:$0xf]
      %v5055 = vld [vmem:[%s3 + $0x6c] sm:$0xf]
      %v5056 = vld [vmem:[%s3 + $0x70] sm:$0xf]
      %v5057 = vld [vmem:[%s3 + $0x74] sm:$0xf]
      %v5058 = vld [vmem:[%s3 + $0x78] sm:$0xf]
      %v5059 = vld [vmem:[%s3 + $0x7c] sm:$0xf]
      %v5060 = vld [vmem:[%s3 + $0x80] sm:$0xf]
      %v5061 = vld [vmem:[%s3 + $0x84] sm:$0xf]
      %v5062 = vld [vmem:[%s3 + $0x88] sm:$0xf]
      %v5063 = vld [vmem:[%s3 + $0x8c] sm:$0xf]
      %v5064 = vld [vmem:[%s3 + $0x90] sm:$0xf]
      %v5065 = vld [vmem:[%s3 + $0x94] sm:$0xf]
      %v5066 = vld [vmem:[%s3 + $0x98] sm:$0xf]
      %v5067 = vld [vmem:[%s3 + $0x9c] sm:$0xf]
      %v5068 = vld [vmem:[%s3 + $0xa0] sm:$0xf]
      %v5069 = vld [vmem:[%s3 + $0xa4] sm:$0xf]
      %v5070 = vld [vmem:[%s3 + $0xa8] sm:$0xf]
      %v5071 = vld [vmem:[%s3 + $0xac] sm:$0xf]
      %v5072 = vld [vmem:[%s3 + $0xb0] sm:$0xf]
      %v5073 = vld [vmem:[%s3 + $0xb4] sm:$0xf]
      %v5074 = vld [vmem:[%s3 + $0xb8] sm:$0xf]
      %v5075 = vld [vmem:[%s3 + $0xbc] sm:$0xf]
      %v5076 = vld [vmem:[%s3 + $0xc0] sm:$0xf]
      %v5077 = vld [vmem:[%s3 + $0xc4] sm:$0xf]
      %v5078 = vld [vmem:[%s3 + $0xc8] sm:$0xf]
      %v5079 = vld [vmem:[%s3 + $0xcc] sm:$0xf]
      %v5080 = vld [vmem:[%s3 + $0xd0] sm:$0xf]
      %v5081 = vld [vmem:[%s3 + $0xd4] sm:$0xf]
      %v5082 = vld [vmem:[%s3 + $0xd8] sm:$0xf]
      %v5083 = vld [vmem:[%s3 + $0xdc] sm:$0xf]
      %v5084 = vld [vmem:[%s3 + $0xe0] sm:$0xf]
      %v5085 = vld [vmem:[%s3 + $0xe4] sm:$0xf]
      %v5086 = vld [vmem:[%s3 + $0xe8] sm:$0xf]
      %v5087 = vld [vmem:[%s3 + $0xec] sm:$0xf]
      %v5088 = vld [vmem:[%s3 + $0xf0] sm:$0xf]
      %v5089 = vld [vmem:[%s3 + $0xf4] sm:$0xf]
      %v5090 = vld [vmem:[%s3 + $0xf8] sm:$0xf]
      %v5091 = vld [vmem:[%s3 + $0xfc] sm:$0xf]
      %v5092 = vld [vmem:[%s4] sm:$0x1]
      %v5094 = vperm.slane %v5092, 0
      %v5160 = vunpack.c.l.b16 %v5028
      %v5161 = vunpack.c.l.b16 %v5029
      %v5162 = vunpack.c.l.b16 %v5030
      %v5163 = vunpack.c.l.b16 %v5031
      %v5164 = vunpack.c.l.b16 %v5032
      %v5165 = vunpack.c.l.b16 %v5033
      %v5166 = vunpack.c.l.b16 %v5034
      %v5167 = vunpack.c.l.b16 %v5035
      %v5168 = vunpack.c.l.b16 %v5036
      %v5169 = vunpack.c.l.b16 %v5037
      %v5170 = vunpack.c.l.b16 %v5038
      %v5171 = vunpack.c.l.b16 %v5039
      %v5172 = vunpack.c.l.b16 %v5040
      %v5173 = vunpack.c.l.b16 %v5041
      %v5174 = vunpack.c.l.b16 %v5042
      %v5175 = vunpack.c.l.b16 %v5043
      %v5176 = vunpack.c.l.b16 %v5044
      %v5177 = vunpack.c.l.b16 %v5045
      %v5178 = vunpack.c.l.b16 %v5046
      %v5179 = vunpack.c.l.b16 %v5047
      %v5180 = vunpack.c.l.b16 %v5048
      %v5181 = vunpack.c.l.b16 %v5049
      %v5182 = vunpack.c.l.b16 %v5050
      %v5183 = vunpack.c.l.b16 %v5051
      %v5184 = vunpack.c.l.b16 %v5052
      %v5185 = vunpack.c.l.b16 %v5053
      %v5186 = vunpack.c.l.b16 %v5054
      %v5187 = vunpack.c.l.b16 %v5055
      %v5188 = vunpack.c.l.b16 %v5056
      %v5189 = vunpack.c.l.b16 %v5057
      %v5190 = vunpack.c.l.b16 %v5058
      %v5191 = vunpack.c.l.b16 %v5059
      %v5192 = vunpack.c.l.b16 %v5060
      %v5193 = vunpack.c.l.b16 %v5061
      %v5194 = vunpack.c.l.b16 %v5062
      %v5195 = vunpack.c.l.b16 %v5063
      %v5196 = vunpack.c.l.b16 %v5064
      %v5197 = vunpack.c.l.b16 %v5065
      %v5198 = vunpack.c.l.b16 %v5066
      %v5199 = vunpack.c.l.b16 %v5067
      %v5200 = vunpack.c.l.b16 %v5068
      %v5201 = vunpack.c.l.b16 %v5069
      %v5202 = vunpack.c.l.b16 %v5070
      %v5203 = vunpack.c.l.b16 %v5071
      %v5204 = vunpack.c.l.b16 %v5072
      %v5205 = vunpack.c.l.b16 %v5073
      %v5206 = vunpack.c.l.b16 %v5074
      %v5207 = vunpack.c.l.b16 %v5075
      %v5208 = vunpack.c.l.b16 %v5076
      %v5209 = vunpack.c.l.b16 %v5077
      %v5210 = vunpack.c.l.b16 %v5078
      %v5211 = vunpack.c.l.b16 %v5079
      %v5212 = vunpack.c.l.b16 %v5080
      %v5213 = vunpack.c.l.b16 %v5081
      %v5214 = vunpack.c.l.b16 %v5082
      %v5215 = vunpack.c.l.b16 %v5083
      %v5216 = vunpack.c.l.b16 %v5084
      %v5217 = vunpack.c.l.b16 %v5085
      %v5218 = vunpack.c.l.b16 %v5086
      %v5219 = vunpack.c.l.b16 %v5087
      %v5220 = vunpack.c.l.b16 %v5088
      %v5221 = vunpack.c.l.b16 %v5089
      %v5222 = vunpack.c.l.b16 %v5090
      %v5223 = vunpack.c.l.b16 %v5091
      %v5224 = vpack.c.b16 %v5161, %v5160
      %v5225 = vpack.c.b16 %v5163, %v5162
      %v5226 = vpack.c.b16 %v5165, %v5164
      %v5227 = vpack.c.b16 %v5167, %v5166
      %v5228 = vpack.c.b16 %v5169, %v5168
      %v5229 = vpack.c.b16 %v5171, %v5170
      %v5230 = vpack.c.b16 %v5173, %v5172
      %v5231 = vpack.c.b16 %v5175, %v5174
      %v5232 = vpack.c.b16 %v5177, %v5176
      %v5233 = vpack.c.b16 %v5179, %v5178
      %v5234 = vpack.c.b16 %v5181, %v5180
      %v5235 = vpack.c.b16 %v5183, %v5182
      %v5236 = vpack.c.b16 %v5185, %v5184
      %v5237 = vpack.c.b16 %v5187, %v5186
      %v5238 = vpack.c.b16 %v5189, %v5188
      %v5239 = vpack.c.b16 %v5191, %v5190
      %v5240 = vpack.c.b16 %v5193, %v5192
      %v5241 = vpack.c.b16 %v5195, %v5194
      %v5242 = vpack.c.b16 %v5197, %v5196
      %v5243 = vpack.c.b16 %v5199, %v5198
      %v5244 = vpack.c.b16 %v5201, %v5200
      %v5245 = vpack.c.b16 %v5203, %v5202
      %v5246 = vpack.c.b16 %v5205, %v5204
      %v5247 = vpack.c.b16 %v5207, %v5206
      %v5248 = vpack.c.b16 %v5209, %v5208
      %v5249 = vpack.c.b16 %v5211, %v5210
      %v5250 = vpack.c.b16 %v5213, %v5212
      %v5251 = vpack.c.b16 %v5215, %v5214
      %v5252 = vpack.c.b16 %v5217, %v5216
      %v5253 = vpack.c.b16 %v5219, %v5218
      %v5254 = vpack.c.b16 %v5221, %v5220
      %v5255 = vpack.c.b16 %v5223, %v5222
      %5288 = vmatpush.bf16.msra.mxu0 %v5231
      %5289 = vmatpush.bf16.msra.mxu0 %v5230
      %5290 = vmatpush.bf16.msra.mxu0 %v5229
      %5291 = vmatpush.bf16.msra.mxu0 %v5228
      %5292 = vmatpush.bf16.msra.mxu0 %v5227
      %5293 = vmatpush.bf16.msra.mxu0 %v5226
      %5294 = vmatpush.bf16.msra.mxu0 %v5225
      %5295 = vmatpush.bf16.msra.mxu0 %v5224
      %5296 = vmatmul.bf16.gmra.mxu0 %v4964
      %v5297 = vpop.f32.mrf.mxu0
      %v5298 = vadd.f32 %v5094, %v5297
      %v5299 = vpop.f32.mrf.mxu0
      %v5300 = vadd.f32 %v5094, %v5299
      %5301 = vmatmul.bf16.gmra.mxu0 %v4968
      %v5302 = vpop.f32.mrf.mxu0
      %v5303 = vadd.f32 %v5094, %v5302
      %v5304 = vpop.f32.mrf.mxu0
      %v5305 = vadd.f32 %v5094, %v5304
      %5306 = vmatmul.bf16.gmra.mxu0 %v4972
      %v5307 = vpop.f32.mrf.mxu0
      %v5308 = vadd.f32 %v5094, %v5307
      %v5309 = vpop.f32.mrf.mxu0
      %v5310 = vadd.f32 %v5094, %v5309
      %5311 = vmatmul.bf16.gmra.mxu0 %v4976
      %v5312 = vpop.f32.mrf.mxu0
      %v5313 = vadd.f32 %v5094, %v5312
      %v5314 = vpop.f32.mrf.mxu0
      %v5315 = vadd.f32 %v5094, %v5314
      %5316 = vmatmul.bf16.gmra.mxu0 %v4980
      %v5317 = vpop.f32.mrf.mxu0
      %v5318 = vadd.f32 %v5094, %v5317
      %v5319 = vpop.f32.mrf.mxu0
      %v5320 = vadd.f32 %v5094, %v5319
      %5321 = vmatmul.bf16.gmra.mxu0 %v4984
      %v5322 = vpop.f32.mrf.mxu0
      %v5323 = vadd.f32 %v5094, %v5322
      %v5324 = vpop.f32.mrf.mxu0
      %v5325 = vadd.f32 %v5094, %v5324
      %5326 = vmatmul.bf16.gmra.mxu0 %v4988
      %v5327 = vpop.f32.mrf.mxu0
      %v5328 = vadd.f32 %v5094, %v5327
      %v5329 = vpop.f32.mrf.mxu0
      %v5330 = vadd.f32 %v5094, %v5329
      %5331 = vmatmul.bf16.gmra.mxu0 %v4992
      %v5332 = vpop.f32.mrf.mxu0
      %v5333 = vadd.f32 %v5094, %v5332
      %v5334 = vpop.f32.mrf.mxu0
      %v5335 = vadd.f32 %v5094, %v5334
      %5336 = vmatmul.bf16.gmra.mxu0 %v4996
      %v5337 = vpop.f32.mrf.mxu0
      %v5338 = vadd.f32 %v5094, %v5337
      %v5339 = vpop.f32.mrf.mxu0
      %v5340 = vadd.f32 %v5094, %v5339
      %5341 = vmatmul.bf16.gmra.mxu0 %v5000
      %v5342 = vpop.f32.mrf.mxu0
      %v5343 = vadd.f32 %v5094, %v5342
      %v5344 = vpop.f32.mrf.mxu0
      %v5345 = vadd.f32 %v5094, %v5344
      %5346 = vmatmul.bf16.gmra.mxu0 %v5004
      %v5347 = vpop.f32.mrf.mxu0
      %v5348 = vadd.f32 %v5094, %v5347
      %v5349 = vpop.f32.mrf.mxu0
      %v5350 = vadd.f32 %v5094, %v5349
      %5351 = vmatmul.bf16.gmra.mxu0 %v5008
      %v5352 = vpop.f32.mrf.mxu0
      %v5353 = vadd.f32 %v5094, %v5352
      %v5354 = vpop.f32.mrf.mxu0
      %v5355 = vadd.f32 %v5094, %v5354
      %5356 = vmatmul.bf16.gmra.mxu0 %v5012
      %v5357 = vpop.f32.mrf.mxu0
      %v5358 = vadd.f32 %v5094, %v5357
      %v5359 = vpop.f32.mrf.mxu0
      %v5360 = vadd.f32 %v5094, %v5359
      %5361 = vmatmul.bf16.gmra.mxu0 %v5016
      %v5362 = vpop.f32.mrf.mxu0
      %v5363 = vadd.f32 %v5094, %v5362
      %v5364 = vpop.f32.mrf.mxu0
      %v5365 = vadd.f32 %v5094, %v5364
      %5366 = vmatmul.bf16.gmra.mxu0 %v5020
      %v5367 = vpop.f32.mrf.mxu0
      %v5368 = vadd.f32 %v5094, %v5367
      %v5369 = vpop.f32.mrf.mxu0
      %v5370 = vadd.f32 %v5094, %v5369
      %5371 = vmatmul.bf16.gmra.mxu0 %v5024
      %v5372 = vpop.f32.mrf.mxu0
      %v5373 = vadd.f32 %v5094, %v5372
      %v5374 = vpop.f32.mrf.mxu0
      %v5375 = vadd.f32 %v5094, %v5374
      %5376 = vdwg.mxu0
      %5377 = vmatpush.bf16.msra.mxu0 %v5239
      %5378 = vmatpush.bf16.msra.mxu0 %v5238
      %5379 = vmatpush.bf16.msra.mxu0 %v5237
      %5380 = vmatpush.bf16.msra.mxu0 %v5236
      %5381 = vmatpush.bf16.msra.mxu0 %v5235
      %5382 = vmatpush.bf16.msra.mxu0 %v5234
      %5383 = vmatpush.bf16.msra.mxu0 %v5233
      %5384 = vmatpush.bf16.msra.mxu0 %v5232
      %5385 = vmatmul.bf16.gmra.mxu0 %v4965
      %v5386 = vpop.f32.mrf.mxu0
      %v5387 = vadd.f32 %v5298, %v5386
      %v5388 = vpop.f32.mrf.mxu0
      %v5389 = vadd.f32 %v5300, %v5388
      %5390 = vmatmul.bf16.gmra.mxu0 %v4969
      %v5391 = vpop.f32.mrf.mxu0
      %v5392 = vadd.f32 %v5303, %v5391
      %v5393 = vpop.f32.mrf.mxu0
      %v5394 = vadd.f32 %v5305, %v5393
      %5395 = vmatmul.bf16.gmra.mxu0 %v4973
      %v5396 = vpop.f32.mrf.mxu0
      %v5397 = vadd.f32 %v5308, %v5396
      %v5398 = vpop.f32.mrf.mxu0
      %v5399 = vadd.f32 %v5310, %v5398
      %5400 = vmatmul.bf16.gmra.mxu0 %v4977
      %v5401 = vpop.f32.mrf.mxu0
      %v5402 = vadd.f32 %v5313, %v5401
      %v5403 = vpop.f32.mrf.mxu0
      %v5404 = vadd.f32 %v5315, %v5403
      %5405 = vmatmul.bf16.gmra.mxu0 %v4981
      %v5406 = vpop.f32.mrf.mxu0
      %v5407 = vadd.f32 %v5318, %v5406
      %v5408 = vpop.f32.mrf.mxu0
      %v5409 = vadd.f32 %v5320, %v5408
      %5410 = vmatmul.bf16.gmra.mxu0 %v4985
      %v5411 = vpop.f32.mrf.mxu0
      %v5412 = vadd.f32 %v5323, %v5411
      %v5413 = vpop.f32.mrf.mxu0
      %v5414 = vadd.f32 %v5325, %v5413
      %5415 = vmatmul.bf16.gmra.mxu0 %v4989
      %v5416 = vpop.f32.mrf.mxu0
      %v5417 = vadd.f32 %v5328, %v5416
      %v5418 = vpop.f32.mrf.mxu0
      %v5419 = vadd.f32 %v5330, %v5418
      %5420 = vmatmul.bf16.gmra.mxu0 %v4993
      %v5421 = vpop.f32.mrf.mxu0
      %v5422 = vadd.f32 %v5333, %v5421
      %v5423 = vpop.f32.mrf.mxu0
      %v5424 = vadd.f32 %v5335, %v5423
      %5425 = vmatmul.bf16.gmra.mxu0 %v4997
      %v5426 = vpop.f32.mrf.mxu0
      %v5427 = vadd.f32 %v5338, %v5426
      %v5428 = vpop.f32.mrf.mxu0
      %v5429 = vadd.f32 %v5340, %v5428
      %5430 = vmatmul.bf16.gmra.mxu0 %v5001
      %v5431 = vpop.f32.mrf.mxu0
      %v5432 = vadd.f32 %v5343, %v5431
      %v5433 = vpop.f32.mrf.mxu0
      %v5434 = vadd.f32 %v5345, %v5433
      %5435 = vmatmul.bf16.gmra.mxu0 %v5005
      %v5436 = vpop.f32.mrf.mxu0
      %v5437 = vadd.f32 %v5348, %v5436
      %v5438 = vpop.f32.mrf.mxu0
      %v5439 = vadd.f32 %v5350, %v5438
      %5440 = vmatmul.bf16.gmra.mxu0 %v5009
      %v5441 = vpop.f32.mrf.mxu0
      %v5442 = vadd.f32 %v5353, %v5441
      %v5443 = vpop.f32.mrf.mxu0
      %v5444 = vadd.f32 %v5355, %v5443
      %5445 = vmatmul.bf16.gmra.mxu0 %v5013
      %v5446 = vpop.f32.mrf.mxu0
      %v5447 = vadd.f32 %v5358, %v5446
      %v5448 = vpop.f32.mrf.mxu0
      %v5449 = vadd.f32 %v5360, %v5448
      %5450 = vmatmul.bf16.gmra.mxu0 %v5017
      %v5451 = vpop.f32.mrf.mxu0
      %v5452 = vadd.f32 %v5363, %v5451
      %v5453 = vpop.f32.mrf.mxu0
      %v5454 = vadd.f32 %v5365, %v5453
      %5455 = vmatmul.bf16.gmra.mxu0 %v5021
      %v5456 = vpop.f32.mrf.mxu0
      %v5457 = vadd.f32 %v5368, %v5456
      %v5458 = vpop.f32.mrf.mxu0
      %v5459 = vadd.f32 %v5370, %v5458
      %5460 = vmatmul.bf16.gmra.mxu0 %v5025
      %v5461 = vpop.f32.mrf.mxu0
      %v5462 = vadd.f32 %v5373, %v5461
      %v5463 = vpop.f32.mrf.mxu0
      %v5464 = vadd.f32 %v5375, %v5463
      %5465 = vdwg.mxu0
      %5466 = vmatpush.bf16.msra.mxu0 %v5247
      %5467 = vmatpush.bf16.msra.mxu0 %v5246
      %5468 = vmatpush.bf16.msra.mxu0 %v5245
      %5469 = vmatpush.bf16.msra.mxu0 %v5244
      %5470 = vmatpush.bf16.msra.mxu0 %v5243
      %5471 = vmatpush.bf16.msra.mxu0 %v5242
      %5472 = vmatpush.bf16.msra.mxu0 %v5241
      %5473 = vmatpush.bf16.msra.mxu0 %v5240
      %5474 = vmatmul.bf16.gmra.mxu0 %v4966
      %v5475 = vpop.f32.mrf.mxu0
      %v5476 = vadd.f32 %v5387, %v5475
      %v5477 = vpop.f32.mrf.mxu0
      %v5478 = vadd.f32 %v5389, %v5477
      %5479 = vmatmul.bf16.gmra.mxu0 %v4970
      %v5480 = vpop.f32.mrf.mxu0
      %v5481 = vadd.f32 %v5392, %v5480
      %v5482 = vpop.f32.mrf.mxu0
      %v5483 = vadd.f32 %v5394, %v5482
      %5484 = vmatmul.bf16.gmra.mxu0 %v4974
      %v5485 = vpop.f32.mrf.mxu0
      %v5486 = vadd.f32 %v5397, %v5485
      %v5487 = vpop.f32.mrf.mxu0
      %v5488 = vadd.f32 %v5399, %v5487
      %5489 = vmatmul.bf16.gmra.mxu0 %v4978
      %v5490 = vpop.f32.mrf.mxu0
      %v5491 = vadd.f32 %v5402, %v5490
      %v5492 = vpop.f32.mrf.mxu0
      %v5493 = vadd.f32 %v5404, %v5492
      %5494 = vmatmul.bf16.gmra.mxu0 %v4982
      %v5495 = vpop.f32.mrf.mxu0
      %v5496 = vadd.f32 %v5407, %v5495
      %v5497 = vpop.f32.mrf.mxu0
      %v5498 = vadd.f32 %v5409, %v5497
      %5499 = vmatmul.bf16.gmra.mxu0 %v4986
      %v5500 = vpop.f32.mrf.mxu0
      %v5501 = vadd.f32 %v5412, %v5500
      %v5502 = vpop.f32.mrf.mxu0
      %v5503 = vadd.f32 %v5414, %v5502
      %5504 = vmatmul.bf16.gmra.mxu0 %v4990
      %v5505 = vpop.f32.mrf.mxu0
      %v5506 = vadd.f32 %v5417, %v5505
      %v5507 = vpop.f32.mrf.mxu0
      %v5508 = vadd.f32 %v5419, %v5507
      %5509 = vmatmul.bf16.gmra.mxu0 %v4994
      %v5510 = vpop.f32.mrf.mxu0
      %v5511 = vadd.f32 %v5422, %v5510
      %v5512 = vpop.f32.mrf.mxu0
      %v5513 = vadd.f32 %v5424, %v5512
      %5514 = vmatmul.bf16.gmra.mxu0 %v4998
      %v5515 = vpop.f32.mrf.mxu0
      %v5516 = vadd.f32 %v5427, %v5515
      %v5517 = vpop.f32.mrf.mxu0
      %v5518 = vadd.f32 %v5429, %v5517
      %5519 = vmatmul.bf16.gmra.mxu0 %v5002
      %v5520 = vpop.f32.mrf.mxu0
      %v5521 = vadd.f32 %v5432, %v5520
      %v5522 = vpop.f32.mrf.mxu0
      %v5523 = vadd.f32 %v5434, %v5522
      %5524 = vmatmul.bf16.gmra.mxu0 %v5006
      %v5525 = vpop.f32.mrf.mxu0
      %v5526 = vadd.f32 %v5437, %v5525
      %v5527 = vpop.f32.mrf.mxu0
      %v5528 = vadd.f32 %v5439, %v5527
      %5529 = vmatmul.bf16.gmra.mxu0 %v5010
      %v5530 = vpop.f32.mrf.mxu0
      %v5531 = vadd.f32 %v5442, %v5530
      %v5532 = vpop.f32.mrf.mxu0
      %v5533 = vadd.f32 %v5444, %v5532
      %5534 = vmatmul.bf16.gmra.mxu0 %v5014
      %v5535 = vpop.f32.mrf.mxu0
      %v5536 = vadd.f32 %v5447, %v5535
      %v5537 = vpop.f32.mrf.mxu0
      %v5538 = vadd.f32 %v5449, %v5537
      %5539 = vmatmul.bf16.gmra.mxu0 %v5018
      %v5540 = vpop.f32.mrf.mxu0
      %v5541 = vadd.f32 %v5452, %v5540
      %v5542 = vpop.f32.mrf.mxu0
      %v5543 = vadd.f32 %v5454, %v5542
      %5544 = vmatmul.bf16.gmra.mxu0 %v5022
      %v5545 = vpop.f32.mrf.mxu0
      %v5546 = vadd.f32 %v5457, %v5545
      %v5547 = vpop.f32.mrf.mxu0
      %v5548 = vadd.f32 %v5459, %v5547
      %5549 = vmatmul.bf16.gmra.mxu0 %v5026
      %v5550 = vpop.f32.mrf.mxu0
      %v5551 = vadd.f32 %v5462, %v5550
      %v5552 = vpop.f32.mrf.mxu0
      %v5553 = vadd.f32 %v5464, %v5552
      %5554 = vdwg.mxu0
      %5555 = vmatpush.bf16.msra.mxu0 %v5255
      %5556 = vmatpush.bf16.msra.mxu0 %v5254
      %5557 = vmatpush.bf16.msra.mxu0 %v5253
      %5558 = vmatpush.bf16.msra.mxu0 %v5252
      %5559 = vmatpush.bf16.msra.mxu0 %v5251
      %5560 = vmatpush.bf16.msra.mxu0 %v5250
      %5561 = vmatpush.bf16.msra.mxu0 %v5249
      %5562 = vmatpush.bf16.msra.mxu0 %v5248
      %5563 = vmatmul.bf16.gmra.mxu0 %v4967
      %v5564 = vpop.f32.mrf.mxu0
      %v5565 = vadd.f32 %v5476, %v5564
      %v5566 = vpop.f32.mrf.mxu0
      %v5567 = vadd.f32 %v5478, %v5566
      %5568 = vmatmul.bf16.gmra.mxu0 %v4971
      %v5569 = vpop.f32.mrf.mxu0
      %v5570 = vadd.f32 %v5481, %v5569
      %v5571 = vpop.f32.mrf.mxu0
      %v5572 = vadd.f32 %v5483, %v5571
      %5573 = vmatmul.bf16.gmra.mxu0 %v4975
      %v5574 = vpop.f32.mrf.mxu0
      %v5575 = vadd.f32 %v5486, %v5574
      %v5576 = vpop.f32.mrf.mxu0
      %v5577 = vadd.f32 %v5488, %v5576
      %5578 = vmatmul.bf16.gmra.mxu0 %v4979
      %v5579 = vpop.f32.mrf.mxu0
      %v5580 = vadd.f32 %v5491, %v5579
      %v5581 = vpop.f32.mrf.mxu0
      %v5582 = vadd.f32 %v5493, %v5581
      %5583 = vmatmul.bf16.gmra.mxu0 %v4983
      %v5584 = vpop.f32.mrf.mxu0
      %v5585 = vadd.f32 %v5496, %v5584
      %v5586 = vpop.f32.mrf.mxu0
      %v5587 = vadd.f32 %v5498, %v5586
      %5588 = vmatmul.bf16.gmra.mxu0 %v4987
      %v5589 = vpop.f32.mrf.mxu0
      %v5590 = vadd.f32 %v5501, %v5589
      %v5591 = vpop.f32.mrf.mxu0
      %v5592 = vadd.f32 %v5503, %v5591
      %5593 = vmatmul.bf16.gmra.mxu0 %v4991
      %v5594 = vpop.f32.mrf.mxu0
      %v5595 = vadd.f32 %v5506, %v5594
      %v5596 = vpop.f32.mrf.mxu0
      %v5597 = vadd.f32 %v5508, %v5596
      %5598 = vmatmul.bf16.gmra.mxu0 %v4995
      %v5599 = vpop.f32.mrf.mxu0
      %v5600 = vadd.f32 %v5511, %v5599
      %v5601 = vpop.f32.mrf.mxu0
      %v5602 = vadd.f32 %v5513, %v5601
      %5603 = vmatmul.bf16.gmra.mxu0 %v4999
      %v5604 = vpop.f32.mrf.mxu0
      %v5605 = vadd.f32 %v5516, %v5604
      %v5606 = vpop.f32.mrf.mxu0
      %v5607 = vadd.f32 %v5518, %v5606
      %5608 = vmatmul.bf16.gmra.mxu0 %v5003
      %v5609 = vpop.f32.mrf.mxu0
      %v5610 = vadd.f32 %v5521, %v5609
      %v5611 = vpop.f32.mrf.mxu0
      %v5612 = vadd.f32 %v5523, %v5611
      %5613 = vmatmul.bf16.gmra.mxu0 %v5007
      %v5614 = vpop.f32.mrf.mxu0
      %v5615 = vadd.f32 %v5526, %v5614
      %v5616 = vpop.f32.mrf.mxu0
      %v5617 = vadd.f32 %v5528, %v5616
      %5618 = vmatmul.bf16.gmra.mxu0 %v5011
      %v5619 = vpop.f32.mrf.mxu0
      %v5620 = vadd.f32 %v5531, %v5619
      %v5621 = vpop.f32.mrf.mxu0
      %v5622 = vadd.f32 %v5533, %v5621
      %5623 = vmatmul.bf16.gmra.mxu0 %v5015
      %v5624 = vpop.f32.mrf.mxu0
      %v5625 = vadd.f32 %v5536, %v5624
      %v5626 = vpop.f32.mrf.mxu0
      %v5627 = vadd.f32 %v5538, %v5626
      %5628 = vmatmul.bf16.gmra.mxu0 %v5019
      %v5629 = vpop.f32.mrf.mxu0
      %v5630 = vadd.f32 %v5541, %v5629
      %v5631 = vpop.f32.mrf.mxu0
      %v5632 = vadd.f32 %v5543, %v5631
      %5633 = vmatmul.bf16.gmra.mxu0 %v5023
      %v5634 = vpop.f32.mrf.mxu0
      %v5635 = vadd.f32 %v5546, %v5634
      %v5636 = vpop.f32.mrf.mxu0
      %v5637 = vadd.f32 %v5548, %v5636
      %5638 = vmatmul.bf16.gmra.mxu0 %v5027
      %v5639 = vpop.f32.mrf.mxu0
      %v5640 = vadd.f32 %v5551, %v5639
      %v5641 = vpop.f32.mrf.mxu0
      %v5642 = vadd.f32 %v5553, %v5641
      %5643 = vdwg.mxu0
      %v5644 = vmax.f32 %v5565, 0.0
      %v5645 = vmax.f32 %v5567, 0.0
      %v5646 = vmax.f32 %v5570, 0.0
      %v5647 = vmax.f32 %v5572, 0.0
      %v5648 = vmax.f32 %v5575, 0.0
      %v5649 = vmax.f32 %v5577, 0.0
      %v5650 = vmax.f32 %v5580, 0.0
      %v5651 = vmax.f32 %v5582, 0.0
      %v5652 = vmax.f32 %v5585, 0.0
      %v5653 = vmax.f32 %v5587, 0.0
      %v5654 = vmax.f32 %v5590, 0.0
      %v5655 = vmax.f32 %v5592, 0.0
      %v5656 = vmax.f32 %v5595, 0.0
      %v5657 = vmax.f32 %v5597, 0.0
      %v5658 = vmax.f32 %v5600, 0.0
      %v5659 = vmax.f32 %v5602, 0.0
      %v5660 = vmax.f32 %v5605, 0.0
      %v5661 = vmax.f32 %v5607, 0.0
      %v5662 = vmax.f32 %v5610, 0.0
      %v5663 = vmax.f32 %v5612, 0.0
      %v5664 = vmax.f32 %v5615, 0.0
      %v5665 = vmax.f32 %v5617, 0.0
      %v5666 = vmax.f32 %v5620, 0.0
      %v5667 = vmax.f32 %v5622, 0.0
      %v5668 = vmax.f32 %v5625, 0.0
      %v5669 = vmax.f32 %v5627, 0.0
      %v5670 = vmax.f32 %v5630, 0.0
      %v5671 = vmax.f32 %v5632, 0.0
      %v5672 = vmax.f32 %v5635, 0.0
      %v5673 = vmax.f32 %v5637, 0.0
      %v5674 = vmax.f32 %v5640, 0.0
      %v5675 = vmax.f32 %v5642, 0.0
      %v5676 = vpack.c.bf16 %v5645, %v5644
      %v5677 = vpack.c.bf16 %v5647, %v5646
      %v5678 = vpack.c.bf16 %v5649, %v5648
      %v5679 = vpack.c.bf16 %v5651, %v5650
      %v5680 = vpack.c.bf16 %v5653, %v5652
      %v5681 = vpack.c.bf16 %v5655, %v5654
      %v5682 = vpack.c.bf16 %v5657, %v5656
      %v5683 = vpack.c.bf16 %v5659, %v5658
      %v5684 = vpack.c.bf16 %v5661, %v5660
      %v5685 = vpack.c.bf16 %v5663, %v5662
      %v5686 = vpack.c.bf16 %v5665, %v5664
      %v5687 = vpack.c.bf16 %v5667, %v5666
      %v5688 = vpack.c.bf16 %v5669, %v5668
      %v5689 = vpack.c.bf16 %v5671, %v5670
      %v5690 = vpack.c.bf16 %v5673, %v5672
      %v5691 = vpack.c.bf16 %v5675, %v5674
      %v5692 = vld [vmem:[%s5] sm:$0xf]
      %v5693 = vld [vmem:[%s5 + $0x4] sm:$0xf]
      %v5694 = vld [vmem:[%s5 + $0x8] sm:$0xf]
      %v5695 = vld [vmem:[%s5 + $0xc] sm:$0xf]
      %v5696 = vld [vmem:[%s5 + $0x10] sm:$0xf]
      %v5697 = vld [vmem:[%s5 + $0x14] sm:$0xf]
      %v5698 = vld [vmem:[%s5 + $0x18] sm:$0xf]
      %v5699 = vld [vmem:[%s5 + $0x1c] sm:$0xf]
      %v5700 = vld [vmem:[%s6] sm:$0x1]
      %v5702 = vperm.slane %v5700, 0
      %v5712 = vunpack.c.l.b16 %v5692
      %v5713 = vunpack.c.l.b16 %v5693
      %v5714 = vunpack.c.l.b16 %v5694
      %v5715 = vunpack.c.l.b16 %v5695
      %v5716 = vunpack.c.l.b16 %v5696
      %v5717 = vunpack.c.l.b16 %v5697
      %v5718 = vunpack.c.l.b16 %v5698
      %v5719 = vunpack.c.l.b16 %v5699
      %v5720 = vpack.c.b16 %v5713, %v5712
      %v5721 = vpack.c.b16 %v5715, %v5714
      %v5722 = vpack.c.b16 %v5717, %v5716
      %v5723 = vpack.c.b16 %v5719, %v5718
      %vm5728 = vcmask 523264
      %v5730 = vsel %vm5728, %v5676, 0
      %v5733 = vsel %vm5728, %v5677, 0
      %v5736 = vsel %vm5728, %v5678, 0
      %v5739 = vsel %vm5728, %v5679, 0
      %v5742 = vsel %vm5728, %v5680, 0
      %v5745 = vsel %vm5728, %v5681, 0
      %v5748 = vsel %vm5728, %v5682, 0
      %v5751 = vsel %vm5728, %v5683, 0
      %v5754 = vsel %vm5728, %v5684, 0
      %v5757 = vsel %vm5728, %v5685, 0
      %v5760 = vsel %vm5728, %v5686, 0
      %v5763 = vsel %vm5728, %v5687, 0
      %v5766 = vsel %vm5728, %v5688, 0
      %v5769 = vsel %vm5728, %v5689, 0
      %v5772 = vsel %vm5728, %v5690, 0
      %v5775 = vsel %vm5728, %v5691, 0
      %5777 = vmatpush.bf16.msra.mxu0 0
      %5778 = vmatpush.bf16.msra.mxu0 0
      %5779 = vmatpush.bf16.msra.mxu0 0
      %5780 = vmatpush.bf16.msra.mxu0 0
      %5781 = vmatpush.bf16.msra.mxu0 %v5723
      %5782 = vmatpush.bf16.msra.mxu0 %v5722
      %5783 = vmatpush.bf16.msra.mxu0 %v5721
      %5784 = vmatpush.bf16.msra.mxu0 %v5720
      %5785 = vmatmul.bf16.gmra.mxu0 %v5730
      %v5786 = vpop.f32.mrf.mxu0
      %v5787 = vadd.f32 %v5702, %v5786
      %v5788 = vpop.f32.mrf.mxu0
      %v5789 = vadd.f32 %v5702, %v5788
      %5790 = vmatmul.bf16.gmra.mxu0 %v5733
      %v5791 = vpop.f32.mrf.mxu0
      %v5792 = vadd.f32 %v5702, %v5791
      %v5793 = vpop.f32.mrf.mxu0
      %v5794 = vadd.f32 %v5702, %v5793
      %5795 = vmatmul.bf16.gmra.mxu0 %v5736
      %v5796 = vpop.f32.mrf.mxu0
      %v5797 = vadd.f32 %v5702, %v5796
      %v5798 = vpop.f32.mrf.mxu0
      %v5799 = vadd.f32 %v5702, %v5798
      %5800 = vmatmul.bf16.gmra.mxu0 %v5739
      %v5801 = vpop.f32.mrf.mxu0
      %v5802 = vadd.f32 %v5702, %v5801
      %v5803 = vpop.f32.mrf.mxu0
      %v5804 = vadd.f32 %v5702, %v5803
      %5805 = vmatmul.bf16.gmra.mxu0 %v5742
      %v5806 = vpop.f32.mrf.mxu0
      %v5807 = vadd.f32 %v5702, %v5806
      %v5808 = vpop.f32.mrf.mxu0
      %v5809 = vadd.f32 %v5702, %v5808
      %5810 = vmatmul.bf16.gmra.mxu0 %v5745
      %v5811 = vpop.f32.mrf.mxu0
      %v5812 = vadd.f32 %v5702, %v5811
      %v5813 = vpop.f32.mrf.mxu0
      %v5814 = vadd.f32 %v5702, %v5813
      %5815 = vmatmul.bf16.gmra.mxu0 %v5748
      %v5816 = vpop.f32.mrf.mxu0
      %v5817 = vadd.f32 %v5702, %v5816
      %v5818 = vpop.f32.mrf.mxu0
      %v5819 = vadd.f32 %v5702, %v5818
      %5820 = vmatmul.bf16.gmra.mxu0 %v5751
      %v5821 = vpop.f32.mrf.mxu0
      %v5822 = vadd.f32 %v5702, %v5821
      %v5823 = vpop.f32.mrf.mxu0
      %v5824 = vadd.f32 %v5702, %v5823
      %5825 = vmatmul.bf16.gmra.mxu0 %v5754
      %v5826 = vpop.f32.mrf.mxu0
      %v5827 = vadd.f32 %v5702, %v5826
      %v5828 = vpop.f32.mrf.mxu0
      %v5829 = vadd.f32 %v5702, %v5828
      %5830 = vmatmul.bf16.gmra.mxu0 %v5757
      %v5831 = vpop.f32.mrf.mxu0
      %v5832 = vadd.f32 %v5702, %v5831
      %v5833 = vpop.f32.mrf.mxu0
      %v5834 = vadd.f32 %v5702, %v5833
      %5835 = vmatmul.bf16.gmra.mxu0 %v5760
      %v5836 = vpop.f32.mrf.mxu0
      %v5837 = vadd.f32 %v5702, %v5836
      %v5838 = vpop.f32.mrf.mxu0
      %v5839 = vadd.f32 %v5702, %v5838
      %5840 = vmatmul.bf16.gmra.mxu0 %v5763
      %v5841 = vpop.f32.mrf.mxu0
      %v5842 = vadd.f32 %v5702, %v5841
      %v5843 = vpop.f32.mrf.mxu0
      %v5844 = vadd.f32 %v5702, %v5843
      %5845 = vmatmul.bf16.gmra.mxu0 %v5766
      %v5846 = vpop.f32.mrf.mxu0
      %v5847 = vadd.f32 %v5702, %v5846
      %v5848 = vpop.f32.mrf.mxu0
      %v5849 = vadd.f32 %v5702, %v5848
      %5850 = vmatmul.bf16.gmra.mxu0 %v5769
      %v5851 = vpop.f32.mrf.mxu0
      %v5852 = vadd.f32 %v5702, %v5851
      %v5853 = vpop.f32.mrf.mxu0
      %v5854 = vadd.f32 %v5702, %v5853
      %5855 = vmatmul.bf16.gmra.mxu0 %v5772
      %v5856 = vpop.f32.mrf.mxu0
      %v5857 = vadd.f32 %v5702, %v5856
      %v5858 = vpop.f32.mrf.mxu0
      %v5859 = vadd.f32 %v5702, %v5858
      %5860 = vmatmul.bf16.gmra.mxu0 %v5775
      %v5861 = vpop.f32.mrf.mxu0
      %v5862 = vadd.f32 %v5702, %v5861
      %v5863 = vpop.f32.mrf.mxu0
      %v5864 = vadd.f32 %v5702, %v5863
      %5865 = vdwg.mxu0
      %v5866 = vmax.f32 %v5787, 0.0
      %v5867 = vmax.f32 %v5789, 0.0
      %v5868 = vmax.f32 %v5792, 0.0
      %v5869 = vmax.f32 %v5794, 0.0
      %v5870 = vmax.f32 %v5797, 0.0
      %v5871 = vmax.f32 %v5799, 0.0
      %v5872 = vmax.f32 %v5802, 0.0
      %v5873 = vmax.f32 %v5804, 0.0
      %v5874 = vmax.f32 %v5807, 0.0
      %v5875 = vmax.f32 %v5809, 0.0
      %v5876 = vmax.f32 %v5812, 0.0
      %v5877 = vmax.f32 %v5814, 0.0
      %v5878 = vmax.f32 %v5817, 0.0
      %v5879 = vmax.f32 %v5819, 0.0
      %v5880 = vmax.f32 %v5822, 0.0
      %v5881 = vmax.f32 %v5824, 0.0
      %v5882 = vmax.f32 %v5827, 0.0
      %v5883 = vmax.f32 %v5829, 0.0
      %v5884 = vmax.f32 %v5832, 0.0
      %v5885 = vmax.f32 %v5834, 0.0
      %v5886 = vmax.f32 %v5837, 0.0
      %v5887 = vmax.f32 %v5839, 0.0
      %v5888 = vmax.f32 %v5842, 0.0
      %v5889 = vmax.f32 %v5844, 0.0
      %v5890 = vmax.f32 %v5847, 0.0
      %v5891 = vmax.f32 %v5849, 0.0
      %v5892 = vmax.f32 %v5852, 0.0
      %v5893 = vmax.f32 %v5854, 0.0
      %v5894 = vmax.f32 %v5857, 0.0
      %v5895 = vmax.f32 %v5859, 0.0
      %v5896 = vmax.f32 %v5862, 0.0
      %v5897 = vmax.f32 %v5864, 0.0
      %5898 = vst [vmem:[%s283] sm:$0xff] %v5866
      %5899 = vst [vmem:[%s283 + $0x8] sm:$0xff] %v5867
      %5900 = vst [vmem:[%s283 + $0x10] sm:$0xff] %v5868
      %5901 = vst [vmem:[%s283 + $0x18] sm:$0xff] %v5869
      %5902 = vst [vmem:[%s283 + $0x20] sm:$0xff] %v5870
      %5903 = vst [vmem:[%s283 + $0x28] sm:$0xff] %v5871
      %5904 = vst [vmem:[%s283 + $0x30] sm:$0xff] %v5872
      %5905 = vst [vmem:[%s283 + $0x38] sm:$0xff] %v5873
      %5906 = vst [vmem:[%s283 + $0x40] sm:$0xff] %v5874
      %5907 = vst [vmem:[%s283 + $0x48] sm:$0xff] %v5875
      %5908 = vst [vmem:[%s283 + $0x50] sm:$0xff] %v5876
      %5909 = vst [vmem:[%s283 + $0x58] sm:$0xff] %v5877
      %5910 = vst [vmem:[%s283 + $0x60] sm:$0xff] %v5878
      %5911 = vst [vmem:[%s283 + $0x68] sm:$0xff] %v5879
      %5912 = vst [vmem:[%s283 + $0x70] sm:$0xff] %v5880
      %5913 = vst [vmem:[%s283 + $0x78] sm:$0xff] %v5881
      %5914 = vst [vmem:[%s283 + $0x80] sm:$0xff] %v5882
      %5915 = vst [vmem:[%s283 + $0x88] sm:$0xff] %v5883
      %5916 = vst [vmem:[%s283 + $0x90] sm:$0xff] %v5884
      %5917 = vst [vmem:[%s283 + $0x98] sm:$0xff] %v5885
      %5918 = vst [vmem:[%s283 + $0xa0] sm:$0xff] %v5886
      %5919 = vst [vmem:[%s283 + $0xa8] sm:$0xff] %v5887
      %5920 = vst [vmem:[%s283 + $0xb0] sm:$0xff] %v5888
      %5921 = vst [vmem:[%s283 + $0xb8] sm:$0xff] %v5889
      %5922 = vst [vmem:[%s283 + $0xc0] sm:$0xff] %v5890
      %5923 = vst [vmem:[%s283 + $0xc8] sm:$0xff] %v5891
      %5924 = vst [vmem:[%s283 + $0xd0] sm:$0xff] %v5892
      %5925 = vst [vmem:[%s283 + $0xd8] sm:$0xff] %v5893
      %5926 = vst [vmem:[%s283 + $0xe0] sm:$0xff] %v5894
      %5927 = vst [vmem:[%s283 + $0xe8] sm:$0xff] %v5895
      %5928 = vst [vmem:[%s283 + $0xf0] sm:$0xff] %v5896
      %5929 = vst [vmem:[%s283 + $0xf8] sm:$0xff] %v5897
      %s5930 = smul.u32 32, %s18
      %p5931 = scmp.lt.s32.totalorder %s5930, 63
      %s5932 = scalar_select %p5931, %s5930, 63
      %s5933 = smul.addr %s5932, 8
      %s5934 = scalar_lea.vmem %s7, %s5933
      // Predicated region
      $region49: #{mlpnet_forward.1} parent=47 // pred_check
        %p5935 = pneg %p188
      $region50: #{mlpnet_forward.1} parent=47 // pred_check_branch
        %5937 = sbr.rel (%p5935) target = $region52
      $region51: #{mlpnet_forward.1} parent=47 // pred_region
        %s5938 = smul.u32 32, %s18
      $region52: #{mlpnet_forward.1} parent=47 // pred_fallthru
        _
    $region48: #{mlpnet_forward.1} parent=5 // pred_fallthru
      _
    %p5939 = scmp.le.s32.totalorder 2, %s13
    // Predicated region
    $region53: #{mlpnet_forward.1} parent=5 // pred_check
      %p5940 = pneg %p5939
    $region54: #{mlpnet_forward.1} parent=5 // pred_check_branch
      %5942 = sbr.rel (%p5940) target = $region56
    $region55: #{mlpnet_forward.1} parent=5 // pred_region
      %s5943 = ssub.s32 %s13, 2
      // Predicated region
      $region57: #{mlpnet_forward.1} parent=55 // pred_check
        %p5944 = pneg %p194
      $region58: #{mlpnet_forward.1} parent=55 // pred_check_branch
        %5946 = sbr.rel (%p5944) target = $region60
      $region59: #{mlpnet_forward.1} parent=55 // pred_region
        %s5947 = smul.u32 32, %s19
        %p5948 = scmp.lt.s32.totalorder %s5947, 63
        %s5949 = scalar_select %p5948, %s5947, 63
        %s5950 = smul.addr %s5949, 8
        %s5951 = scalar_lea.vmem %s7, %s5950
      $region60: #{mlpnet_forward.1} parent=55 // pred_fallthru
        _
    $region56: #{mlpnet_forward.1} parent=5 // pred_fallthru
      _
  $region6: #{mlpnet_forward.1} parent=0 // loop_footer
    %s17 = sadd.s32 1, %s13
  $region7: #{mlpnet_forward.1} parent=0 // loop_footer_branch
    %12 = sbr.rel target = $region3
  $region8: #{mlpnet_forward.1} parent=0 // loop_exit
    _

</llo_original>
